<compile_context>
chip_gen: v7x
topology: tpu7x:2x2x1
jax: 0.10.0
libtpu: 0.0.40
codegen_flags: <defaults>
</compile_context>

<pallas_src>
import functools

import jax
import jax.numpy as jnp
from jax.experimental import pallas as pl
from jax.experimental.pallas import tpu as pltpu

LANE = 128          # lane width: narrow class dims are padded to this
H_IN = 768          # hidden size of the frozen base model
H1 = 256            # feature_extractor1 width
H2 = 64             # feature_extractor2 width
N_CLS = 11          # feature_extractor3 width
OUT_W = 3 * LANE    # fused output: [head1 | ReLU MLP (heads 2&4) | Sigmoid MLP (head 3)]
NEG_INF = float("-inf")


# ----------------------------- kernel helpers ---------------------------------

def _softmax_lastdim(logits):
    # nn.Softmax over the class axis; -inf bias pads -> exactly 0 probability.
    # Exact divide (review item): one divide per row, identical wall clock,
    # rows sum to 1 at f32 precision.
    m = jnp.max(logits, axis=-1, keepdims=True)
    e = jnp.exp(logits - m)
    return e / jnp.sum(e, axis=-1, keepdims=True)


def _relu(x):
    return jnp.maximum(x, 0.0)


def _sigmoid(x):
    # Stable sigmoid via tanh (EUP); avoids exp overflow, f32 throughout (v5e-safe).
    return 0.5 * (jnp.tanh(0.5 * x) + 1.0)


# ------------------------------ fused kernel ----------------------------------

def fused_heads_kernel(x_ref, w1c_ref, b1c_ref, w2b_ref, b2b_ref,
                       w3b_ref, b3b_ref, o_ref):
    """All heads in one pass over the CLS activations.

    w1c: (768, 384)  = [feature_extractor1 (768,256) | head-1 linear padded to 128]
    w2b: (512, 256)  = blockdiag(fe2 padded to 128) over {ReLU, Sigmoid} paths
    w3b: (256, 256)  = blockdiag(fe3 padded to 128x128)
    Logit bias pads are -inf so the padded softmax columns get probability 0.
    """
    x = x_ref[...]                                                    # (TB, 768) bf16
    h1c = jnp.dot(x, w1c_ref[...],
                  preferred_element_type=jnp.float32) + b1c_ref[...]  # (TB, 384) f32
    h1 = h1c[:, :H1]                                                  # (TB, 256) pre-act
    head1_logits = h1c[:, H1:]                                        # (TB, 128), pads = -inf

    # Both activation paths share the same feature weights -> block-diag layer 2.
    h1_both = jnp.concatenate([_relu(h1), _sigmoid(h1)], axis=-1)     # (TB, 512)
    h2 = jnp.dot(h1_both.astype(jnp.bfloat16), w2b_ref[...],
                 preferred_element_type=jnp.float32) + b2b_ref[...]   # (TB, 256)
    # cols 0:128 = ReLU path (cols >= 64 are inert zero pads); cols 128:256 =
    # Sigmoid path (pads give sigmoid(0)=0.5, nullified by w3's zero row pads).
    h2_act = jnp.concatenate([_relu(h2[:, :LANE]), _sigmoid(h2[:, LANE:])], axis=-1)
    logits = jnp.dot(h2_act.astype(jnp.bfloat16), w3b_ref[...],
                     preferred_element_type=jnp.float32) + b3b_ref[...]  # (TB, 256)

    # Lane-dense (TB, 384) output: three unmasked 128-wide stores; pads -> 0.
    o_ref[:, 0:LANE] = _softmax_lastdim(head1_logits)                  # head 1
    o_ref[:, LANE:2 * LANE] = _softmax_lastdim(logits[:, :LANE])       # heads 2 & 4
    o_ref[:, 2 * LANE:3 * LANE] = _softmax_lastdim(logits[:, LANE:])   # head 3


# ------------------------------ tiling helpers ---------------------------------

def _round_up(x, m):
    return ((x + m - 1) // m) * m


def _num_tensorcores():
    # v7x has 2 TensorCores per chip; v5e/v6e have 1.  Probe defensively and
    # degrade to 1 (single biggest tile) if the info is unavailable.
    try:
        info = pltpu.get_tpu_info()
        for attr in ("num_cores", "tensor_cores_per_chip", "num_tensorcores",
                     "cores_per_chip"):
            n = getattr(info, attr, None)
            if isinstance(n, int) and n >= 1:
                return n
    except Exception:
        pass
    try:
        if "v7" in jax.devices()[0].device_kind.lower():
            return 2
    except Exception:
        pass
    return 1


def _batch_tiling(B, num_cores=1):
    """Batch tile and grid size.  Single biggest tile up to 1024 rows
    (per-grid-step overhead ~0.35us; >=512-row tiles hit ~85% of HBM roofline).
    On dual-TensorCore chips (v7x) give the 'parallel' grid >=2 steps once the
    batch is large enough to be worth splitting."""
    if num_cores >= 2 and B >= 512:
        tb = min(1024, _round_up(pl.cdiv(B, num_cores), 16))
        return tb, pl.cdiv(B, tb)
    if B <= 1024:
        return B, 1
    tb = 1024
    return tb, pl.cdiv(B, tb)


# ------------------------------ JAX wrappers ----------------------------------

@functools.partial(jax.jit, static_argnames=("num_labels", "single_buffer_weights"))
def _all_heads_jit(hidden_states, packed, num_labels, single_buffer_weights):
    # Accepts (B, S, 768) hidden states (outputs[0]) or pre-sliced (B, 768) CLS rows.
    if hidden_states.ndim == 3:
        B, S, H = hidden_states.shape
        if hidden_states.dtype == jnp.bfloat16:
            # Free row-major view; x BlockSpec DMAs only the first 768 lanes of
            # each row == outputs[0][:, 0, :].  (Assumes default row-major layout.)
            x2d = hidden_states.reshape(B, S * H)
        else:
            # Non-bf16 input: slice the tiny CLS block and cast once so the kernel
            # DMA is always bf16 (halves the dominant input HBM traffic).
            x2d = hidden_states[:, 0, :].astype(jnp.bfloat16)
    else:
        B = hidden_states.shape[0]
        x2d = hidden_states.astype(jnp.bfloat16)

    tb, nb = _batch_tiling(B, _num_tensorcores())

    def const_spec(arr):
        # Weights/biases have a constant index_map (fetched once, VMEM-resident);
        # single-buffer them so the default double buffer isn't wasted VMEM /
        # prologue DMA issue slots.
        if single_buffer_weights:
            return pl.BlockSpec(arr.shape, lambda i: (0, 0),
                                pipeline_mode=pl.Buffered(1))
        return pl.BlockSpec(arr.shape, lambda i: (0, 0))

    w_names = ("w1c", "b1c", "w2b", "b2b", "w3b", "b3b")
    probs = pl.pallas_call(
        fused_heads_kernel,
        out_shape=jax.ShapeDtypeStruct((B, OUT_W), jnp.float32),
        grid=(nb,),
        in_specs=[pl.BlockSpec((tb, H_IN), lambda i: (i, 0))]
                 + [const_spec(packed[n]) for n in w_names],
        out_specs=pl.BlockSpec((tb, OUT_W), lambda i: (i, 0)),
        compiler_params=pltpu.CompilerParams(dimension_semantics=("parallel",)),
    )(x2d, *(packed[n] for n in w_names))

    return (probs[:, :num_labels],                  # head 1
            probs[:, LANE:LANE + N_CLS],            # heads 2 & 4 (ReLU MLP)
            probs[:, 2 * LANE:2 * LANE + N_CLS])    # head 3 (Sigmoid MLP)


_SINGLE_BUFFER_WEIGHTS = hasattr(pl, "Buffered")


def custom_model_all_heads(hidden_states, packed, num_labels=3):
    """All head outputs from ONE pallas_call (workload is dispatch-bound).

    Returns (head1_probs (B, num_labels),
             relu_mlp_probs (B, 11)   -> heads 2 and 4,
             sigmoid_mlp_probs (B, 11) -> head 3)."""
    global _SINGLE_BUFFER_WEIGHTS
    try:
        return _all_heads_jit(hidden_states, packed, num_labels=num_labels,
                              single_buffer_weights=_SINGLE_BUFFER_WEIGHTS)
    except Exception:
        if not _SINGLE_BUFFER_WEIGHTS:
            raise
        # This Pallas/Mosaic build rejected pl.Buffered(1): retry with default
        # double-buffered weight specs (purely a VMEM-footprint optimization).
        _SINGLE_BUFFER_WEIGHTS = False
        return _all_heads_jit(hidden_states, packed, num_labels=num_labels,
                              single_buffer_weights=False)


def custom_model_head(hidden_states, packed, head=2, num_labels=3):
    """Mirrors CustomTorchModel.forward for a given head (dropout = identity)."""
    h1, h_relu, h_sig = custom_model_all_heads(hidden_states, packed, num_labels)
    if head == 1:
        return h1
    if head == 3:
        return h_sig
    # Heads 2 and 4 use ReLU.
    # TODO(synk): the PyTorch module never sets self.activation for head == 4
    # (would raise AttributeError); we follow the head-2 (ReLU) path.
    return h_relu


# --------------------------- parameters & packing ------------------------------

def init_params(key, num_labels=3):
    """PyTorch-style Linear init (uniform +/- 1/sqrt(fan_in)), stored as (in, out)."""
    def linear(k, fan_in, fan_out):
        kw, kb = jax.random.split(k)
        bound = 1.0 / jnp.sqrt(float(fan_in))
        w = jax.random.uniform(kw, (fan_in, fan_out), jnp.float32, -bound, bound)
        b = jax.random.uniform(kb, (1, fan_out), jnp.float32, -bound, bound)
        return w, b

    k1, k2, k3, k4 = jax.random.split(key, 4)
    lw, lb = linear(k1, H_IN, num_labels)
    w1, b1 = linear(k2, H_IN, H1)
    w2, b2 = linear(k3, H1, H2)
    w3, b3 = linear(k4, H2, N_CLS)
    return {"lin_w": lw, "lin_b": lb, "w1": w1, "b1": b1,
            "w2": w2, "b2": b2, "w3": w3, "b3": b3}


def pack_params(params):
    """One-time packing for the fused kernel: layer-1 + head-1 weights concatenated
    along N; layers 2/3 block-diagonal over the {ReLU, Sigmoid} paths; narrow dims
    padded to the 128-lane width (zero weight pads; -inf bias pads on logits so
    softmax assigns the pads probability 0).  Weights bf16, biases f32."""
    def pad_cols(a, n, fill=0.0):
        return jnp.pad(a, ((0, 0), (0, n - a.shape[1])), constant_values=fill)

    def pad_rows(a, n):
        return jnp.pad(a, ((0, n - a.shape[0]), (0, 0)))

    def block_diag2(a):
        z = jnp.zeros_like(a)
        return jnp.concatenate(
            [jnp.concatenate([a, z], axis=1), jnp.concatenate([z, a], axis=1)], axis=0)

    w1c = jnp.concatenate(
        [params["w1"], pad_cols(params["lin_w"], LANE)], axis=1).astype(jnp.bfloat16)
    b1c = jnp.concatenate(
        [params["b1"], pad_cols(params["lin_b"], LANE, NEG_INF)], axis=1)      # (1, 384)

    w2p = pad_cols(params["w2"], LANE)                    # (256, 128), cols >= 64 zero
    b2p = pad_cols(params["b2"], LANE)                    # (1, 128)
    w2b = block_diag2(w2p).astype(jnp.bfloat16)           # (512, 256)
    b2b = jnp.concatenate([b2p, b2p], axis=1)             # (1, 256)

    w3p = pad_cols(pad_rows(params["w3"], LANE), LANE)    # (128, 128)
    b3p = pad_cols(params["b3"], LANE, NEG_INF)           # (1, 128)
    w3b = block_diag2(w3p).astype(jnp.bfloat16)           # (256, 256)
    b3b = jnp.concatenate([b3p, b3p], axis=1)             # (1, 256)

    return {"w1c": w1c, "b1c": b1c, "w2b": w2b, "b2b": b2b, "w3b": w3b, "b3b": b3b}


# ------------------------------ pure-JAX reference ------------------------------

def reference_head(hidden_states, params, head, num_labels=3):
    cls = (hidden_states[:, 0, :] if hidden_states.ndim == 3
           else hidden_states).astype(jnp.bfloat16)
    if head == 1:
        logits = jnp.dot(cls, params["lin_w"].astype(jnp.bfloat16),
                         preferred_element_type=jnp.float32) + params["lin_b"]
        return jax.nn.softmax(logits, axis=-1)
    act = jax.nn.sigmoid if head == 3 else (lambda v: jnp.maximum(v, 0.0))
    h1 = act(jnp.dot(cls, params["w1"].astype(jnp.bfloat16),
                     preferred_element_type=jnp.float32) + params["b1"])
    h2 = act(jnp.dot(h1.astype(jnp.bfloat16), params["w2"].astype(jnp.bfloat16),
                     preferred_element_type=jnp.float32) + params["b2"])
    logits = jnp.dot(h2.astype(jnp.bfloat16), params["w3"].astype(jnp.bfloat16),
                     preferred_element_type=jnp.float32) + params["b3"]
    return jax.nn.softmax(logits, axis=-1)


# ------------------------------------ main -------------------------------------

if __name__ == "__main__":
    key = jax.random.PRNGKey(0)
    k_params, k_hidden = jax.random.split(key)

    B, S = 2, 8
    num_labels = 3
    # TODO(synk): the frozen transformer base_model is external; a bf16 stand-in
    # for base_model(input_ids, attention_mask, token_type_ids)[0] is used here.
    hidden_states = jax.random.normal(k_hidden, (B, S, H_IN), jnp.bfloat16)

    params = init_params(k_params, num_labels=num_labels)
    packed = pack_params(params)

    # One fused pallas_call computes every head.
    out1, out_relu, out_sig = [
        jax.block_until_ready(o)
        for o in custom_model_all_heads(hidden_states, packed, num_labels=num_labels)
    ]
    # Per-head module semantics (heads 2 & 4 share the ReLU path).
    out2 = jax.block_until_ready(
        custom_model_head(hidden_states, packed, head=2, num_labels=num_labels))
    out4 = jax.block_until_ready(
        custom_model_head(hidden_states, packed, head=4, num_labels=num_labels))

    assert out1.shape == (B, num_labels)
    assert out_relu.shape == (B, N_CLS) and out_sig.shape == (B, N_CLS)
    assert bool(jnp.all(out2 == out_relu)) and bool(jnp.all(out4 == out_relu))

    # probabilities sum to 1 (exact-divide softmax)
    for o in (out1, out_relu, out_sig):
        assert bool(jnp.all(jnp.abs(jnp.sum(o, axis=-1) - 1.0) < 1e-5))

    # match the plain-JAX reference of the same bf16-MXU / f32-accumulate recipe
    for head, out in ((1, out1), (2, out_relu), (3, out_sig)):
        ref = reference_head(hidden_states, params, head, num_labels)
        assert bool(jnp.allclose(out, ref, atol=5e-3)), f"head {head} mismatch"

    print("KERNEL_OK")
</pallas_src>

<mosaic_0001>
module attributes {stable_mosaic.version = 11 : i64} {
  func.func @fused_heads_kernel(%arg0: i32, %arg1: memref<2x768xbf16, #tpu.memory_space<vmem>>, %arg2: memref<768x384xbf16, #tpu.memory_space<vmem>>, %arg3: memref<1x384xf32, #tpu.memory_space<vmem>>, %arg4: memref<512x256xbf16, #tpu.memory_space<vmem>>, %arg5: memref<1x256xf32, #tpu.memory_space<vmem>>, %arg6: memref<256x256xbf16, #tpu.memory_space<vmem>>, %arg7: memref<1x256xf32, #tpu.memory_space<vmem>>, %arg8: memref<2x384xf32, #tpu.memory_space<vmem>>) attributes {dimension_semantics = [#tpu.dimension_semantics<parallel>], iteration_bounds = array<i64: 1>, scalar_prefetch = 0 : i64, scratch_operands = 0 : i64, tpu.core_type = #tpu.core_type<tc>, window_params = [{transform_indices = @transform_0, window_bounds = array<i64: 2, 768>}, {pipeline_mode = #tpu.pipeline_mode<synchronous>, transform_indices = @transform_1, window_bounds = array<i64: 768, 384>}, {pipeline_mode = #tpu.pipeline_mode<synchronous>, transform_indices = @transform_2, window_bounds = array<i64: 1, 384>}, {pipeline_mode = #tpu.pipeline_mode<synchronous>, transform_indices = @transform_3, window_bounds = array<i64: 512, 256>}, {pipeline_mode = #tpu.pipeline_mode<synchronous>, transform_indices = @transform_4, window_bounds = array<i64: 1, 256>}, {pipeline_mode = #tpu.pipeline_mode<synchronous>, transform_indices = @transform_5, window_bounds = array<i64: 256, 256>}, {pipeline_mode = #tpu.pipeline_mode<synchronous>, transform_indices = @transform_6, window_bounds = array<i64: 1, 256>}, {transform_indices = @transform_7, window_bounds = array<i64: 2, 384>}]} {
    %c0 = arith.constant 0 : index
    %c0_0 = arith.constant 0 : index
    %0 = vector.load %arg1[%c0, %c0_0] : memref<2x768xbf16, #tpu.memory_space<vmem>>, vector<2x768xbf16>
    %c0_1 = arith.constant 0 : index
    %c0_2 = arith.constant 0 : index
    %1 = vector.load %arg2[%c0_1, %c0_2] : memref<768x384xbf16, #tpu.memory_space<vmem>>, vector<768x384xbf16>
    %cst = arith.constant dense<0.000000e+00> : vector<2x384xf32>
    %2 = tpu.matmul %0, %1, %cst {dimension_numbers = #tpu.dot_dimension_numbers<[1], [0], [0], [1], [0, 0, 1, 1], [], []>} : vector<2x768xbf16>, vector<768x384xbf16>, vector<2x384xf32> -> vector<2x384xf32>
    %c0_3 = arith.constant 0 : index
    %c0_4 = arith.constant 0 : index
    %3 = vector.load %arg3[%c0_3, %c0_4] : memref<1x384xf32, #tpu.memory_space<vmem>>, vector<1x384xf32>
    %4 = vector.broadcast %3 : vector<1x384xf32> to vector<2x384xf32>
    %5 = arith.addf %2, %4 : vector<2x384xf32>
    %6 = vector.extract_strided_slice %5 {offsets = [0, 0], sizes = [2, 256], strides = [1, 1]} : vector<2x384xf32> to vector<2x256xf32>
    %7 = vector.extract_strided_slice %5 {offsets = [0, 256], sizes = [2, 128], strides = [1, 1]} : vector<2x384xf32> to vector<2x128xf32>
    %cst_5 = arith.constant 0.000000e+00 : f32
    %8 = vector.broadcast %cst_5 : f32 to vector<2x256xf32>
    %9 = arith.maximumf %6, %8 : vector<2x256xf32>
    %cst_6 = arith.constant 5.000000e-01 : f32
    %10 = vector.broadcast %cst_6 : f32 to vector<2x256xf32>
    %11 = arith.mulf %10, %6 : vector<2x256xf32>
    %12 = math.tanh %11 : vector<2x256xf32>
    %cst_7 = arith.constant 1.000000e+00 : f32
    %13 = vector.broadcast %cst_7 : f32 to vector<2x256xf32>
    %14 = arith.addf %12, %13 : vector<2x256xf32>
    %cst_8 = arith.constant 5.000000e-01 : f32
    %15 = vector.broadcast %cst_8 : f32 to vector<2x256xf32>
    %16 = arith.mulf %15, %14 : vector<2x256xf32>
    %17 = tpu.concatenate %9, %16 in 1 : vector<2x256xf32>, vector<2x256xf32> -> vector<2x512xf32>
    %18 = arith.truncf %17 : vector<2x512xf32> to vector<2x512xbf16>
    %c0_9 = arith.constant 0 : index
    %c0_10 = arith.constant 0 : index
    %19 = vector.load %arg4[%c0_9, %c0_10] : memref<512x256xbf16, #tpu.memory_space<vmem>>, vector<512x256xbf16>
    %cst_11 = arith.constant dense<0.000000e+00> : vector<2x256xf32>
    %20 = tpu.matmul %18, %19, %cst_11 {dimension_numbers = #tpu.dot_dimension_numbers<[1], [0], [0], [1], [0, 0, 1, 1], [], []>} : vector<2x512xbf16>, vector<512x256xbf16>, vector<2x256xf32> -> vector<2x256xf32>
    %c0_12 = arith.constant 0 : index
    %c0_13 = arith.constant 0 : index
    %21 = vector.load %arg5[%c0_12, %c0_13] : memref<1x256xf32, #tpu.memory_space<vmem>>, vector<1x256xf32>
    %22 = vector.broadcast %21 : vector<1x256xf32> to vector<2x256xf32>
    %23 = arith.addf %20, %22 : vector<2x256xf32>
    %24 = vector.extract_strided_slice %23 {offsets = [0, 0], sizes = [2, 128], strides = [1, 1]} : vector<2x256xf32> to vector<2x128xf32>
    %cst_14 = arith.constant 0.000000e+00 : f32
    %25 = vector.broadcast %cst_14 : f32 to vector<2x128xf32>
    %26 = arith.maximumf %24, %25 : vector<2x128xf32>
    %27 = vector.extract_strided_slice %23 {offsets = [0, 128], sizes = [2, 128], strides = [1, 1]} : vector<2x256xf32> to vector<2x128xf32>
    %cst_15 = arith.constant 5.000000e-01 : f32
    %28 = vector.broadcast %cst_15 : f32 to vector<2x128xf32>
    %29 = arith.mulf %28, %27 : vector<2x128xf32>
    %30 = math.tanh %29 : vector<2x128xf32>
    %cst_16 = arith.constant 1.000000e+00 : f32
    %31 = vector.broadcast %cst_16 : f32 to vector<2x128xf32>
    %32 = arith.addf %30, %31 : vector<2x128xf32>
    %cst_17 = arith.constant 5.000000e-01 : f32
    %33 = vector.broadcast %cst_17 : f32 to vector<2x128xf32>
    %34 = arith.mulf %33, %32 : vector<2x128xf32>
    %35 = tpu.concatenate %26, %34 in 1 : vector<2x128xf32>, vector<2x128xf32> -> vector<2x256xf32>
    %36 = arith.truncf %35 : vector<2x256xf32> to vector<2x256xbf16>
    %c0_18 = arith.constant 0 : index
    %c0_19 = arith.constant 0 : index
    %37 = vector.load %arg6[%c0_18, %c0_19] : memref<256x256xbf16, #tpu.memory_space<vmem>>, vector<256x256xbf16>
    %cst_20 = arith.constant dense<0.000000e+00> : vector<2x256xf32>
    %38 = tpu.matmul %36, %37, %cst_20 {dimension_numbers = #tpu.dot_dimension_numbers<[1], [0], [0], [1], [0, 0, 1, 1], [], []>} : vector<2x256xbf16>, vector<256x256xbf16>, vector<2x256xf32> -> vector<2x256xf32>
    %c0_21 = arith.constant 0 : index
    %c0_22 = arith.constant 0 : index
    %39 = vector.load %arg7[%c0_21, %c0_22] : memref<1x256xf32, #tpu.memory_space<vmem>>, vector<1x256xf32>
    %40 = vector.broadcast %39 : vector<1x256xf32> to vector<2x256xf32>
    %41 = arith.addf %38, %40 : vector<2x256xf32>
    %cst_23 = arith.constant dense<0xFF800000> : vector<2xf32>
    %42 = vector.multi_reduction <maximumf>, %7, %cst_23 [1] : vector<2x128xf32> to vector<2xf32>
    %43 = vector.shape_cast %42 : vector<2xf32> to vector<2x1xf32>
    %44 = vector.broadcast %43 : vector<2x1xf32> to vector<2x128xf32>
    %45 = arith.subf %7, %44 : vector<2x128xf32>
    %46 = math.exp %45 : vector<2x128xf32>
    %cst_24 = arith.constant dense<0.000000e+00> : vector<2xf32>
    %47 = vector.multi_reduction <add>, %46, %cst_24 [1] : vector<2x128xf32> to vector<2xf32>
    %48 = vector.shape_cast %47 : vector<2xf32> to vector<2x1xf32>
    %49 = vector.broadcast %48 : vector<2x1xf32> to vector<2x128xf32>
    %50 = arith.divf %46, %49 : vector<2x128xf32>
    %c0_25 = arith.constant 0 : index
    %c0_26 = arith.constant 0 : index
    %51 = vector.load %arg8[%c0_25, %c0_26] : memref<2x384xf32, #tpu.memory_space<vmem>>, vector<2x128xf32>
    tpu.vector_store %arg8[%c0_25, %c0_26], %50 {strides = array<i32>} : memref<2x384xf32, #tpu.memory_space<vmem>>, vector<2x128xf32>,
    %52 = vector.extract_strided_slice %41 {offsets = [0, 0], sizes = [2, 128], strides = [1, 1]} : vector<2x256xf32> to vector<2x128xf32>
    %cst_27 = arith.constant dense<0xFF800000> : vector<2xf32>
    %53 = vector.multi_reduction <maximumf>, %52, %cst_27 [1] : vector<2x128xf32> to vector<2xf32>
    %54 = vector.shape_cast %53 : vector<2xf32> to vector<2x1xf32>
    %55 = vector.broadcast %54 : vector<2x1xf32> to vector<2x128xf32>
    %56 = arith.subf %52, %55 : vector<2x128xf32>
    %57 = math.exp %56 : vector<2x128xf32>
    %cst_28 = arith.constant dense<0.000000e+00> : vector<2xf32>
    %58 = vector.multi_reduction <add>, %57, %cst_28 [1] : vector<2x128xf32> to vector<2xf32>
    %59 = vector.shape_cast %58 : vector<2xf32> to vector<2x1xf32>
    %60 = vector.broadcast %59 : vector<2x1xf32> to vector<2x128xf32>
    %61 = arith.divf %57, %60 : vector<2x128xf32>
    %c0_29 = arith.constant 0 : index
    %c128 = arith.constant 128 : index
    %62 = vector.load %arg8[%c0_29, %c128] : memref<2x384xf32, #tpu.memory_space<vmem>>, vector<2x128xf32>
    tpu.vector_store %arg8[%c0_29, %c128], %61 {strides = array<i32>} : memref<2x384xf32, #tpu.memory_space<vmem>>, vector<2x128xf32>,
    %63 = vector.extract_strided_slice %41 {offsets = [0, 128], sizes = [2, 128], strides = [1, 1]} : vector<2x256xf32> to vector<2x128xf32>
    %cst_30 = arith.constant dense<0xFF800000> : vector<2xf32>
    %64 = vector.multi_reduction <maximumf>, %63, %cst_30 [1] : vector<2x128xf32> to vector<2xf32>
    %65 = vector.shape_cast %64 : vector<2xf32> to vector<2x1xf32>
    %66 = vector.broadcast %65 : vector<2x1xf32> to vector<2x128xf32>
    %67 = arith.subf %63, %66 : vector<2x128xf32>
    %68 = math.exp %67 : vector<2x128xf32>
    %cst_31 = arith.constant dense<0.000000e+00> : vector<2xf32>
    %69 = vector.multi_reduction <add>, %68, %cst_31 [1] : vector<2x128xf32> to vector<2xf32>
    %70 = vector.shape_cast %69 : vector<2xf32> to vector<2x1xf32>
    %71 = vector.broadcast %70 : vector<2x1xf32> to vector<2x128xf32>
    %72 = arith.divf %68, %71 : vector<2x128xf32>
    %c0_32 = arith.constant 0 : index
    %c256 = arith.constant 256 : index
    %73 = vector.load %arg8[%c0_32, %c256] : memref<2x384xf32, #tpu.memory_space<vmem>>, vector<2x128xf32>
    tpu.vector_store %arg8[%c0_32, %c256], %72 {strides = array<i32>} : memref<2x384xf32, #tpu.memory_space<vmem>>, vector<2x128xf32>,
    return
  }
  func.func @transform_0(%arg0: i32) -> (i32, i32) {
    %c0_i32 = arith.constant 0 : i32
    %c0_i32_0 = arith.constant 0 : i32
    return %arg0, %c0_i32 : i32, i32
  }
  func.func @transform_1(%arg0: i32) -> (i32, i32) {
    %c0_i32 = arith.constant 0 : i32
    %c0_i32_0 = arith.constant 0 : i32
    %c0_i32_1 = arith.constant 0 : i32
    return %c0_i32, %c0_i32_0 : i32, i32
  }
  func.func @transform_2(%arg0: i32) -> (i32, i32) {
    %c0_i32 = arith.constant 0 : i32
    %c0_i32_0 = arith.constant 0 : i32
    %c0_i32_1 = arith.constant 0 : i32
    return %c0_i32, %c0_i32_0 : i32, i32
  }
  func.func @transform_3(%arg0: i32) -> (i32, i32) {
    %c0_i32 = arith.constant 0 : i32
    %c0_i32_0 = arith.constant 0 : i32
    %c0_i32_1 = arith.constant 0 : i32
    return %c0_i32, %c0_i32_0 : i32, i32
  }
  func.func @transform_4(%arg0: i32) -> (i32, i32) {
    %c0_i32 = arith.constant 0 : i32
    %c0_i32_0 = arith.constant 0 : i32
    %c0_i32_1 = arith.constant 0 : i32
    return %c0_i32, %c0_i32_0 : i32, i32
  }
  func.func @transform_5(%arg0: i32) -> (i32, i32) {
    %c0_i32 = arith.constant 0 : i32
    %c0_i32_0 = arith.constant 0 : i32
    %c0_i32_1 = arith.constant 0 : i32
    return %c0_i32, %c0_i32_0 : i32, i32
  }
  func.func @transform_6(%arg0: i32) -> (i32, i32) {
    %c0_i32 = arith.constant 0 : i32
    %c0_i32_0 = arith.constant 0 : i32
    %c0_i32_1 = arith.constant 0 : i32
    return %c0_i32, %c0_i32_0 : i32, i32
  }
  func.func @transform_7(%arg0: i32) -> (i32, i32) {
    %c0_i32 = arith.constant 0 : i32
    %c0_i32_0 = arith.constant 0 : i32
    return %arg0, %c0_i32 : i32, i32
  }
}

module attributes {stable_mosaic.version = 11 : i64} {
  func.func @fused_heads_kernel(%arg0: i32, %arg1: memref<2x768xbf16, #tpu.memory_space<vmem>>, %arg2: memref<768x384xbf16, #tpu.memory_space<vmem>>, %arg3: memref<1x384xf32, #tpu.memory_space<vmem>>, %arg4: memref<512x256xbf16, #tpu.memory_space<vmem>>, %arg5: memref<1x256xf32, #tpu.memory_space<vmem>>, %arg6: memref<256x256xbf16, #tpu.memory_space<vmem>>, %arg7: memref<1x256xf32, #tpu.memory_space<vmem>>, %arg8: memref<2x384xf32, #tpu.memory_space<vmem>>) attributes {dimension_semantics = [#tpu.dimension_semantics<parallel>], iteration_bounds = array<i64: 1>, scalar_prefetch = 0 : i64, scratch_operands = 0 : i64, tpu.core_type = #tpu.core_type<tc>, window_params = [{transform_indices = @transform_0, window_bounds = array<i64: 2, 768>}, {pipeline_mode = #tpu.pipeline_mode<synchronous>, transform_indices = @transform_1, window_bounds = array<i64: 768, 384>}, {pipeline_mode = #tpu.pipeline_mode<synchronous>, transform_indices = @transform_2, window_bounds = array<i64: 1, 384>}, {pipeline_mode = #tpu.pipeline_mode<synchronous>, transform_indices = @transform_3, window_bounds = array<i64: 512, 256>}, {pipeline_mode = #tpu.pipeline_mode<synchronous>, transform_indices = @transform_4, window_bounds = array<i64: 1, 256>}, {pipeline_mode = #tpu.pipeline_mode<synchronous>, transform_indices = @transform_5, window_bounds = array<i64: 256, 256>}, {pipeline_mode = #tpu.pipeline_mode<synchronous>, transform_indices = @transform_6, window_bounds = array<i64: 1, 256>}, {transform_indices = @transform_7, window_bounds = array<i64: 2, 384>}]} {
    %c0 = arith.constant 0 : index
    %c0_0 = arith.constant 0 : index
    %0 = vector.load %arg1[%c0, %c0_0] : memref<2x768xbf16, #tpu.memory_space<vmem>>, vector<2x768xbf16>
    %c0_1 = arith.constant 0 : index
    %c0_2 = arith.constant 0 : index
    %1 = vector.load %arg2[%c0_1, %c0_2] : memref<768x384xbf16, #tpu.memory_space<vmem>>, vector<768x384xbf16>
    %cst = arith.constant dense<0.000000e+00> : vector<2x384xf32>
    %2 = tpu.matmul %0, %1, %cst {dimension_numbers = #tpu.dot_dimension_numbers<[1], [0], [0], [1], [0, 0, 1, 1], [], []>} : vector<2x768xbf16>, vector<768x384xbf16>, vector<2x384xf32> -> vector<2x384xf32>
    %c0_3 = arith.constant 0 : index
    %c0_4 = arith.constant 0 : index
    %3 = vector.load %arg3[%c0_3, %c0_4] : memref<1x384xf32, #tpu.memory_space<vmem>>, vector<1x384xf32>
    %4 = vector.broadcast %3 : vector<1x384xf32> to vector<2x384xf32>
    %5 = arith.addf %2, %4 : vector<2x384xf32>
    %6 = vector.extract_strided_slice %5 {offsets = [0, 0], sizes = [2, 256], strides = [1, 1]} : vector<2x384xf32> to vector<2x256xf32>
    %7 = vector.extract_strided_slice %5 {offsets = [0, 256], sizes = [2, 128], strides = [1, 1]} : vector<2x384xf32> to vector<2x128xf32>
    %cst_5 = arith.constant 0.000000e+00 : f32
    %8 = vector.broadcast %cst_5 : f32 to vector<2x256xf32>
    %9 = arith.maximumf %6, %8 : vector<2x256xf32>
    %cst_6 = arith.constant 5.000000e-01 : f32
    %10 = vector.broadcast %cst_6 : f32 to vector<2x256xf32>
    %11 = arith.mulf %10, %6 : vector<2x256xf32>
    %12 = math.tanh %11 : vector<2x256xf32>
    %cst_7 = arith.constant 1.000000e+00 : f32
    %13 = vector.broadcast %cst_7 : f32 to vector<2x256xf32>
    %14 = arith.addf %12, %13 : vector<2x256xf32>
    %cst_8 = arith.constant 5.000000e-01 : f32
    %15 = vector.broadcast %cst_8 : f32 to vector<2x256xf32>
    %16 = arith.mulf %15, %14 : vector<2x256xf32>
    %17 = tpu.concatenate %9, %16 in 1 : vector<2x256xf32>, vector<2x256xf32> -> vector<2x512xf32>
    %18 = arith.truncf %17 : vector<2x512xf32> to vector<2x512xbf16>
    %c0_9 = arith.constant 0 : index
    %c0_10 = arith.constant 0 : index
    %19 = vector.load %arg4[%c0_9, %c0_10] : memref<512x256xbf16, #tpu.memory_space<vmem>>, vector<512x256xbf16>
    %cst_11 = arith.constant dense<0.000000e+00> : vector<2x256xf32>
    %20 = tpu.matmul %18, %19, %cst_11 {dimension_numbers = #tpu.dot_dimension_numbers<[1], [0], [0], [1], [0, 0, 1, 1], [], []>} : vector<2x512xbf16>, vector<512x256xbf16>, vector<2x256xf32> -> vector<2x256xf32>
    %c0_12 = arith.constant 0 : index
    %c0_13 = arith.constant 0 : index
    %21 = vector.load %arg5[%c0_12, %c0_13] : memref<1x256xf32, #tpu.memory_space<vmem>>, vector<1x256xf32>
    %22 = vector.broadcast %21 : vector<1x256xf32> to vector<2x256xf32>
    %23 = arith.addf %20, %22 : vector<2x256xf32>
    %24 = vector.extract_strided_slice %23 {offsets = [0, 0], sizes = [2, 128], strides = [1, 1]} : vector<2x256xf32> to vector<2x128xf32>
    %cst_14 = arith.constant 0.000000e+00 : f32
    %25 = vector.broadcast %cst_14 : f32 to vector<2x128xf32>
    %26 = arith.maximumf %24, %25 : vector<2x128xf32>
    %27 = vector.extract_strided_slice %23 {offsets = [0, 128], sizes = [2, 128], strides = [1, 1]} : vector<2x256xf32> to vector<2x128xf32>
    %cst_15 = arith.constant 5.000000e-01 : f32
    %28 = vector.broadcast %cst_15 : f32 to vector<2x128xf32>
    %29 = arith.mulf %28, %27 : vector<2x128xf32>
    %30 = math.tanh %29 : vector<2x128xf32>
    %cst_16 = arith.constant 1.000000e+00 : f32
    %31 = vector.broadcast %cst_16 : f32 to vector<2x128xf32>
    %32 = arith.addf %30, %31 : vector<2x128xf32>
    %cst_17 = arith.constant 5.000000e-01 : f32
    %33 = vector.broadcast %cst_17 : f32 to vector<2x128xf32>
    %34 = arith.mulf %33, %32 : vector<2x128xf32>
    %35 = tpu.concatenate %26, %34 in 1 : vector<2x128xf32>, vector<2x128xf32> -> vector<2x256xf32>
    %36 = arith.truncf %35 : vector<2x256xf32> to vector<2x256xbf16>
    %c0_18 = arith.constant 0 : index
    %c0_19 = arith.constant 0 : index
    %37 = vector.load %arg6[%c0_18, %c0_19] : memref<256x256xbf16, #tpu.memory_space<vmem>>, vector<256x256xbf16>
    %cst_20 = arith.constant dense<0.000000e+00> : vector<2x256xf32>
    %38 = tpu.matmul %36, %37, %cst_20 {dimension_numbers = #tpu.dot_dimension_numbers<[1], [0], [0], [1], [0, 0, 1, 1], [], []>} : vector<2x256xbf16>, vector<256x256xbf16>, vector<2x256xf32> -> vector<2x256xf32>
    %c0_21 = arith.constant 0 : index
    %c0_22 = arith.constant 0 : index
    %39 = vector.load %arg7[%c0_21, %c0_22] : memref<1x256xf32, #tpu.memory_space<vmem>>, vector<1x256xf32>
    %40 = vector.broadcast %39 : vector<1x256xf32> to vector<2x256xf32>
    %41 = arith.addf %38, %40 : vector<2x256xf32>
    %cst_23 = arith.constant dense<0xFF800000> : vector<2xf32>
    %42 = vector.multi_reduction <maximumf>, %7, %cst_23 [1] : vector<2x128xf32> to vector<2xf32>
    %43 = vector.shape_cast %42 : vector<2xf32> to vector<2x1xf32>
    %44 = vector.broadcast %43 : vector<2x1xf32> to vector<2x128xf32>
    %45 = arith.subf %7, %44 : vector<2x128xf32>
    %46 = math.exp %45 : vector<2x128xf32>
    %cst_24 = arith.constant dense<0.000000e+00> : vector<2xf32>
    %47 = vector.multi_reduction <add>, %46, %cst_24 [1] : vector<2x128xf32> to vector<2xf32>
    %48 = vector.shape_cast %47 : vector<2xf32> to vector<2x1xf32>
    %49 = vector.broadcast %48 : vector<2x1xf32> to vector<2x128xf32>
    %50 = arith.divf %46, %49 : vector<2x128xf32>
    %c0_25 = arith.constant 0 : index
    %c0_26 = arith.constant 0 : index
    %51 = vector.load %arg8[%c0_25, %c0_26] : memref<2x384xf32, #tpu.memory_space<vmem>>, vector<2x128xf32>
    tpu.vector_store %arg8[%c0_25, %c0_26], %50 {strides = array<i32>} : memref<2x384xf32, #tpu.memory_space<vmem>>, vector<2x128xf32>,
    %52 = vector.extract_strided_slice %41 {offsets = [0, 0], sizes = [2, 128], strides = [1, 1]} : vector<2x256xf32> to vector<2x128xf32>
    %cst_27 = arith.constant dense<0xFF800000> : vector<2xf32>
    %53 = vector.multi_reduction <maximumf>, %52, %cst_27 [1] : vector<2x128xf32> to vector<2xf32>
    %54 = vector.shape_cast %53 : vector<2xf32> to vector<2x1xf32>
    %55 = vector.broadcast %54 : vector<2x1xf32> to vector<2x128xf32>
    %56 = arith.subf %52, %55 : vector<2x128xf32>
    %57 = math.exp %56 : vector<2x128xf32>
    %cst_28 = arith.constant dense<0.000000e+00> : vector<2xf32>
    %58 = vector.multi_reduction <add>, %57, %cst_28 [1] : vector<2x128xf32> to vector<2xf32>
    %59 = vector.shape_cast %58 : vector<2xf32> to vector<2x1xf32>
    %60 = vector.broadcast %59 : vector<2x1xf32> to vector<2x128xf32>
    %61 = arith.divf %57, %60 : vector<2x128xf32>
    %c0_29 = arith.constant 0 : index
    %c128 = arith.constant 128 : index
    %62 = vector.load %arg8[%c0_29, %c128] : memref<2x384xf32, #tpu.memory_space<vmem>>, vector<2x128xf32>
    tpu.vector_store %arg8[%c0_29, %c128], %61 {strides = array<i32>} : memref<2x384xf32, #tpu.memory_space<vmem>>, vector<2x128xf32>,
    %63 = vector.extract_strided_slice %41 {offsets = [0, 128], sizes = [2, 128], strides = [1, 1]} : vector<2x256xf32> to vector<2x128xf32>
    %cst_30 = arith.constant dense<0xFF800000> : vector<2xf32>
    %64 = vector.multi_reduction <maximumf>, %63, %cst_30 [1] : vector<2x128xf32> to vector<2xf32>
    %65 = vector.shape_cast %64 : vector<2xf32> to vector<2x1xf32>
    %66 = vector.broadcast %65 : vector<2x1xf32> to vector<2x128xf32>
    %67 = arith.subf %63, %66 : vector<2x128xf32>
    %68 = math.exp %67 : vector<2x128xf32>
    %cst_31 = arith.constant dense<0.000000e+00> : vector<2xf32>
    %69 = vector.multi_reduction <add>, %68, %cst_31 [1] : vector<2x128xf32> to vector<2xf32>
    %70 = vector.shape_cast %69 : vector<2xf32> to vector<2x1xf32>
    %71 = vector.broadcast %70 : vector<2x1xf32> to vector<2x128xf32>
    %72 = arith.divf %68, %71 : vector<2x128xf32>
    %c0_32 = arith.constant 0 : index
    %c256 = arith.constant 256 : index
    %73 = vector.load %arg8[%c0_32, %c256] : memref<2x384xf32, #tpu.memory_space<vmem>>, vector<2x128xf32>
    tpu.vector_store %arg8[%c0_32, %c256], %72 {strides = array<i32>} : memref<2x384xf32, #tpu.memory_space<vmem>>, vector<2x128xf32>,
    return
  }
  func.func @transform_0(%arg0: i32) -> (i32, i32) {
    %c0_i32 = arith.constant 0 : i32
    %c0_i32_0 = arith.constant 0 : i32
    return %arg0, %c0_i32 : i32, i32
  }
  func.func @transform_1(%arg0: i32) -> (i32, i32) {
    %c0_i32 = arith.constant 0 : i32
    %c0_i32_0 = arith.constant 0 : i32
    %c0_i32_1 = arith.constant 0 : i32
    return %c0_i32, %c0_i32_0 : i32, i32
  }
  func.func @transform_2(%arg0: i32) -> (i32, i32) {
    %c0_i32 = arith.constant 0 : i32
    %c0_i32_0 = arith.constant 0 : i32
    %c0_i32_1 = arith.constant 0 : i32
    return %c0_i32, %c0_i32_0 : i32, i32
  }
  func.func @transform_3(%arg0: i32) -> (i32, i32) {
    %c0_i32 = arith.constant 0 : i32
    %c0_i32_0 = arith.constant 0 : i32
    %c0_i32_1 = arith.constant 0 : i32
    return %c0_i32, %c0_i32_0 : i32, i32
  }
  func.func @transform_4(%arg0: i32) -> (i32, i32) {
    %c0_i32 = arith.constant 0 : i32
    %c0_i32_0 = arith.constant 0 : i32
    %c0_i32_1 = arith.constant 0 : i32
    return %c0_i32, %c0_i32_0 : i32, i32
  }
  func.func @transform_5(%arg0: i32) -> (i32, i32) {
    %c0_i32 = arith.constant 0 : i32
    %c0_i32_0 = arith.constant 0 : i32
    %c0_i32_1 = arith.constant 0 : i32
    return %c0_i32, %c0_i32_0 : i32, i32
  }
  func.func @transform_6(%arg0: i32) -> (i32, i32) {
    %c0_i32 = arith.constant 0 : i32
    %c0_i32_0 = arith.constant 0 : i32
    %c0_i32_1 = arith.constant 0 : i32
    return %c0_i32, %c0_i32_0 : i32, i32
  }
  func.func @transform_7(%arg0: i32) -> (i32, i32) {
    %c0_i32 = arith.constant 0 : i32
    %c0_i32_0 = arith.constant 0 : i32
    return %arg0, %c0_i32 : i32, i32
  }
}

</mosaic_0001>

<llo_original>
// kernel: _all_heads_jit.1
$region0: #{_all_heads_jit.1}
  #allocation0 [shape = 'u32[]', space=smem, size = 0x4, offset = 0x4, fixed_abs, tag = 'smem constant byte address 0x4 - core index']
  #allocation1 [shape = 'u32[144,128]{1,0:T(1,128)}', space=vmem, size = 0x12000, scoped, tag = 'internal scratch']
  %s0 = inlined_call_operand.vmem [shape: bf16[2,6144], index: 0, kind: input, shape index: {}]
  %s1 = inlined_call_operand.hbm [shape: bf16[768,384], index: 1, kind: input, shape index: {}]
  %s2 = inlined_call_operand.vmem [shape: f32[1,384], index: 2, kind: input, shape index: {}]
  %s3 = inlined_call_operand.hbm [shape: bf16[512,256], index: 3, kind: input, shape index: {}]
  %s4 = inlined_call_operand.vmem [shape: f32[1,256], index: 4, kind: input, shape index: {}]
  %s5 = inlined_call_operand.hbm [shape: bf16[256,256], index: 5, kind: input, shape index: {}]
  %s6 = inlined_call_operand.vmem [shape: f32[1,256], index: 6, kind: input, shape index: {}]
  %s7 = inlined_call_operand.vmem [shape: f32[2,384], index: 7, kind: output, shape index: {}]
  %s8 = sld [smem:[#allocation0]]
  $region50: #{_all_heads_jit.1} parent=0
    _
  %s10 = ssub.s32 1, %s8
  %s11 = scalar_select 0, %s10, %s8
  $region1: #{_all_heads_jit.1} parent=0
    #allocation2 [shape = 'u8[589824]{0}', space=vmem, size = 0x90000, scoped, tag = 'input window, operand 1, single buffered']
    #allocation3 [shape = 's32[1]{0}', space=sflag, size = 0x4, scoped, tag = 'scoped memory for _all_heads_jit.1']
    #allocation4 [shape = 'u8[262144]{0}', space=vmem, size = 0x40000, scoped, tag = 'input window, operand 3, single buffered']
    #allocation5 [shape = 's32[1]{0}', space=sflag, size = 0x4, scoped, tag = 'scoped memory for _all_heads_jit.1']
    #allocation6 [shape = 'u8[131072]{0}', space=vmem, size = 0x20000, scoped, tag = 'input window, operand 5, single buffered']
    %12 = vsyncpa [#allocation3], 0
    %13 = vsyncpa [#allocation5], 0
    // Predicated region
    $region2: #{_all_heads_jit.1} parent=1 // pred_check
      _
    $region3: #{_all_heads_jit.1} parent=1 // pred_check_branch
      %15 = sbr.rel (0) target = $region5
    $region4: #{_all_heads_jit.1} parent=1 // pred_region
      _
    $region5: #{_all_heads_jit.1} parent=1 // pred_fallthru
      _
    // Predicated region
    $region6: #{_all_heads_jit.1} parent=1 // pred_check
      _
    $region7: #{_all_heads_jit.1} parent=1 // pred_check_branch
      %17 = sbr.rel (0) target = $region9
    $region8: #{_all_heads_jit.1} parent=1 // pred_region
      %s19 = ssub.s32 18432, 18432
      %20 = vsyncadd [#allocation3], %s19
      %s21 = sshll.u32 [#allocation2], 4
      %s22 = int_to_ptr.vmem [resolvable:$true] %s21
      %27 = dma.hbm_to_vmem [thread:$0]  %s1, 18432, %s22, [#allocation3], 192, 192, 12
    $region9: #{_all_heads_jit.1} parent=1 // pred_fallthru
      _
    // Predicated region
    $region10: #{_all_heads_jit.1} parent=1 // pred_check
      _
    $region11: #{_all_heads_jit.1} parent=1 // pred_check_branch
      %29 = sbr.rel (0) target = $region13
    $region12: #{_all_heads_jit.1} parent=1 // pred_region
      _
    $region13: #{_all_heads_jit.1} parent=1 // pred_fallthru
      _
    // Predicated region
    $region14: #{_all_heads_jit.1} parent=1 // pred_check
      _
    $region15: #{_all_heads_jit.1} parent=1 // pred_check_branch
      %31 = sbr.rel (0) target = $region17
    $region16: #{_all_heads_jit.1} parent=1 // pred_region
      %s33 = ssub.s32 8192, 8192
      %34 = vsyncadd [#allocation5], %s33
      %s35 = sshll.u32 [#allocation4], 4
      %s36 = int_to_ptr.vmem [resolvable:$true] %s35
      %41 = dma.hbm_to_vmem [thread:$0]  %s3, 8192, %s36, [#allocation5], 128, 128, 8
    $region17: #{_all_heads_jit.1} parent=1 // pred_fallthru
      _
    // Predicated region
    $region18: #{_all_heads_jit.1} parent=1 // pred_check
      _
    $region19: #{_all_heads_jit.1} parent=1 // pred_check_branch
      %43 = sbr.rel (0) target = $region21
    $region20: #{_all_heads_jit.1} parent=1 // pred_region
      _
    $region21: #{_all_heads_jit.1} parent=1 // pred_fallthru
      _
    // Predicated region
    $region22: #{_all_heads_jit.1} parent=1 // pred_check
      _
    $region23: #{_all_heads_jit.1} parent=1 // pred_check_branch
      %45 = sbr.rel (0) target = $region25
    $region24: #{_all_heads_jit.1} parent=1 // pred_region
      %s47 = ssub.s32 4096, 4096
      %48 = vsyncadd [#allocation5], %s47
      %s49 = sshll.u32 [#allocation6], 4
      %s50 = int_to_ptr.vmem [resolvable:$true] %s49
      %55 = dma.hbm_to_vmem [thread:$0]  %s5, 4096, %s50, [#allocation5], 128, 128, 8
    $region25: #{_all_heads_jit.1} parent=1 // pred_fallthru
      _
    // Predicated region
    $region26: #{_all_heads_jit.1} parent=1 // pred_check
      _
    $region27: #{_all_heads_jit.1} parent=1 // pred_check_branch
      %57 = sbr.rel (0) target = $region29
    $region28: #{_all_heads_jit.1} parent=1 // pred_region
      _
    $region29: #{_all_heads_jit.1} parent=1 // pred_fallthru
      _
    // Predicated region
    $region30: #{_all_heads_jit.1} parent=1 // pred_check
      _
    $region31: #{_all_heads_jit.1} parent=1 // pred_check_branch
      %59 = sbr.rel (0) target = $region33
    $region32: #{_all_heads_jit.1} parent=1 // pred_region
      %60 = dma.done [#allocation3], 18432
    $region33: #{_all_heads_jit.1} parent=1 // pred_fallthru
      _
    // Predicated region
    $region34: #{_all_heads_jit.1} parent=1 // pred_check
      _
    $region35: #{_all_heads_jit.1} parent=1 // pred_check_branch
      %62 = sbr.rel (0) target = $region37
    $region36: #{_all_heads_jit.1} parent=1 // pred_region
      %63 = dma.done [#allocation5], 8192
    $region37: #{_all_heads_jit.1} parent=1 // pred_fallthru
      _
    // Predicated region
    $region38: #{_all_heads_jit.1} parent=1 // pred_check
      _
    $region39: #{_all_heads_jit.1} parent=1 // pred_check_branch
      %65 = sbr.rel (0) target = $region41
    $region40: #{_all_heads_jit.1} parent=1 // pred_region
      %66 = dma.done [#allocation5], 4096
    $region41: #{_all_heads_jit.1} parent=1 // pred_fallthru
      _
    %v68 = vld [vmem:[%s0] sm:$0x3f]
    %v69 = vld [vmem:[#allocation2] sm:$0xff]
    %v70 = vld [vmem:[#allocation2 + $0x8] sm:$0xf]
    %v71 = vld [vmem:[#allocation2 + $0xc] sm:$0xff]
    %v72 = vld [vmem:[#allocation2 + $0x14] sm:$0xf]
    %v73 = vld [vmem:[#allocation2 + $0x18] sm:$0xff]
    %v74 = vld [vmem:[#allocation2 + $0x20] sm:$0xf]
    %v75 = vld [vmem:[#allocation2 + $0x24] sm:$0xff]
    %v76 = vld [vmem:[#allocation2 + $0x2c] sm:$0xf]
    %v77 = vld [vmem:[#allocation2 + $0x30] sm:$0xff]
    %v78 = vld [vmem:[#allocation2 + $0x38] sm:$0xf]
    %v79 = vld [vmem:[#allocation2 + $0x3c] sm:$0xff]
    %v80 = vld [vmem:[#allocation2 + $0x44] sm:$0xf]
    %v81 = vld [vmem:[#allocation2 + $0x48] sm:$0xff]
    %v82 = vld [vmem:[#allocation2 + $0x50] sm:$0xf]
    %v83 = vld [vmem:[#allocation2 + $0x54] sm:$0xff]
    %v84 = vld [vmem:[#allocation2 + $0x5c] sm:$0xf]
    %v85 = vld [vmem:[#allocation2 + $0x60] sm:$0xff]
    %v86 = vld [vmem:[#allocation2 + $0x68] sm:$0xf]
    %v87 = vld [vmem:[#allocation2 + $0x6c] sm:$0xff]
    %v88 = vld [vmem:[#allocation2 + $0x74] sm:$0xf]
    %v89 = vld [vmem:[#allocation2 + $0x78] sm:$0xff]
    %v90 = vld [vmem:[#allocation2 + $0x80] sm:$0xf]
    %v91 = vld [vmem:[#allocation2 + $0x84] sm:$0xff]
    %v92 = vld [vmem:[#allocation2 + $0x8c] sm:$0xf]
    %v93 = vld [vmem:[#allocation2 + $0x90] sm:$0xff]
    %v94 = vld [vmem:[#allocation2 + $0x98] sm:$0xf]
    %v95 = vld [vmem:[#allocation2 + $0x9c] sm:$0xff]
    %v96 = vld [vmem:[#allocation2 + $0xa4] sm:$0xf]
    %v97 = vld [vmem:[#allocation2 + $0xa8] sm:$0xff]
    %v98 = vld [vmem:[#allocation2 + $0xb0] sm:$0xf]
    %v99 = vld [vmem:[#allocation2 + $0xb4] sm:$0xff]
    %v100 = vld [vmem:[#allocation2 + $0xbc] sm:$0xf]
    %v101 = vld [vmem:[#allocation2 + $0xc0] sm:$0xff]
    %v102 = vld [vmem:[#allocation2 + $0xc8] sm:$0xf]
    %v103 = vld [vmem:[#allocation2 + $0xcc] sm:$0xff]
    %v104 = vld [vmem:[#allocation2 + $0xd4] sm:$0xf]
    %v105 = vld [vmem:[#allocation2 + $0xd8] sm:$0xff]
    %v106 = vld [vmem:[#allocation2 + $0xe0] sm:$0xf]
    %v107 = vld [vmem:[#allocation2 + $0xe4] sm:$0xff]
    %v108 = vld [vmem:[#allocation2 + $0xec] sm:$0xf]
    %v109 = vld [vmem:[#allocation2 + $0xf0] sm:$0xff]
    %v110 = vld [vmem:[#allocation2 + $0xf8] sm:$0xf]
    %v111 = vld [vmem:[#allocation2 + $0xfc] sm:$0xff]
    %v112 = vld [vmem:[#allocation2 + $0x104] sm:$0xf]
    %v113 = vld [vmem:[#allocation2 + $0x108] sm:$0xff]
    %v114 = vld [vmem:[#allocation2 + $0x110] sm:$0xf]
    %v115 = vld [vmem:[#allocation2 + $0x114] sm:$0xff]
    %v116 = vld [vmem:[#allocation2 + $0x11c] sm:$0xf]
    %v117 = vld [vmem:[#allocation2 + $0x120] sm:$0xff]
    %v118 = vld [vmem:[#allocation2 + $0x128] sm:$0xf]
    %v119 = vld [vmem:[#allocation2 + $0x12c] sm:$0xff]
    %v120 = vld [vmem:[#allocation2 + $0x134] sm:$0xf]
    %v121 = vld [vmem:[#allocation2 + $0x138] sm:$0xff]
    %v122 = vld [vmem:[#allocation2 + $0x140] sm:$0xf]
    %v123 = vld [vmem:[#allocation2 + $0x144] sm:$0xff]
    %v124 = vld [vmem:[#allocation2 + $0x14c] sm:$0xf]
    %v125 = vld [vmem:[#allocation2 + $0x150] sm:$0xff]
    %v126 = vld [vmem:[#allocation2 + $0x158] sm:$0xf]
    %v127 = vld [vmem:[#allocation2 + $0x15c] sm:$0xff]
    %v128 = vld [vmem:[#allocation2 + $0x164] sm:$0xf]
    %v129 = vld [vmem:[#allocation2 + $0x168] sm:$0xff]
    %v130 = vld [vmem:[#allocation2 + $0x170] sm:$0xf]
    %v131 = vld [vmem:[#allocation2 + $0x174] sm:$0xff]
    %v132 = vld [vmem:[#allocation2 + $0x17c] sm:$0xf]
    %v133 = vld [vmem:[#allocation2 + $0x180] sm:$0xff]
    %v134 = vld [vmem:[#allocation2 + $0x188] sm:$0xf]
    %v135 = vld [vmem:[#allocation2 + $0x18c] sm:$0xff]
    %v136 = vld [vmem:[#allocation2 + $0x194] sm:$0xf]
    %v137 = vld [vmem:[#allocation2 + $0x198] sm:$0xff]
    %v138 = vld [vmem:[#allocation2 + $0x1a0] sm:$0xf]
    %v139 = vld [vmem:[#allocation2 + $0x1a4] sm:$0xff]
    %v140 = vld [vmem:[#allocation2 + $0x1ac] sm:$0xf]
    %v141 = vld [vmem:[#allocation2 + $0x1b0] sm:$0xff]
    %v142 = vld [vmem:[#allocation2 + $0x1b8] sm:$0xf]
    %v143 = vld [vmem:[#allocation2 + $0x1bc] sm:$0xff]
    %v144 = vld [vmem:[#allocation2 + $0x1c4] sm:$0xf]
    %v145 = vld [vmem:[#allocation2 + $0x1c8] sm:$0xff]
    %v146 = vld [vmem:[#allocation2 + $0x1d0] sm:$0xf]
    %v147 = vld [vmem:[#allocation2 + $0x1d4] sm:$0xff]
    %v148 = vld [vmem:[#allocation2 + $0x1dc] sm:$0xf]
    %v149 = vld [vmem:[#allocation2 + $0x1e0] sm:$0xff]
    %v150 = vld [vmem:[#allocation2 + $0x1e8] sm:$0xf]
    %v151 = vld [vmem:[#allocation2 + $0x1ec] sm:$0xff]
    %v152 = vld [vmem:[#allocation2 + $0x1f4] sm:$0xf]
    %v153 = vld [vmem:[#allocation2 + $0x1f8] sm:$0xff]
    %v154 = vld [vmem:[#allocation2 + $0x200] sm:$0xf]
    %v155 = vld [vmem:[#allocation2 + $0x204] sm:$0xff]
    %v156 = vld [vmem:[#allocation2 + $0x20c] sm:$0xf]
    %v157 = vld [vmem:[#allocation2 + $0x210] sm:$0xff]
    %v158 = vld [vmem:[#allocation2 + $0x218] sm:$0xf]
    %v159 = vld [vmem:[#allocation2 + $0x21c] sm:$0xff]
    %v160 = vld [vmem:[#allocation2 + $0x224] sm:$0xf]
    %v161 = vld [vmem:[#allocation2 + $0x228] sm:$0xff]
    %v162 = vld [vmem:[#allocation2 + $0x230] sm:$0xf]
    %v163 = vld [vmem:[#allocation2 + $0x234] sm:$0xff]
    %v164 = vld [vmem:[#allocation2 + $0x23c] sm:$0xf]
    %v165 = vld [vmem:[#allocation2 + $0x240] sm:$0xff]
    %v166 = vld [vmem:[#allocation2 + $0x248] sm:$0xf]
    %v167 = vld [vmem:[#allocation2 + $0x24c] sm:$0xff]
    %v168 = vld [vmem:[#allocation2 + $0x254] sm:$0xf]
    %v169 = vld [vmem:[#allocation2 + $0x258] sm:$0xff]
    %v170 = vld [vmem:[#allocation2 + $0x260] sm:$0xf]
    %v171 = vld [vmem:[#allocation2 + $0x264] sm:$0xff]
    %v172 = vld [vmem:[#allocation2 + $0x26c] sm:$0xf]
    %v173 = vld [vmem:[#allocation2 + $0x270] sm:$0xff]
    %v174 = vld [vmem:[#allocation2 + $0x278] sm:$0xf]
    %v175 = vld [vmem:[#allocation2 + $0x27c] sm:$0xff]
    %v176 = vld [vmem:[#allocation2 + $0x284] sm:$0xf]
    %v177 = vld [vmem:[#allocation2 + $0x288] sm:$0xff]
    %v178 = vld [vmem:[#allocation2 + $0x290] sm:$0xf]
    %v179 = vld [vmem:[#allocation2 + $0x294] sm:$0xff]
    %v180 = vld [vmem:[#allocation2 + $0x29c] sm:$0xf]
    %v181 = vld [vmem:[#allocation2 + $0x2a0] sm:$0xff]
    %v182 = vld [vmem:[#allocation2 + $0x2a8] sm:$0xf]
    %v183 = vld [vmem:[#allocation2 + $0x2ac] sm:$0xff]
    %v184 = vld [vmem:[#allocation2 + $0x2b4] sm:$0xf]
    %v185 = vld [vmem:[#allocation2 + $0x2b8] sm:$0xff]
    %v186 = vld [vmem:[#allocation2 + $0x2c0] sm:$0xf]
    %v187 = vld [vmem:[#allocation2 + $0x2c4] sm:$0xff]
    %v188 = vld [vmem:[#allocation2 + $0x2cc] sm:$0xf]
    %v189 = vld [vmem:[#allocation2 + $0x2d0] sm:$0xff]
    %v190 = vld [vmem:[#allocation2 + $0x2d8] sm:$0xf]
    %v191 = vld [vmem:[#allocation2 + $0x2dc] sm:$0xff]
    %v192 = vld [vmem:[#allocation2 + $0x2e4] sm:$0xf]
    %v193 = vld [vmem:[#allocation2 + $0x2e8] sm:$0xff]
    %v194 = vld [vmem:[#allocation2 + $0x2f0] sm:$0xf]
    %v195 = vld [vmem:[#allocation2 + $0x2f4] sm:$0xff]
    %v196 = vld [vmem:[#allocation2 + $0x2fc] sm:$0xf]
    %v197 = vld [vmem:[#allocation2 + $0x300] sm:$0xff]
    %v198 = vld [vmem:[#allocation2 + $0x308] sm:$0xf]
    %v199 = vld [vmem:[#allocation2 + $0x30c] sm:$0xff]
    %v200 = vld [vmem:[#allocation2 + $0x314] sm:$0xf]
    %v201 = vld [vmem:[#allocation2 + $0x318] sm:$0xff]
    %v202 = vld [vmem:[#allocation2 + $0x320] sm:$0xf]
    %v203 = vld [vmem:[#allocation2 + $0x324] sm:$0xff]
    %v204 = vld [vmem:[#allocation2 + $0x32c] sm:$0xf]
    %v205 = vld [vmem:[#allocation2 + $0x330] sm:$0xff]
    %v206 = vld [vmem:[#allocation2 + $0x338] sm:$0xf]
    %v207 = vld [vmem:[#allocation2 + $0x33c] sm:$0xff]
    %v208 = vld [vmem:[#allocation2 + $0x344] sm:$0xf]
    %v209 = vld [vmem:[#allocation2 + $0x348] sm:$0xff]
    %v210 = vld [vmem:[#allocation2 + $0x350] sm:$0xf]
    %v211 = vld [vmem:[#allocation2 + $0x354] sm:$0xff]
    %v212 = vld [vmem:[#allocation2 + $0x35c] sm:$0xf]
    %v213 = vld [vmem:[#allocation2 + $0x360] sm:$0xff]
    %v214 = vld [vmem:[#allocation2 + $0x368] sm:$0xf]
    %v215 = vld [vmem:[#allocation2 + $0x36c] sm:$0xff]
    %v216 = vld [vmem:[#allocation2 + $0x374] sm:$0xf]
    %v217 = vld [vmem:[#allocation2 + $0x378] sm:$0xff]
    %v218 = vld [vmem:[#allocation2 + $0x380] sm:$0xf]
    %v219 = vld [vmem:[#allocation2 + $0x384] sm:$0xff]
    %v220 = vld [vmem:[#allocation2 + $0x38c] sm:$0xf]
    %v221 = vld [vmem:[#allocation2 + $0x390] sm:$0xff]
    %v222 = vld [vmem:[#allocation2 + $0x398] sm:$0xf]
    %v223 = vld [vmem:[#allocation2 + $0x39c] sm:$0xff]
    %v224 = vld [vmem:[#allocation2 + $0x3a4] sm:$0xf]
    %v225 = vld [vmem:[#allocation2 + $0x3a8] sm:$0xff]
    %v226 = vld [vmem:[#allocation2 + $0x3b0] sm:$0xf]
    %v227 = vld [vmem:[#allocation2 + $0x3b4] sm:$0xff]
    %v228 = vld [vmem:[#allocation2 + $0x3bc] sm:$0xf]
    %v229 = vld [vmem:[#allocation2 + $0x3c0] sm:$0xff]
    %v230 = vld [vmem:[#allocation2 + $0x3c8] sm:$0xf]
    %v231 = vld [vmem:[#allocation2 + $0x3cc] sm:$0xff]
    %v232 = vld [vmem:[#allocation2 + $0x3d4] sm:$0xf]
    %v233 = vld [vmem:[#allocation2 + $0x3d8] sm:$0xff]
    %v234 = vld [vmem:[#allocation2 + $0x3e0] sm:$0xf]
    %v235 = vld [vmem:[#allocation2 + $0x3e4] sm:$0xff]
    %v236 = vld [vmem:[#allocation2 + $0x3ec] sm:$0xf]
    %v237 = vld [vmem:[#allocation2 + $0x3f0] sm:$0xff]
    %v238 = vld [vmem:[#allocation2 + $0x3f8] sm:$0xf]
    %v239 = vld [vmem:[#allocation2 + $0x3fc] sm:$0xff]
    %v240 = vld [vmem:[#allocation2 + $0x404] sm:$0xf]
    %v241 = vld [vmem:[#allocation2 + $0x408] sm:$0xff]
    %v242 = vld [vmem:[#allocation2 + $0x410] sm:$0xf]
    %v243 = vld [vmem:[#allocation2 + $0x414] sm:$0xff]
    %v244 = vld [vmem:[#allocation2 + $0x41c] sm:$0xf]
    %v245 = vld [vmem:[#allocation2 + $0x420] sm:$0xff]
    %v246 = vld [vmem:[#allocation2 + $0x428] sm:$0xf]
    %v247 = vld [vmem:[#allocation2 + $0x42c] sm:$0xff]
    %v248 = vld [vmem:[#allocation2 + $0x434] sm:$0xf]
    %v249 = vld [vmem:[#allocation2 + $0x438] sm:$0xff]
    %v250 = vld [vmem:[#allocation2 + $0x440] sm:$0xf]
    %v251 = vld [vmem:[#allocation2 + $0x444] sm:$0xff]
    %v252 = vld [vmem:[#allocation2 + $0x44c] sm:$0xf]
    %v253 = vld [vmem:[#allocation2 + $0x450] sm:$0xff]
    %v254 = vld [vmem:[#allocation2 + $0x458] sm:$0xf]
    %v255 = vld [vmem:[#allocation2 + $0x45c] sm:$0xff]
    %v256 = vld [vmem:[#allocation2 + $0x464] sm:$0xf]
    %v257 = vld [vmem:[#allocation2 + $0x468] sm:$0xff]
    %v258 = vld [vmem:[#allocation2 + $0x470] sm:$0xf]
    %v259 = vld [vmem:[#allocation2 + $0x474] sm:$0xff]
    %v260 = vld [vmem:[#allocation2 + $0x47c] sm:$0xf]
    %v261 = vld [vmem:[%s2] sm:$0x7]
    %v263 = vlaneseq
    %v264 = vshrl.u32 %v263, 7
    %v265 = vsub.s32 0, %v264
    %v266 = vrot.slane %v261, %v265
    %v267 = vlaneseq
    %v268 = vshrl.u32 %v267, 7
    %v269 = vsub.s32 1, %v268
    %v270 = vrot.slane %v261, %v269
    %v271 = vlaneseq
    %v272 = vshrl.u32 %v271, 7
    %v273 = vsub.s32 2, %v272
    %v274 = vrot.slane %v261, %v273
    %v279 = vcombine.high %v68, %v68
    %v281 = vunpack.c.l.s4 1966171168
    %v282 = vunpack.c.0.s8 %v281
    %v283 = vlaneseq
    %v284 = vshrl.u32 %v283, 7
    %v285 = vsub.s32 %v282, %v284
    %v286 = vrot.slane %v68, %v285
    %v288 = vunpack.c.l.s4 1966171168
    %v289 = vunpack.c.0.s8 %v288
    %v290 = vlaneseq
    %v291 = vshrl.u32 %v290, 7
    %v292 = vsub.s32 %v289, %v291
    %v293 = vrot.slane %v279, %v292
    %v294 = vcombine.high %v286, %v286
    %v295 = vcombine.high %v293, %v293
    %v297 = vunpack.c.l.s4 1966171168
    %v298 = vunpack.c.0.s8 %v297
    %v299 = vlaneseq
    %v300 = vshrl.u32 %v299, 7
    %v301 = vsub.s32 %v298, %v300
    %v302 = vrot.slane %v286, %v301
    %v304 = vunpack.c.l.s4 1966171168
    %v305 = vunpack.c.0.s8 %v304
    %v306 = vlaneseq
    %v307 = vshrl.u32 %v306, 7
    %v308 = vsub.s32 %v305, %v307
    %v309 = vrot.slane %v293, %v308
    %v311 = vunpack.c.l.s4 1966171168
    %v312 = vunpack.c.0.s8 %v311
    %v313 = vlaneseq
    %v314 = vshrl.u32 %v313, 7
    %v315 = vsub.s32 %v312, %v314
    %v316 = vrot.slane %v294, %v315
    %v318 = vunpack.c.l.s4 1966171168
    %v319 = vunpack.c.0.s8 %v318
    %v320 = vlaneseq
    %v321 = vshrl.u32 %v320, 7
    %v322 = vsub.s32 %v319, %v321
    %v323 = vrot.slane %v295, %v322
    %v324 = vcombine.high %v302, %v302
    %v325 = vcombine.high %v316, %v316
    %v524 = vunpack.c.l.b16 %v69
    %v525 = vunpack.c.h.b16 %v69
    %v526 = vunpack.c.l.b16 %v70
    %v527 = vunpack.c.l.b16 %v71
    %v528 = vunpack.c.h.b16 %v71
    %v529 = vunpack.c.l.b16 %v72
    %v530 = vunpack.c.l.b16 %v73
    %v531 = vunpack.c.h.b16 %v73
    %v532 = vunpack.c.l.b16 %v74
    %v533 = vunpack.c.l.b16 %v75
    %v534 = vunpack.c.h.b16 %v75
    %v535 = vunpack.c.l.b16 %v76
    %v536 = vunpack.c.l.b16 %v77
    %v537 = vunpack.c.h.b16 %v77
    %v538 = vunpack.c.l.b16 %v78
    %v539 = vunpack.c.l.b16 %v79
    %v540 = vunpack.c.h.b16 %v79
    %v541 = vunpack.c.l.b16 %v80
    %v542 = vunpack.c.l.b16 %v81
    %v543 = vunpack.c.h.b16 %v81
    %v544 = vunpack.c.l.b16 %v82
    %v545 = vunpack.c.l.b16 %v83
    %v546 = vunpack.c.h.b16 %v83
    %v547 = vunpack.c.l.b16 %v84
    %v548 = vunpack.c.l.b16 %v85
    %v549 = vunpack.c.h.b16 %v85
    %v550 = vunpack.c.l.b16 %v86
    %v551 = vunpack.c.l.b16 %v87
    %v552 = vunpack.c.h.b16 %v87
    %v553 = vunpack.c.l.b16 %v88
    %v554 = vunpack.c.l.b16 %v89
    %v555 = vunpack.c.h.b16 %v89
    %v556 = vunpack.c.l.b16 %v90
    %v557 = vunpack.c.l.b16 %v91
    %v558 = vunpack.c.h.b16 %v91
    %v559 = vunpack.c.l.b16 %v92
    %v560 = vunpack.c.l.b16 %v93
    %v561 = vunpack.c.h.b16 %v93
    %v562 = vunpack.c.l.b16 %v94
    %v563 = vunpack.c.l.b16 %v95
    %v564 = vunpack.c.h.b16 %v95
    %v565 = vunpack.c.l.b16 %v96
    %v566 = vunpack.c.l.b16 %v97
    %v567 = vunpack.c.h.b16 %v97
    %v568 = vunpack.c.l.b16 %v98
    %v569 = vunpack.c.l.b16 %v99
    %v570 = vunpack.c.h.b16 %v99
    %v571 = vunpack.c.l.b16 %v100
    %v572 = vunpack.c.l.b16 %v101
    %v573 = vunpack.c.h.b16 %v101
    %v574 = vunpack.c.l.b16 %v102
    %v575 = vunpack.c.l.b16 %v103
    %v576 = vunpack.c.h.b16 %v103
    %v577 = vunpack.c.l.b16 %v104
    %v578 = vunpack.c.l.b16 %v105
    %v579 = vunpack.c.h.b16 %v105
    %v580 = vunpack.c.l.b16 %v106
    %v581 = vunpack.c.l.b16 %v107
    %v582 = vunpack.c.h.b16 %v107
    %v583 = vunpack.c.l.b16 %v108
    %v584 = vunpack.c.l.b16 %v109
    %v585 = vunpack.c.h.b16 %v109
    %v586 = vunpack.c.l.b16 %v110
    %v587 = vunpack.c.l.b16 %v111
    %v588 = vunpack.c.h.b16 %v111
    %v589 = vunpack.c.l.b16 %v112
    %v590 = vunpack.c.l.b16 %v113
    %v591 = vunpack.c.h.b16 %v113
    %v592 = vunpack.c.l.b16 %v114
    %v593 = vunpack.c.l.b16 %v115
    %v594 = vunpack.c.h.b16 %v115
    %v595 = vunpack.c.l.b16 %v116
    %v596 = vunpack.c.l.b16 %v117
    %v597 = vunpack.c.h.b16 %v117
    %v598 = vunpack.c.l.b16 %v118
    %v599 = vunpack.c.l.b16 %v119
    %v600 = vunpack.c.h.b16 %v119
    %v601 = vunpack.c.l.b16 %v120
    %v602 = vunpack.c.l.b16 %v121
    %v603 = vunpack.c.h.b16 %v121
    %v604 = vunpack.c.l.b16 %v122
    %v605 = vunpack.c.l.b16 %v123
    %v606 = vunpack.c.h.b16 %v123
    %v607 = vunpack.c.l.b16 %v124
    %v608 = vunpack.c.l.b16 %v125
    %v609 = vunpack.c.h.b16 %v125
    %v610 = vunpack.c.l.b16 %v126
    %v611 = vunpack.c.l.b16 %v127
    %v612 = vunpack.c.h.b16 %v127
    %v613 = vunpack.c.l.b16 %v128
    %v614 = vunpack.c.l.b16 %v129
    %v615 = vunpack.c.h.b16 %v129
    %v616 = vunpack.c.l.b16 %v130
    %v617 = vunpack.c.l.b16 %v131
    %v618 = vunpack.c.h.b16 %v131
    %v619 = vunpack.c.l.b16 %v132
    %v620 = vunpack.c.l.b16 %v133
    %v621 = vunpack.c.h.b16 %v133
    %v622 = vunpack.c.l.b16 %v134
    %v623 = vunpack.c.l.b16 %v135
    %v624 = vunpack.c.h.b16 %v135
    %v625 = vunpack.c.l.b16 %v136
    %v626 = vunpack.c.l.b16 %v137
    %v627 = vunpack.c.h.b16 %v137
    %v628 = vunpack.c.l.b16 %v138
    %v629 = vunpack.c.l.b16 %v139
    %v630 = vunpack.c.h.b16 %v139
    %v631 = vunpack.c.l.b16 %v140
    %v632 = vunpack.c.l.b16 %v141
    %v633 = vunpack.c.h.b16 %v141
    %v634 = vunpack.c.l.b16 %v142
    %v635 = vunpack.c.l.b16 %v143
    %v636 = vunpack.c.h.b16 %v143
    %v637 = vunpack.c.l.b16 %v144
    %v638 = vunpack.c.l.b16 %v145
    %v639 = vunpack.c.h.b16 %v145
    %v640 = vunpack.c.l.b16 %v146
    %v641 = vunpack.c.l.b16 %v147
    %v642 = vunpack.c.h.b16 %v147
    %v643 = vunpack.c.l.b16 %v148
    %v644 = vunpack.c.l.b16 %v149
    %v645 = vunpack.c.h.b16 %v149
    %v646 = vunpack.c.l.b16 %v150
    %v647 = vunpack.c.l.b16 %v151
    %v648 = vunpack.c.h.b16 %v151
    %v649 = vunpack.c.l.b16 %v152
    %v650 = vunpack.c.l.b16 %v153
    %v651 = vunpack.c.h.b16 %v153
    %v652 = vunpack.c.l.b16 %v154
    %v653 = vunpack.c.l.b16 %v155
    %v654 = vunpack.c.h.b16 %v155
    %v655 = vunpack.c.l.b16 %v156
    %v656 = vunpack.c.l.b16 %v157
    %v657 = vunpack.c.h.b16 %v157
    %v658 = vunpack.c.l.b16 %v158
    %v659 = vunpack.c.l.b16 %v159
    %v660 = vunpack.c.h.b16 %v159
    %v661 = vunpack.c.l.b16 %v160
    %v662 = vunpack.c.l.b16 %v161
    %v663 = vunpack.c.h.b16 %v161
    %v664 = vunpack.c.l.b16 %v162
    %v665 = vunpack.c.l.b16 %v163
    %v666 = vunpack.c.h.b16 %v163
    %v667 = vunpack.c.l.b16 %v164
    %v668 = vunpack.c.l.b16 %v165
    %v669 = vunpack.c.h.b16 %v165
    %v670 = vunpack.c.l.b16 %v166
    %v671 = vunpack.c.l.b16 %v167
    %v672 = vunpack.c.h.b16 %v167
    %v673 = vunpack.c.l.b16 %v168
    %v674 = vunpack.c.l.b16 %v169
    %v675 = vunpack.c.h.b16 %v169
    %v676 = vunpack.c.l.b16 %v170
    %v677 = vunpack.c.l.b16 %v171
    %v678 = vunpack.c.h.b16 %v171
    %v679 = vunpack.c.l.b16 %v172
    %v680 = vunpack.c.l.b16 %v173
    %v681 = vunpack.c.h.b16 %v173
    %v682 = vunpack.c.l.b16 %v174
    %v683 = vunpack.c.l.b16 %v175
    %v684 = vunpack.c.h.b16 %v175
    %v685 = vunpack.c.l.b16 %v176
    %v686 = vunpack.c.l.b16 %v177
    %v687 = vunpack.c.h.b16 %v177
    %v688 = vunpack.c.l.b16 %v178
    %v689 = vunpack.c.l.b16 %v179
    %v690 = vunpack.c.h.b16 %v179
    %v691 = vunpack.c.l.b16 %v180
    %v692 = vunpack.c.l.b16 %v181
    %v693 = vunpack.c.h.b16 %v181
    %v694 = vunpack.c.l.b16 %v182
    %v695 = vunpack.c.l.b16 %v183
    %v696 = vunpack.c.h.b16 %v183
    %v697 = vunpack.c.l.b16 %v184
    %v698 = vunpack.c.l.b16 %v185
    %v699 = vunpack.c.h.b16 %v185
    %v700 = vunpack.c.l.b16 %v186
    %v701 = vunpack.c.l.b16 %v187
    %v702 = vunpack.c.h.b16 %v187
    %v703 = vunpack.c.l.b16 %v188
    %v704 = vunpack.c.l.b16 %v189
    %v705 = vunpack.c.h.b16 %v189
    %v706 = vunpack.c.l.b16 %v190
    %v707 = vunpack.c.l.b16 %v191
    %v708 = vunpack.c.h.b16 %v191
    %v709 = vunpack.c.l.b16 %v192
    %v710 = vunpack.c.l.b16 %v193
    %v711 = vunpack.c.h.b16 %v193
    %v712 = vunpack.c.l.b16 %v194
    %v713 = vunpack.c.l.b16 %v195
    %v714 = vunpack.c.h.b16 %v195
    %v715 = vunpack.c.l.b16 %v196
    %v716 = vunpack.c.l.b16 %v197
    %v717 = vunpack.c.h.b16 %v197
    %v718 = vunpack.c.l.b16 %v198
    %v719 = vunpack.c.l.b16 %v199
    %v720 = vunpack.c.h.b16 %v199
    %v721 = vunpack.c.l.b16 %v200
    %v722 = vunpack.c.l.b16 %v201
    %v723 = vunpack.c.h.b16 %v201
    %v724 = vunpack.c.l.b16 %v202
    %v725 = vunpack.c.l.b16 %v203
    %v726 = vunpack.c.h.b16 %v203
    %v727 = vunpack.c.l.b16 %v204
    %v728 = vunpack.c.l.b16 %v205
    %v729 = vunpack.c.h.b16 %v205
    %v730 = vunpack.c.l.b16 %v206
    %v731 = vunpack.c.l.b16 %v207
    %v732 = vunpack.c.h.b16 %v207
    %v733 = vunpack.c.l.b16 %v208
    %v734 = vunpack.c.l.b16 %v209
    %v735 = vunpack.c.h.b16 %v209
    %v736 = vunpack.c.l.b16 %v210
    %v737 = vunpack.c.l.b16 %v211
    %v738 = vunpack.c.h.b16 %v211
    %v739 = vunpack.c.l.b16 %v212
    %v740 = vunpack.c.l.b16 %v213
    %v741 = vunpack.c.h.b16 %v213
    %v742 = vunpack.c.l.b16 %v214
    %v743 = vunpack.c.l.b16 %v215
    %v744 = vunpack.c.h.b16 %v215
    %v745 = vunpack.c.l.b16 %v216
    %v746 = vunpack.c.l.b16 %v217
    %v747 = vunpack.c.h.b16 %v217
    %v748 = vunpack.c.l.b16 %v218
    %v749 = vunpack.c.l.b16 %v219
    %v750 = vunpack.c.h.b16 %v219
    %v751 = vunpack.c.l.b16 %v220
    %v752 = vunpack.c.l.b16 %v221
    %v753 = vunpack.c.h.b16 %v221
    %v754 = vunpack.c.l.b16 %v222
    %v755 = vunpack.c.l.b16 %v223
    %v756 = vunpack.c.h.b16 %v223
    %v757 = vunpack.c.l.b16 %v224
    %v758 = vunpack.c.l.b16 %v225
    %v759 = vunpack.c.h.b16 %v225
    %v760 = vunpack.c.l.b16 %v226
    %v761 = vunpack.c.l.b16 %v227
    %v762 = vunpack.c.h.b16 %v227
    %v763 = vunpack.c.l.b16 %v228
    %v764 = vunpack.c.l.b16 %v229
    %v765 = vunpack.c.h.b16 %v229
    %v766 = vunpack.c.l.b16 %v230
    %v767 = vunpack.c.l.b16 %v231
    %v768 = vunpack.c.h.b16 %v231
    %v769 = vunpack.c.l.b16 %v232
    %v770 = vunpack.c.l.b16 %v233
    %v771 = vunpack.c.h.b16 %v233
    %v772 = vunpack.c.l.b16 %v234
    %v773 = vunpack.c.l.b16 %v235
    %v774 = vunpack.c.h.b16 %v235
    %v775 = vunpack.c.l.b16 %v236
    %v776 = vunpack.c.l.b16 %v237
    %v777 = vunpack.c.h.b16 %v237
    %v778 = vunpack.c.l.b16 %v238
    %v779 = vunpack.c.l.b16 %v239
    %v780 = vunpack.c.h.b16 %v239
    %v781 = vunpack.c.l.b16 %v240
    %v782 = vunpack.c.l.b16 %v241
    %v783 = vunpack.c.h.b16 %v241
    %v784 = vunpack.c.l.b16 %v242
    %v785 = vunpack.c.l.b16 %v243
    %v786 = vunpack.c.h.b16 %v243
    %v787 = vunpack.c.l.b16 %v244
    %v788 = vunpack.c.l.b16 %v245
    %v789 = vunpack.c.h.b16 %v245
    %v790 = vunpack.c.l.b16 %v246
    %v791 = vunpack.c.l.b16 %v247
    %v792 = vunpack.c.h.b16 %v247
    %v793 = vunpack.c.l.b16 %v248
    %v794 = vunpack.c.l.b16 %v249
    %v795 = vunpack.c.h.b16 %v249
    %v796 = vunpack.c.l.b16 %v250
    %v797 = vunpack.c.l.b16 %v251
    %v798 = vunpack.c.h.b16 %v251
    %v799 = vunpack.c.l.b16 %v252
    %v800 = vunpack.c.l.b16 %v253
    %v801 = vunpack.c.h.b16 %v253
    %v802 = vunpack.c.l.b16 %v254
    %v803 = vunpack.c.l.b16 %v255
    %v804 = vunpack.c.h.b16 %v255
    %v805 = vunpack.c.l.b16 %v256
    %v806 = vunpack.c.l.b16 %v257
    %v807 = vunpack.c.h.b16 %v257
    %v808 = vunpack.c.l.b16 %v258
    %v809 = vunpack.c.l.b16 %v259
    %v810 = vunpack.c.h.b16 %v259
    %v811 = vunpack.c.l.b16 %v260
    %v812 = vpack.c.b16 %v527, %v524
    %v813 = vpack.c.b16 %v528, %v525
    %v814 = vpack.c.b16 %v529, %v526
    %v815 = vpack.c.b16 %v533, %v530
    %v816 = vpack.c.b16 %v534, %v531
    %v817 = vpack.c.b16 %v535, %v532
    %v818 = vpack.c.b16 %v539, %v536
    %v819 = vpack.c.b16 %v540, %v537
    %v820 = vpack.c.b16 %v541, %v538
    %v821 = vpack.c.b16 %v545, %v542
    %v822 = vpack.c.b16 %v546, %v543
    %v823 = vpack.c.b16 %v547, %v544
    %v824 = vpack.c.b16 %v551, %v548
    %v825 = vpack.c.b16 %v552, %v549
    %v826 = vpack.c.b16 %v553, %v550
    %v827 = vpack.c.b16 %v557, %v554
    %v828 = vpack.c.b16 %v558, %v555
    %v829 = vpack.c.b16 %v559, %v556
    %v830 = vpack.c.b16 %v563, %v560
    %v831 = vpack.c.b16 %v564, %v561
    %v832 = vpack.c.b16 %v565, %v562
    %v833 = vpack.c.b16 %v569, %v566
    %v834 = vpack.c.b16 %v570, %v567
    %v835 = vpack.c.b16 %v571, %v568
    %v836 = vpack.c.b16 %v575, %v572
    %v837 = vpack.c.b16 %v576, %v573
    %v838 = vpack.c.b16 %v577, %v574
    %v839 = vpack.c.b16 %v581, %v578
    %v840 = vpack.c.b16 %v582, %v579
    %v841 = vpack.c.b16 %v583, %v580
    %v842 = vpack.c.b16 %v587, %v584
    %v843 = vpack.c.b16 %v588, %v585
    %v844 = vpack.c.b16 %v589, %v586
    %v845 = vpack.c.b16 %v593, %v590
    %v846 = vpack.c.b16 %v594, %v591
    %v847 = vpack.c.b16 %v595, %v592
    %v848 = vpack.c.b16 %v599, %v596
    %v849 = vpack.c.b16 %v600, %v597
    %v850 = vpack.c.b16 %v601, %v598
    %v851 = vpack.c.b16 %v605, %v602
    %v852 = vpack.c.b16 %v606, %v603
    %v853 = vpack.c.b16 %v607, %v604
    %v854 = vpack.c.b16 %v611, %v608
    %v855 = vpack.c.b16 %v612, %v609
    %v856 = vpack.c.b16 %v613, %v610
    %v857 = vpack.c.b16 %v617, %v614
    %v858 = vpack.c.b16 %v618, %v615
    %v859 = vpack.c.b16 %v619, %v616
    %v860 = vpack.c.b16 %v623, %v620
    %v861 = vpack.c.b16 %v624, %v621
    %v862 = vpack.c.b16 %v625, %v622
    %v863 = vpack.c.b16 %v629, %v626
    %v864 = vpack.c.b16 %v630, %v627
    %v865 = vpack.c.b16 %v631, %v628
    %v866 = vpack.c.b16 %v635, %v632
    %v867 = vpack.c.b16 %v636, %v633
    %v868 = vpack.c.b16 %v637, %v634
    %v869 = vpack.c.b16 %v641, %v638
    %v870 = vpack.c.b16 %v642, %v639
    %v871 = vpack.c.b16 %v643, %v640
    %v872 = vpack.c.b16 %v647, %v644
    %v873 = vpack.c.b16 %v648, %v645
    %v874 = vpack.c.b16 %v649, %v646
    %v875 = vpack.c.b16 %v653, %v650
    %v876 = vpack.c.b16 %v654, %v651
    %v877 = vpack.c.b16 %v655, %v652
    %v878 = vpack.c.b16 %v659, %v656
    %v879 = vpack.c.b16 %v660, %v657
    %v880 = vpack.c.b16 %v661, %v658
    %v881 = vpack.c.b16 %v665, %v662
    %v882 = vpack.c.b16 %v666, %v663
    %v883 = vpack.c.b16 %v667, %v664
    %v884 = vpack.c.b16 %v671, %v668
    %v885 = vpack.c.b16 %v672, %v669
    %v886 = vpack.c.b16 %v673, %v670
    %v887 = vpack.c.b16 %v677, %v674
    %v888 = vpack.c.b16 %v678, %v675
    %v889 = vpack.c.b16 %v679, %v676
    %v890 = vpack.c.b16 %v683, %v680
    %v891 = vpack.c.b16 %v684, %v681
    %v892 = vpack.c.b16 %v685, %v682
    %v893 = vpack.c.b16 %v689, %v686
    %v894 = vpack.c.b16 %v690, %v687
    %v895 = vpack.c.b16 %v691, %v688
    %v896 = vpack.c.b16 %v695, %v692
    %v897 = vpack.c.b16 %v696, %v693
    %v898 = vpack.c.b16 %v697, %v694
    %v899 = vpack.c.b16 %v701, %v698
    %v900 = vpack.c.b16 %v702, %v699
    %v901 = vpack.c.b16 %v703, %v700
    %v902 = vpack.c.b16 %v707, %v704
    %v903 = vpack.c.b16 %v708, %v705
    %v904 = vpack.c.b16 %v709, %v706
    %v905 = vpack.c.b16 %v713, %v710
    %v906 = vpack.c.b16 %v714, %v711
    %v907 = vpack.c.b16 %v715, %v712
    %v908 = vpack.c.b16 %v719, %v716
    %v909 = vpack.c.b16 %v720, %v717
    %v910 = vpack.c.b16 %v721, %v718
    %v911 = vpack.c.b16 %v725, %v722
    %v912 = vpack.c.b16 %v726, %v723
    %v913 = vpack.c.b16 %v727, %v724
    %v914 = vpack.c.b16 %v731, %v728
    %v915 = vpack.c.b16 %v732, %v729
    %v916 = vpack.c.b16 %v733, %v730
    %v917 = vpack.c.b16 %v737, %v734
    %v918 = vpack.c.b16 %v738, %v735
    %v919 = vpack.c.b16 %v739, %v736
    %v920 = vpack.c.b16 %v743, %v740
    %v921 = vpack.c.b16 %v744, %v741
    %v922 = vpack.c.b16 %v745, %v742
    %v923 = vpack.c.b16 %v749, %v746
    %v924 = vpack.c.b16 %v750, %v747
    %v925 = vpack.c.b16 %v751, %v748
    %v926 = vpack.c.b16 %v755, %v752
    %v927 = vpack.c.b16 %v756, %v753
    %v928 = vpack.c.b16 %v757, %v754
    %v929 = vpack.c.b16 %v761, %v758
    %v930 = vpack.c.b16 %v762, %v759
    %v931 = vpack.c.b16 %v763, %v760
    %v932 = vpack.c.b16 %v767, %v764
    %v933 = vpack.c.b16 %v768, %v765
    %v934 = vpack.c.b16 %v769, %v766
    %v935 = vpack.c.b16 %v773, %v770
    %v936 = vpack.c.b16 %v774, %v771
    %v937 = vpack.c.b16 %v775, %v772
    %v938 = vpack.c.b16 %v779, %v776
    %v939 = vpack.c.b16 %v780, %v777
    %v940 = vpack.c.b16 %v781, %v778
    %v941 = vpack.c.b16 %v785, %v782
    %v942 = vpack.c.b16 %v786, %v783
    %v943 = vpack.c.b16 %v787, %v784
    %v944 = vpack.c.b16 %v791, %v788
    %v945 = vpack.c.b16 %v792, %v789
    %v946 = vpack.c.b16 %v793, %v790
    %v947 = vpack.c.b16 %v797, %v794
    %v948 = vpack.c.b16 %v798, %v795
    %v949 = vpack.c.b16 %v799, %v796
    %v950 = vpack.c.b16 %v803, %v800
    %v951 = vpack.c.b16 %v804, %v801
    %v952 = vpack.c.b16 %v805, %v802
    %v953 = vpack.c.b16 %v809, %v806
    %v954 = vpack.c.b16 %v810, %v807
    %v955 = vpack.c.b16 %v811, %v808
    %1100 = vmatprep.subr.bf16.mxu0 %v813
    %1101 = vmatpush1.bf16.msra.mxu0 %v812
    %1102 = vmatprep.subr.bf16.mxu0 %v816
    %1103 = vmatpush1.bf16.msra.mxu0 %v815
    %1104 = vmatprep.subr.bf16.mxu0 %v819
    %1105 = vmatpush1.bf16.msra.mxu0 %v818
    %1106 = vmatprep.subr.bf16.mxu0 %v822
    %1107 = vmatpush1.bf16.msra.mxu0 %v821
    %1108 = vmatprep.subr.bf16.mxu0 %v825
    %1109 = vmatpush1.bf16.msra.mxu0 %v824
    %1110 = vmatprep.subr.bf16.mxu0 %v828
    %1111 = vmatpush1.bf16.msra.mxu0 %v827
    %1112 = vmatprep.subr.bf16.mxu0 %v831
    %1113 = vmatpush1.bf16.msra.mxu0 %v830
    %1114 = vmatprep.subr.bf16.mxu0 %v834
    %1115 = vmatpush1.bf16.msra.mxu0 %v833
    %1116 = vmatprep.subr.bf16.mxu0 %v837
    %1117 = vmatpush1.bf16.msra.mxu0 %v836
    %1118 = vmatprep.subr.bf16.mxu0 %v840
    %1119 = vmatpush1.bf16.msra.mxu0 %v839
    %1120 = vmatprep.subr.bf16.mxu0 %v843
    %1121 = vmatpush1.bf16.msra.mxu0 %v842
    %1122 = vmatprep.subr.bf16.mxu0 %v846
    %1123 = vmatpush1.bf16.msra.mxu0 %v845
    %1124 = vmatprep.subr.bf16.mxu0 %v849
    %1125 = vmatpush1.bf16.msra.mxu0 %v848
    %1126 = vmatprep.subr.bf16.mxu0 %v852
    %1127 = vmatpush1.bf16.msra.mxu0 %v851
    %1128 = vmatprep.subr.bf16.mxu0 %v855
    %1129 = vmatpush1.bf16.msra.mxu0 %v854
    %1130 = vmatprep.subr.bf16.mxu0 %v858
    %1131 = vmatpush1.bf16.msra.mxu0 %v857
    %1132 = vmatprep.mubr.bf16.mxu0 %v316
    %1133 = vmatmul.mubr.bf16.gmra.mrb[0].mxu0 %v302
    %v1134 = vpop.f32.mrb[0].mxu0
    %v1135 = vadd.f32 %v266, %v1134
    %v1136 = vpop.f32.mrb[0].mxu0
    %v1137 = vadd.f32 %v270, %v1136
    %v1138 = vpop.f32.mrb[0].mxu0
    %v1139 = vpop.f32.mrb[0].mxu0
    %1140 = vdwg.mxu0
    %1141 = vmatprep.subr.bf16.mxu0 %v861
    %1142 = vmatpush1.bf16.msra.mxu0 %v860
    %1143 = vmatprep.subr.bf16.mxu0 %v864
    %1144 = vmatpush1.bf16.msra.mxu0 %v863
    %1145 = vmatprep.subr.bf16.mxu0 %v867
    %1146 = vmatpush1.bf16.msra.mxu0 %v866
    %1147 = vmatprep.subr.bf16.mxu0 %v870
    %1148 = vmatpush1.bf16.msra.mxu0 %v869
    %1149 = vmatprep.subr.bf16.mxu0 %v873
    %1150 = vmatpush1.bf16.msra.mxu0 %v872
    %1151 = vmatprep.subr.bf16.mxu0 %v876
    %1152 = vmatpush1.bf16.msra.mxu0 %v875
    %1153 = vmatprep.subr.bf16.mxu0 %v879
    %1154 = vmatpush1.bf16.msra.mxu0 %v878
    %1155 = vmatprep.subr.bf16.mxu0 %v882
    %1156 = vmatpush1.bf16.msra.mxu0 %v881
    %1157 = vmatprep.subr.bf16.mxu0 %v885
    %1158 = vmatpush1.bf16.msra.mxu0 %v884
    %1159 = vmatprep.subr.bf16.mxu0 %v888
    %1160 = vmatpush1.bf16.msra.mxu0 %v887
    %1161 = vmatprep.subr.bf16.mxu0 %v891
    %1162 = vmatpush1.bf16.msra.mxu0 %v890
    %1163 = vmatprep.subr.bf16.mxu0 %v894
    %1164 = vmatpush1.bf16.msra.mxu0 %v893
    %1165 = vmatprep.subr.bf16.mxu0 %v897
    %1166 = vmatpush1.bf16.msra.mxu0 %v896
    %1167 = vmatprep.subr.bf16.mxu0 %v900
    %1168 = vmatpush1.bf16.msra.mxu0 %v899
    %1169 = vmatprep.subr.bf16.mxu0 %v903
    %1170 = vmatpush1.bf16.msra.mxu0 %v902
    %1171 = vmatprep.subr.bf16.mxu0 %v906
    %1172 = vmatpush1.bf16.msra.mxu0 %v905
    %1173 = vmatprep.mubr.bf16.mxu0 %v325
    %1174 = vmatmul.mubr.bf16.gmra.mrb[0].mxu0 %v324
    %v1175 = vpop.f32.mrb[0].mxu0
    %v1176 = vadd.f32 %v1135, %v1175
    %v1177 = vpop.f32.mrb[0].mxu0
    %v1178 = vadd.f32 %v1137, %v1177
    %v1179 = vpop.f32.mrb[0].mxu0
    %v1180 = vpop.f32.mrb[0].mxu0
    %1181 = vdwg.mxu0
    %1182 = vmatprep.subr.bf16.mxu0 %v909
    %1183 = vmatpush1.bf16.msra.mxu0 %v908
    %1184 = vmatprep.subr.bf16.mxu0 %v912
    %1185 = vmatpush1.bf16.msra.mxu0 %v911
    %1186 = vmatprep.subr.bf16.mxu0 %v915
    %1187 = vmatpush1.bf16.msra.mxu0 %v914
    %1188 = vmatprep.subr.bf16.mxu0 %v918
    %1189 = vmatpush1.bf16.msra.mxu0 %v917
    %1190 = vmatprep.subr.bf16.mxu0 %v921
    %1191 = vmatpush1.bf16.msra.mxu0 %v920
    %1192 = vmatprep.subr.bf16.mxu0 %v924
    %1193 = vmatpush1.bf16.msra.mxu0 %v923
    %1194 = vmatprep.subr.bf16.mxu0 %v927
    %1195 = vmatpush1.bf16.msra.mxu0 %v926
    %1196 = vmatprep.subr.bf16.mxu0 %v930
    %1197 = vmatpush1.bf16.msra.mxu0 %v929
    %1198 = vmatprep.subr.bf16.mxu0 %v933
    %1199 = vmatpush1.bf16.msra.mxu0 %v932
    %1200 = vmatprep.subr.bf16.mxu0 %v936
    %1201 = vmatpush1.bf16.msra.mxu0 %v935
    %1202 = vmatprep.subr.bf16.mxu0 %v939
    %1203 = vmatpush1.bf16.msra.mxu0 %v938
    %1204 = vmatprep.subr.bf16.mxu0 %v942
    %1205 = vmatpush1.bf16.msra.mxu0 %v941
    %1206 = vmatprep.subr.bf16.mxu0 %v945
    %1207 = vmatpush1.bf16.msra.mxu0 %v944
    %1208 = vmatprep.subr.bf16.mxu0 %v948
    %1209 = vmatpush1.bf16.msra.mxu0 %v947
    %1210 = vmatprep.subr.bf16.mxu0 %v951
    %1211 = vmatpush1.bf16.msra.mxu0 %v950
    %1212 = vmatprep.subr.bf16.mxu0 %v954
    %1213 = vmatpush1.bf16.msra.mxu0 %v953
    %1214 = vmatprep.mubr.bf16.mxu0 %v323
    %1215 = vmatmul.mubr.bf16.gmra.mrb[0].mxu0 %v309
    %v1216 = vpop.f32.mrb[0].mxu0
    %v1217 = vadd.f32 %v1176, %v1216
    %v1218 = vpop.f32.mrb[0].mxu0
    %v1219 = vadd.f32 %v1178, %v1218
    %v1220 = vpop.f32.mrb[0].mxu0
    %v1221 = vpop.f32.mrb[0].mxu0
    %1222 = vdwg.mxu0
    %1223 = vmatprep.subr.bf16.mxu0 0
    %1224 = vmatpush1.bf16.msra.mxu0 %v814
    %1225 = vmatprep.subr.bf16.mxu0 0
    %1226 = vmatpush1.bf16.msra.mxu0 %v817
    %1227 = vmatprep.subr.bf16.mxu0 0
    %1228 = vmatpush1.bf16.msra.mxu0 %v820
    %1229 = vmatprep.subr.bf16.mxu0 0
    %1230 = vmatpush1.bf16.msra.mxu0 %v823
    %1231 = vmatprep.subr.bf16.mxu0 0
    %1232 = vmatpush1.bf16.msra.mxu0 %v826
    %1233 = vmatprep.subr.bf16.mxu0 0
    %1234 = vmatpush1.bf16.msra.mxu0 %v829
    %1235 = vmatprep.subr.bf16.mxu0 0
    %1236 = vmatpush1.bf16.msra.mxu0 %v832
    %1237 = vmatprep.subr.bf16.mxu0 0
    %1238 = vmatpush1.bf16.msra.mxu0 %v835
    %1239 = vmatprep.subr.bf16.mxu0 0
    %1240 = vmatpush1.bf16.msra.mxu0 %v838
    %1241 = vmatprep.subr.bf16.mxu0 0
    %1242 = vmatpush1.bf16.msra.mxu0 %v841
    %1243 = vmatprep.subr.bf16.mxu0 0
    %1244 = vmatpush1.bf16.msra.mxu0 %v844
    %1245 = vmatprep.subr.bf16.mxu0 0
    %1246 = vmatpush1.bf16.msra.mxu0 %v847
    %1247 = vmatprep.subr.bf16.mxu0 0
    %1248 = vmatpush1.bf16.msra.mxu0 %v850
    %1249 = vmatprep.subr.bf16.mxu0 0
    %1250 = vmatpush1.bf16.msra.mxu0 %v853
    %1251 = vmatprep.subr.bf16.mxu0 0
    %1252 = vmatpush1.bf16.msra.mxu0 %v856
    %1253 = vmatprep.subr.bf16.mxu0 0
    %1254 = vmatpush1.bf16.msra.mxu0 %v859
    %1255 = vmatprep.mubr.bf16.mxu0 %v316
    %1256 = vmatmul.mubr.bf16.gmra.mrb[0].mxu0 %v302
    %v1257 = vpop.f32.mrb[0].mxu0
    %v1258 = vadd.f32 %v274, %v1257
    %v1259 = vpop.f32.mrb[0].mxu0
    %v1260 = vpop.f32.mrb[0].mxu0
    %v1261 = vpop.f32.mrb[0].mxu0
    %1262 = vdwg.mxu0
    %1263 = vmatprep.subr.bf16.mxu0 0
    %1264 = vmatpush1.bf16.msra.mxu0 %v862
    %1265 = vmatprep.subr.bf16.mxu0 0
    %1266 = vmatpush1.bf16.msra.mxu0 %v865
    %1267 = vmatprep.subr.bf16.mxu0 0
    %1268 = vmatpush1.bf16.msra.mxu0 %v868
    %1269 = vmatprep.subr.bf16.mxu0 0
    %1270 = vmatpush1.bf16.msra.mxu0 %v871
    %1271 = vmatprep.subr.bf16.mxu0 0
    %1272 = vmatpush1.bf16.msra.mxu0 %v874
    %1273 = vmatprep.subr.bf16.mxu0 0
    %1274 = vmatpush1.bf16.msra.mxu0 %v877
    %1275 = vmatprep.subr.bf16.mxu0 0
    %1276 = vmatpush1.bf16.msra.mxu0 %v880
    %1277 = vmatprep.subr.bf16.mxu0 0
    %1278 = vmatpush1.bf16.msra.mxu0 %v883
    %1279 = vmatprep.subr.bf16.mxu0 0
    %1280 = vmatpush1.bf16.msra.mxu0 %v886
    %1281 = vmatprep.subr.bf16.mxu0 0
    %1282 = vmatpush1.bf16.msra.mxu0 %v889
    %1283 = vmatprep.subr.bf16.mxu0 0
    %1284 = vmatpush1.bf16.msra.mxu0 %v892
    %1285 = vmatprep.subr.bf16.mxu0 0
    %1286 = vmatpush1.bf16.msra.mxu0 %v895
    %1287 = vmatprep.subr.bf16.mxu0 0
    %1288 = vmatpush1.bf16.msra.mxu0 %v898
    %1289 = vmatprep.subr.bf16.mxu0 0
    %1290 = vmatpush1.bf16.msra.mxu0 %v901
    %1291 = vmatprep.subr.bf16.mxu0 0
    %1292 = vmatpush1.bf16.msra.mxu0 %v904
    %1293 = vmatprep.subr.bf16.mxu0 0
    %1294 = vmatpush1.bf16.msra.mxu0 %v907
    %1295 = vmatprep.mubr.bf16.mxu0 %v325
    %1296 = vmatmul.mubr.bf16.gmra.mrb[0].mxu0 %v324
    %v1297 = vpop.f32.mrb[0].mxu0
    %v1298 = vadd.f32 %v1258, %v1297
    %v1299 = vpop.f32.mrb[0].mxu0
    %v1300 = vpop.f32.mrb[0].mxu0
    %v1301 = vpop.f32.mrb[0].mxu0
    %1302 = vdwg.mxu0
    %1303 = vmatprep.subr.bf16.mxu0 0
    %1304 = vmatpush1.bf16.msra.mxu0 %v910
    %1305 = vmatprep.subr.bf16.mxu0 0
    %1306 = vmatpush1.bf16.msra.mxu0 %v913
    %1307 = vmatprep.subr.bf16.mxu0 0
    %1308 = vmatpush1.bf16.msra.mxu0 %v916
    %1309 = vmatprep.subr.bf16.mxu0 0
    %1310 = vmatpush1.bf16.msra.mxu0 %v919
    %1311 = vmatprep.subr.bf16.mxu0 0
    %1312 = vmatpush1.bf16.msra.mxu0 %v922
    %1313 = vmatprep.subr.bf16.mxu0 0
    %1314 = vmatpush1.bf16.msra.mxu0 %v925
    %1315 = vmatprep.subr.bf16.mxu0 0
    %1316 = vmatpush1.bf16.msra.mxu0 %v928
    %1317 = vmatprep.subr.bf16.mxu0 0
    %1318 = vmatpush1.bf16.msra.mxu0 %v931
    %1319 = vmatprep.subr.bf16.mxu0 0
    %1320 = vmatpush1.bf16.msra.mxu0 %v934
    %1321 = vmatprep.subr.bf16.mxu0 0
    %1322 = vmatpush1.bf16.msra.mxu0 %v937
    %1323 = vmatprep.subr.bf16.mxu0 0
    %1324 = vmatpush1.bf16.msra.mxu0 %v940
    %1325 = vmatprep.subr.bf16.mxu0 0
    %1326 = vmatpush1.bf16.msra.mxu0 %v943
    %1327 = vmatprep.subr.bf16.mxu0 0
    %1328 = vmatpush1.bf16.msra.mxu0 %v946
    %1329 = vmatprep.subr.bf16.mxu0 0
    %1330 = vmatpush1.bf16.msra.mxu0 %v949
    %1331 = vmatprep.subr.bf16.mxu0 0
    %1332 = vmatpush1.bf16.msra.mxu0 %v952
    %1333 = vmatprep.subr.bf16.mxu0 0
    %1334 = vmatpush1.bf16.msra.mxu0 %v955
    %1335 = vmatprep.mubr.bf16.mxu0 %v323
    %1336 = vmatmul.mubr.bf16.gmra.mrb[0].mxu0 %v309
    %v1337 = vpop.f32.mrb[0].mxu0
    %v1338 = vadd.f32 %v1298, %v1337
    %v1339 = vpop.f32.mrb[0].mxu0
    %v1340 = vpop.f32.mrb[0].mxu0
    %v1341 = vpop.f32.mrb[0].mxu0
    %1342 = vdwg.mxu0
    %v1343 = vmax.f32 %v1217, 0.0
    %v1344 = vmax.f32 %v1219, 0.0
    %v1345 = vmul.f32 %v1217, 0.5
    %v1346 = vmul.f32 %v1219, 0.5
    %v1347 = vtanh.pop %v1345
    %v1348 = vtanh.pop %v1346
    %v1349 = vadd.f32 %v1347, 1.0
    %v1350 = vadd.f32 %v1348, 1.0
    %v1351 = vmul.f32 %v1349, 0.5
    %v1352 = vmul.f32 %v1350, 0.5
    %v1353 = vpack.c.bf16 %v1343, %v1343
    %v1354 = vpack.c.bf16 %v1344, %v1344
    %v1355 = vpack.c.bf16 %v1351, %v1351
    %v1356 = vpack.c.bf16 %v1352, %v1352
    %v1357 = vld [vmem:[#allocation4] sm:$0xff]
    %v1358 = vld [vmem:[#allocation4 + $0x8] sm:$0xff]
    %v1359 = vld [vmem:[#allocation4 + $0x10] sm:$0xff]
    %v1360 = vld [vmem:[#allocation4 + $0x18] sm:$0xff]
    %v1361 = vld [vmem:[#allocation4 + $0x20] sm:$0xff]
    %v1362 = vld [vmem:[#allocation4 + $0x28] sm:$0xff]
    %v1363 = vld [vmem:[#allocation4 + $0x30] sm:$0xff]
    %v1364 = vld [vmem:[#allocation4 + $0x38] sm:$0xff]
    %v1365 = vld [vmem:[#allocation4 + $0x40] sm:$0xff]
    %v1366 = vld [vmem:[#allocation4 + $0x48] sm:$0xff]
    %v1367 = vld [vmem:[#allocation4 + $0x50] sm:$0xff]
    %v1368 = vld [vmem:[#allocation4 + $0x58] sm:$0xff]
    %v1369 = vld [vmem:[#allocation4 + $0x60] sm:$0xff]
    %v1370 = vld [vmem:[#allocation4 + $0x68] sm:$0xff]
    %v1371 = vld [vmem:[#allocation4 + $0x70] sm:$0xff]
    %v1372 = vld [vmem:[#allocation4 + $0x78] sm:$0xff]
    %v1373 = vld [vmem:[#allocation4 + $0x80] sm:$0xff]
    %v1374 = vld [vmem:[#allocation4 + $0x88] sm:$0xff]
    %v1375 = vld [vmem:[#allocation4 + $0x90] sm:$0xff]
    %v1376 = vld [vmem:[#allocation4 + $0x98] sm:$0xff]
    %v1377 = vld [vmem:[#allocation4 + $0xa0] sm:$0xff]
    %v1378 = vld [vmem:[#allocation4 + $0xa8] sm:$0xff]
    %v1379 = vld [vmem:[#allocation4 + $0xb0] sm:$0xff]
    %v1380 = vld [vmem:[#allocation4 + $0xb8] sm:$0xff]
    %v1381 = vld [vmem:[#allocation4 + $0xc0] sm:$0xff]
    %v1382 = vld [vmem:[#allocation4 + $0xc8] sm:$0xff]
    %v1383 = vld [vmem:[#allocation4 + $0xd0] sm:$0xff]
    %v1384 = vld [vmem:[#allocation4 + $0xd8] sm:$0xff]
    %v1385 = vld [vmem:[#allocation4 + $0xe0] sm:$0xff]
    %v1386 = vld [vmem:[#allocation4 + $0xe8] sm:$0xff]
    %v1387 = vld [vmem:[#allocation4 + $0xf0] sm:$0xff]
    %v1388 = vld [vmem:[#allocation4 + $0xf8] sm:$0xff]
    %v1389 = vld [vmem:[#allocation4 + $0x100] sm:$0xff]
    %v1390 = vld [vmem:[#allocation4 + $0x108] sm:$0xff]
    %v1391 = vld [vmem:[#allocation4 + $0x110] sm:$0xff]
    %v1392 = vld [vmem:[#allocation4 + $0x118] sm:$0xff]
    %v1393 = vld [vmem:[#allocation4 + $0x120] sm:$0xff]
    %v1394 = vld [vmem:[#allocation4 + $0x128] sm:$0xff]
    %v1395 = vld [vmem:[#allocation4 + $0x130] sm:$0xff]
    %v1396 = vld [vmem:[#allocation4 + $0x138] sm:$0xff]
    %v1397 = vld [vmem:[#allocation4 + $0x140] sm:$0xff]
    %v1398 = vld [vmem:[#allocation4 + $0x148] sm:$0xff]
    %v1399 = vld [vmem:[#allocation4 + $0x150] sm:$0xff]
    %v1400 = vld [vmem:[#allocation4 + $0x158] sm:$0xff]
    %v1401 = vld [vmem:[#allocation4 + $0x160] sm:$0xff]
    %v1402 = vld [vmem:[#allocation4 + $0x168] sm:$0xff]
    %v1403 = vld [vmem:[#allocation4 + $0x170] sm:$0xff]
    %v1404 = vld [vmem:[#allocation4 + $0x178] sm:$0xff]
    %v1405 = vld [vmem:[#allocation4 + $0x180] sm:$0xff]
    %v1406 = vld [vmem:[#allocation4 + $0x188] sm:$0xff]
    %v1407 = vld [vmem:[#allocation4 + $0x190] sm:$0xff]
    %v1408 = vld [vmem:[#allocation4 + $0x198] sm:$0xff]
    %v1409 = vld [vmem:[#allocation4 + $0x1a0] sm:$0xff]
    %v1410 = vld [vmem:[#allocation4 + $0x1a8] sm:$0xff]
    %v1411 = vld [vmem:[#allocation4 + $0x1b0] sm:$0xff]
    %v1412 = vld [vmem:[#allocation4 + $0x1b8] sm:$0xff]
    %v1413 = vld [vmem:[#allocation4 + $0x1c0] sm:$0xff]
    %v1414 = vld [vmem:[#allocation4 + $0x1c8] sm:$0xff]
    %v1415 = vld [vmem:[#allocation4 + $0x1d0] sm:$0xff]
    %v1416 = vld [vmem:[#allocation4 + $0x1d8] sm:$0xff]
    %v1417 = vld [vmem:[#allocation4 + $0x1e0] sm:$0xff]
    %v1418 = vld [vmem:[#allocation4 + $0x1e8] sm:$0xff]
    %v1419 = vld [vmem:[#allocation4 + $0x1f0] sm:$0xff]
    %v1420 = vld [vmem:[#allocation4 + $0x1f8] sm:$0xff]
    %v1421 = vld [vmem:[%s4] sm:$0x3]
    %v1423 = vlaneseq
    %v1424 = vshrl.u32 %v1423, 7
    %v1425 = vsub.s32 0, %v1424
    %v1426 = vrot.slane %v1421, %v1425
    %v1427 = vlaneseq
    %v1428 = vshrl.u32 %v1427, 7
    %v1429 = vsub.s32 1, %v1428
    %v1430 = vrot.slane %v1421, %v1429
    %v1497 = vunpack.c.l.b16 %v1357
    %v1498 = vunpack.c.h.b16 %v1357
    %v1499 = vunpack.c.l.b16 %v1358
    %v1500 = vunpack.c.h.b16 %v1358
    %v1501 = vunpack.c.l.b16 %v1359
    %v1502 = vunpack.c.h.b16 %v1359
    %v1503 = vunpack.c.l.b16 %v1360
    %v1504 = vunpack.c.h.b16 %v1360
    %v1505 = vunpack.c.l.b16 %v1361
    %v1506 = vunpack.c.h.b16 %v1361
    %v1507 = vunpack.c.l.b16 %v1362
    %v1508 = vunpack.c.h.b16 %v1362
    %v1509 = vunpack.c.l.b16 %v1363
    %v1510 = vunpack.c.h.b16 %v1363
    %v1511 = vunpack.c.l.b16 %v1364
    %v1512 = vunpack.c.h.b16 %v1364
    %v1513 = vunpack.c.l.b16 %v1365
    %v1514 = vunpack.c.h.b16 %v1365
    %v1515 = vunpack.c.l.b16 %v1366
    %v1516 = vunpack.c.h.b16 %v1366
    %v1517 = vunpack.c.l.b16 %v1367
    %v1518 = vunpack.c.h.b16 %v1367
    %v1519 = vunpack.c.l.b16 %v1368
    %v1520 = vunpack.c.h.b16 %v1368
    %v1521 = vunpack.c.l.b16 %v1369
    %v1522 = vunpack.c.h.b16 %v1369
    %v1523 = vunpack.c.l.b16 %v1370
    %v1524 = vunpack.c.h.b16 %v1370
    %v1525 = vunpack.c.l.b16 %v1371
    %v1526 = vunpack.c.h.b16 %v1371
    %v1527 = vunpack.c.l.b16 %v1372
    %v1528 = vunpack.c.h.b16 %v1372
    %v1529 = vunpack.c.l.b16 %v1373
    %v1530 = vunpack.c.h.b16 %v1373
    %v1531 = vunpack.c.l.b16 %v1374
    %v1532 = vunpack.c.h.b16 %v1374
    %v1533 = vunpack.c.l.b16 %v1375
    %v1534 = vunpack.c.h.b16 %v1375
    %v1535 = vunpack.c.l.b16 %v1376
    %v1536 = vunpack.c.h.b16 %v1376
    %v1537 = vunpack.c.l.b16 %v1377
    %v1538 = vunpack.c.h.b16 %v1377
    %v1539 = vunpack.c.l.b16 %v1378
    %v1540 = vunpack.c.h.b16 %v1378
    %v1541 = vunpack.c.l.b16 %v1379
    %v1542 = vunpack.c.h.b16 %v1379
    %v1543 = vunpack.c.l.b16 %v1380
    %v1544 = vunpack.c.h.b16 %v1380
    %v1545 = vunpack.c.l.b16 %v1381
    %v1546 = vunpack.c.h.b16 %v1381
    %v1547 = vunpack.c.l.b16 %v1382
    %v1548 = vunpack.c.h.b16 %v1382
    %v1549 = vunpack.c.l.b16 %v1383
    %v1550 = vunpack.c.h.b16 %v1383
    %v1551 = vunpack.c.l.b16 %v1384
    %v1552 = vunpack.c.h.b16 %v1384
    %v1553 = vunpack.c.l.b16 %v1385
    %v1554 = vunpack.c.h.b16 %v1385
    %v1555 = vunpack.c.l.b16 %v1386
    %v1556 = vunpack.c.h.b16 %v1386
    %v1557 = vunpack.c.l.b16 %v1387
    %v1558 = vunpack.c.h.b16 %v1387
    %v1559 = vunpack.c.l.b16 %v1388
    %v1560 = vunpack.c.h.b16 %v1388
    %v1561 = vunpack.c.l.b16 %v1389
    %v1562 = vunpack.c.h.b16 %v1389
    %v1563 = vunpack.c.l.b16 %v1390
    %v1564 = vunpack.c.h.b16 %v1390
    %v1565 = vunpack.c.l.b16 %v1391
    %v1566 = vunpack.c.h.b16 %v1391
    %v1567 = vunpack.c.l.b16 %v1392
    %v1568 = vunpack.c.h.b16 %v1392
    %v1569 = vunpack.c.l.b16 %v1393
    %v1570 = vunpack.c.h.b16 %v1393
    %v1571 = vunpack.c.l.b16 %v1394
    %v1572 = vunpack.c.h.b16 %v1394
    %v1573 = vunpack.c.l.b16 %v1395
    %v1574 = vunpack.c.h.b16 %v1395
    %v1575 = vunpack.c.l.b16 %v1396
    %v1576 = vunpack.c.h.b16 %v1396
    %v1577 = vunpack.c.l.b16 %v1397
    %v1578 = vunpack.c.h.b16 %v1397
    %v1579 = vunpack.c.l.b16 %v1398
    %v1580 = vunpack.c.h.b16 %v1398
    %v1581 = vunpack.c.l.b16 %v1399
    %v1582 = vunpack.c.h.b16 %v1399
    %v1583 = vunpack.c.l.b16 %v1400
    %v1584 = vunpack.c.h.b16 %v1400
    %v1585 = vunpack.c.l.b16 %v1401
    %v1586 = vunpack.c.h.b16 %v1401
    %v1587 = vunpack.c.l.b16 %v1402
    %v1588 = vunpack.c.h.b16 %v1402
    %v1589 = vunpack.c.l.b16 %v1403
    %v1590 = vunpack.c.h.b16 %v1403
    %v1591 = vunpack.c.l.b16 %v1404
    %v1592 = vunpack.c.h.b16 %v1404
    %v1593 = vunpack.c.l.b16 %v1405
    %v1594 = vunpack.c.h.b16 %v1405
    %v1595 = vunpack.c.l.b16 %v1406
    %v1596 = vunpack.c.h.b16 %v1406
    %v1597 = vunpack.c.l.b16 %v1407
    %v1598 = vunpack.c.h.b16 %v1407
    %v1599 = vunpack.c.l.b16 %v1408
    %v1600 = vunpack.c.h.b16 %v1408
    %v1601 = vunpack.c.l.b16 %v1409
    %v1602 = vunpack.c.h.b16 %v1409
    %v1603 = vunpack.c.l.b16 %v1410
    %v1604 = vunpack.c.h.b16 %v1410
    %v1605 = vunpack.c.l.b16 %v1411
    %v1606 = vunpack.c.h.b16 %v1411
    %v1607 = vunpack.c.l.b16 %v1412
    %v1608 = vunpack.c.h.b16 %v1412
    %v1609 = vunpack.c.l.b16 %v1413
    %v1610 = vunpack.c.h.b16 %v1413
    %v1611 = vunpack.c.l.b16 %v1414
    %v1612 = vunpack.c.h.b16 %v1414
    %v1613 = vunpack.c.l.b16 %v1415
    %v1614 = vunpack.c.h.b16 %v1415
    %v1615 = vunpack.c.l.b16 %v1416
    %v1616 = vunpack.c.h.b16 %v1416
    %v1617 = vunpack.c.l.b16 %v1417
    %v1618 = vunpack.c.h.b16 %v1417
    %v1619 = vunpack.c.l.b16 %v1418
    %v1620 = vunpack.c.h.b16 %v1418
    %v1621 = vunpack.c.l.b16 %v1419
    %v1622 = vunpack.c.h.b16 %v1419
    %v1623 = vunpack.c.l.b16 %v1420
    %v1624 = vunpack.c.h.b16 %v1420
    %v1625 = vpack.c.b16 %v1499, %v1497
    %v1626 = vpack.c.b16 %v1500, %v1498
    %v1627 = vpack.c.b16 %v1503, %v1501
    %v1628 = vpack.c.b16 %v1504, %v1502
    %v1629 = vpack.c.b16 %v1507, %v1505
    %v1630 = vpack.c.b16 %v1508, %v1506
    %v1631 = vpack.c.b16 %v1511, %v1509
    %v1632 = vpack.c.b16 %v1512, %v1510
    %v1633 = vpack.c.b16 %v1515, %v1513
    %v1634 = vpack.c.b16 %v1516, %v1514
    %v1635 = vpack.c.b16 %v1519, %v1517
    %v1636 = vpack.c.b16 %v1520, %v1518
    %v1637 = vpack.c.b16 %v1523, %v1521
    %v1638 = vpack.c.b16 %v1524, %v1522
    %v1639 = vpack.c.b16 %v1527, %v1525
    %v1640 = vpack.c.b16 %v1528, %v1526
    %v1641 = vpack.c.b16 %v1531, %v1529
    %v1642 = vpack.c.b16 %v1532, %v1530
    %v1643 = vpack.c.b16 %v1535, %v1533
    %v1644 = vpack.c.b16 %v1536, %v1534
    %v1645 = vpack.c.b16 %v1539, %v1537
    %v1646 = vpack.c.b16 %v1540, %v1538
    %v1647 = vpack.c.b16 %v1543, %v1541
    %v1648 = vpack.c.b16 %v1544, %v1542
    %v1649 = vpack.c.b16 %v1547, %v1545
    %v1650 = vpack.c.b16 %v1548, %v1546
    %v1651 = vpack.c.b16 %v1551, %v1549
    %v1652 = vpack.c.b16 %v1552, %v1550
    %v1653 = vpack.c.b16 %v1555, %v1553
    %v1654 = vpack.c.b16 %v1556, %v1554
    %v1655 = vpack.c.b16 %v1559, %v1557
    %v1656 = vpack.c.b16 %v1560, %v1558
    %v1657 = vpack.c.b16 %v1563, %v1561
    %v1658 = vpack.c.b16 %v1564, %v1562
    %v1659 = vpack.c.b16 %v1567, %v1565
    %v1660 = vpack.c.b16 %v1568, %v1566
    %v1661 = vpack.c.b16 %v1571, %v1569
    %v1662 = vpack.c.b16 %v1572, %v1570
    %v1663 = vpack.c.b16 %v1575, %v1573
    %v1664 = vpack.c.b16 %v1576, %v1574
    %v1665 = vpack.c.b16 %v1579, %v1577
    %v1666 = vpack.c.b16 %v1580, %v1578
    %v1667 = vpack.c.b16 %v1583, %v1581
    %v1668 = vpack.c.b16 %v1584, %v1582
    %v1669 = vpack.c.b16 %v1587, %v1585
    %v1670 = vpack.c.b16 %v1588, %v1586
    %v1671 = vpack.c.b16 %v1591, %v1589
    %v1672 = vpack.c.b16 %v1592, %v1590
    %v1673 = vpack.c.b16 %v1595, %v1593
    %v1674 = vpack.c.b16 %v1596, %v1594
    %v1675 = vpack.c.b16 %v1599, %v1597
    %v1676 = vpack.c.b16 %v1600, %v1598
    %v1677 = vpack.c.b16 %v1603, %v1601
    %v1678 = vpack.c.b16 %v1604, %v1602
    %v1679 = vpack.c.b16 %v1607, %v1605
    %v1680 = vpack.c.b16 %v1608, %v1606
    %v1681 = vpack.c.b16 %v1611, %v1609
    %v1682 = vpack.c.b16 %v1612, %v1610
    %v1683 = vpack.c.b16 %v1615, %v1613
    %v1684 = vpack.c.b16 %v1616, %v1614
    %v1685 = vpack.c.b16 %v1619, %v1617
    %v1686 = vpack.c.b16 %v1620, %v1618
    %v1687 = vpack.c.b16 %v1623, %v1621
    %v1688 = vpack.c.b16 %v1624, %v1622
    %1753 = vmatprep.subr.bf16.mxu0 %v1626
    %1754 = vmatpush1.bf16.msra.mxu0 %v1625
    %1755 = vmatprep.subr.bf16.mxu0 %v1628
    %1756 = vmatpush1.bf16.msra.mxu0 %v1627
    %1757 = vmatprep.subr.bf16.mxu0 %v1630
    %1758 = vmatpush1.bf16.msra.mxu0 %v1629
    %1759 = vmatprep.subr.bf16.mxu0 %v1632
    %1760 = vmatpush1.bf16.msra.mxu0 %v1631
    %1761 = vmatprep.subr.bf16.mxu0 %v1634
    %1762 = vmatpush1.bf16.msra.mxu0 %v1633
    %1763 = vmatprep.subr.bf16.mxu0 %v1636
    %1764 = vmatpush1.bf16.msra.mxu0 %v1635
    %1765 = vmatprep.subr.bf16.mxu0 %v1638
    %1766 = vmatpush1.bf16.msra.mxu0 %v1637
    %1767 = vmatprep.subr.bf16.mxu0 %v1640
    %1768 = vmatpush1.bf16.msra.mxu0 %v1639
    %1769 = vmatprep.subr.bf16.mxu0 %v1642
    %1770 = vmatpush1.bf16.msra.mxu0 %v1641
    %1771 = vmatprep.subr.bf16.mxu0 %v1644
    %1772 = vmatpush1.bf16.msra.mxu0 %v1643
    %1773 = vmatprep.subr.bf16.mxu0 %v1646
    %1774 = vmatpush1.bf16.msra.mxu0 %v1645
    %1775 = vmatprep.subr.bf16.mxu0 %v1648
    %1776 = vmatpush1.bf16.msra.mxu0 %v1647
    %1777 = vmatprep.subr.bf16.mxu0 %v1650
    %1778 = vmatpush1.bf16.msra.mxu0 %v1649
    %1779 = vmatprep.subr.bf16.mxu0 %v1652
    %1780 = vmatpush1.bf16.msra.mxu0 %v1651
    %1781 = vmatprep.subr.bf16.mxu0 %v1654
    %1782 = vmatpush1.bf16.msra.mxu0 %v1653
    %1783 = vmatprep.subr.bf16.mxu0 %v1656
    %1784 = vmatpush1.bf16.msra.mxu0 %v1655
    %1785 = vmatprep.mubr.bf16.mxu0 %v1354
    %1786 = vmatmul.mubr.bf16.gmra.mrb[0].mxu0 %v1353
    %v1787 = vpop.f32.mrb[0].mxu0
    %v1788 = vadd.f32 %v1426, %v1787
    %v1789 = vpop.f32.mrb[0].mxu0
    %v1790 = vadd.f32 %v1430, %v1789
    %v1791 = vpop.f32.mrb[0].mxu0
    %v1792 = vpop.f32.mrb[0].mxu0
    %1793 = vdwg.mxu0
    %1794 = vmatprep.subr.bf16.mxu0 %v1658
    %1795 = vmatpush1.bf16.msra.mxu0 %v1657
    %1796 = vmatprep.subr.bf16.mxu0 %v1660
    %1797 = vmatpush1.bf16.msra.mxu0 %v1659
    %1798 = vmatprep.subr.bf16.mxu0 %v1662
    %1799 = vmatpush1.bf16.msra.mxu0 %v1661
    %1800 = vmatprep.subr.bf16.mxu0 %v1664
    %1801 = vmatpush1.bf16.msra.mxu0 %v1663
    %1802 = vmatprep.subr.bf16.mxu0 %v1666
    %1803 = vmatpush1.bf16.msra.mxu0 %v1665
    %1804 = vmatprep.subr.bf16.mxu0 %v1668
    %1805 = vmatpush1.bf16.msra.mxu0 %v1667
    %1806 = vmatprep.subr.bf16.mxu0 %v1670
    %1807 = vmatpush1.bf16.msra.mxu0 %v1669
    %1808 = vmatprep.subr.bf16.mxu0 %v1672
    %1809 = vmatpush1.bf16.msra.mxu0 %v1671
    %1810 = vmatprep.subr.bf16.mxu0 %v1674
    %1811 = vmatpush1.bf16.msra.mxu0 %v1673
    %1812 = vmatprep.subr.bf16.mxu0 %v1676
    %1813 = vmatpush1.bf16.msra.mxu0 %v1675
    %1814 = vmatprep.subr.bf16.mxu0 %v1678
    %1815 = vmatpush1.bf16.msra.mxu0 %v1677
    %1816 = vmatprep.subr.bf16.mxu0 %v1680
    %1817 = vmatpush1.bf16.msra.mxu0 %v1679
    %1818 = vmatprep.subr.bf16.mxu0 %v1682
    %1819 = vmatpush1.bf16.msra.mxu0 %v1681
    %1820 = vmatprep.subr.bf16.mxu0 %v1684
    %1821 = vmatpush1.bf16.msra.mxu0 %v1683
    %1822 = vmatprep.subr.bf16.mxu0 %v1686
    %1823 = vmatpush1.bf16.msra.mxu0 %v1685
    %1824 = vmatprep.subr.bf16.mxu0 %v1688
    %1825 = vmatpush1.bf16.msra.mxu0 %v1687
    %1826 = vmatprep.mubr.bf16.mxu0 %v1356
    %1827 = vmatmul.mubr.bf16.gmra.mrb[0].mxu0 %v1355
    %v1828 = vpop.f32.mrb[0].mxu0
    %v1829 = vadd.f32 %v1788, %v1828
    %v1830 = vpop.f32.mrb[0].mxu0
    %v1831 = vadd.f32 %v1790, %v1830
    %v1832 = vpop.f32.mrb[0].mxu0
    %v1833 = vpop.f32.mrb[0].mxu0
    %1834 = vdwg.mxu0
    %v1835 = vmax.f32 %v1829, 0.0
    %v1836 = vmul.f32 %v1831, 0.5
    %v1837 = vtanh.pop %v1836
    %v1838 = vadd.f32 %v1837, 1.0
    %v1839 = vmul.f32 %v1838, 0.5
    %v1840 = vpack.c.bf16 %v1835, %v1835
    %v1841 = vpack.c.bf16 %v1839, %v1839
    %v1842 = vld [vmem:[#allocation6] sm:$0xff]
    %v1843 = vld [vmem:[#allocation6 + $0x8] sm:$0xff]
    %v1844 = vld [vmem:[#allocation6 + $0x10] sm:$0xff]
    %v1845 = vld [vmem:[#allocation6 + $0x18] sm:$0xff]
    %v1846 = vld [vmem:[#allocation6 + $0x20] sm:$0xff]
    %v1847 = vld [vmem:[#allocation6 + $0x28] sm:$0xff]
    %v1848 = vld [vmem:[#allocation6 + $0x30] sm:$0xff]
    %v1849 = vld [vmem:[#allocation6 + $0x38] sm:$0xff]
    %v1850 = vld [vmem:[#allocation6 + $0x40] sm:$0xff]
    %v1851 = vld [vmem:[#allocation6 + $0x48] sm:$0xff]
    %v1852 = vld [vmem:[#allocation6 + $0x50] sm:$0xff]
    %v1853 = vld [vmem:[#allocation6 + $0x58] sm:$0xff]
    %v1854 = vld [vmem:[#allocation6 + $0x60] sm:$0xff]
    %v1855 = vld [vmem:[#allocation6 + $0x68] sm:$0xff]
    %v1856 = vld [vmem:[#allocation6 + $0x70] sm:$0xff]
    %v1857 = vld [vmem:[#allocation6 + $0x78] sm:$0xff]
    %v1858 = vld [vmem:[#allocation6 + $0x80] sm:$0xff]
    %v1859 = vld [vmem:[#allocation6 + $0x88] sm:$0xff]
    %v1860 = vld [vmem:[#allocation6 + $0x90] sm:$0xff]
    %v1861 = vld [vmem:[#allocation6 + $0x98] sm:$0xff]
    %v1862 = vld [vmem:[#allocation6 + $0xa0] sm:$0xff]
    %v1863 = vld [vmem:[#allocation6 + $0xa8] sm:$0xff]
    %v1864 = vld [vmem:[#allocation6 + $0xb0] sm:$0xff]
    %v1865 = vld [vmem:[#allocation6 + $0xb8] sm:$0xff]
    %v1866 = vld [vmem:[#allocation6 + $0xc0] sm:$0xff]
    %v1867 = vld [vmem:[#allocation6 + $0xc8] sm:$0xff]
    %v1868 = vld [vmem:[#allocation6 + $0xd0] sm:$0xff]
    %v1869 = vld [vmem:[#allocation6 + $0xd8] sm:$0xff]
    %v1870 = vld [vmem:[#allocation6 + $0xe0] sm:$0xff]
    %v1871 = vld [vmem:[#allocation6 + $0xe8] sm:$0xff]
    %v1872 = vld [vmem:[#allocation6 + $0xf0] sm:$0xff]
    %v1873 = vld [vmem:[#allocation6 + $0xf8] sm:$0xff]
    %v1874 = vld [vmem:[%s6] sm:$0x3]
    %v1876 = vlaneseq
    %v1877 = vshrl.u32 %v1876, 7
    %v1878 = vsub.s32 0, %v1877
    %v1879 = vrot.slane %v1874, %v1878
    %v1880 = vlaneseq
    %v1881 = vshrl.u32 %v1880, 7
    %v1882 = vsub.s32 1, %v1881
    %v1883 = vrot.slane %v1874, %v1882
    %v1918 = vunpack.c.l.b16 %v1842
    %v1919 = vunpack.c.h.b16 %v1842
    %v1920 = vunpack.c.l.b16 %v1843
    %v1921 = vunpack.c.h.b16 %v1843
    %v1922 = vunpack.c.l.b16 %v1844
    %v1923 = vunpack.c.h.b16 %v1844
    %v1924 = vunpack.c.l.b16 %v1845
    %v1925 = vunpack.c.h.b16 %v1845
    %v1926 = vunpack.c.l.b16 %v1846
    %v1927 = vunpack.c.h.b16 %v1846
    %v1928 = vunpack.c.l.b16 %v1847
    %v1929 = vunpack.c.h.b16 %v1847
    %v1930 = vunpack.c.l.b16 %v1848
    %v1931 = vunpack.c.h.b16 %v1848
    %v1932 = vunpack.c.l.b16 %v1849
    %v1933 = vunpack.c.h.b16 %v1849
    %v1934 = vunpack.c.l.b16 %v1850
    %v1935 = vunpack.c.h.b16 %v1850
    %v1936 = vunpack.c.l.b16 %v1851
    %v1937 = vunpack.c.h.b16 %v1851
    %v1938 = vunpack.c.l.b16 %v1852
    %v1939 = vunpack.c.h.b16 %v1852
    %v1940 = vunpack.c.l.b16 %v1853
    %v1941 = vunpack.c.h.b16 %v1853
    %v1942 = vunpack.c.l.b16 %v1854
    %v1943 = vunpack.c.h.b16 %v1854
    %v1944 = vunpack.c.l.b16 %v1855
    %v1945 = vunpack.c.h.b16 %v1855
    %v1946 = vunpack.c.l.b16 %v1856
    %v1947 = vunpack.c.h.b16 %v1856
    %v1948 = vunpack.c.l.b16 %v1857
    %v1949 = vunpack.c.h.b16 %v1857
    %v1950 = vunpack.c.l.b16 %v1858
    %v1951 = vunpack.c.h.b16 %v1858
    %v1952 = vunpack.c.l.b16 %v1859
    %v1953 = vunpack.c.h.b16 %v1859
    %v1954 = vunpack.c.l.b16 %v1860
    %v1955 = vunpack.c.h.b16 %v1860
    %v1956 = vunpack.c.l.b16 %v1861
    %v1957 = vunpack.c.h.b16 %v1861
    %v1958 = vunpack.c.l.b16 %v1862
    %v1959 = vunpack.c.h.b16 %v1862
    %v1960 = vunpack.c.l.b16 %v1863
    %v1961 = vunpack.c.h.b16 %v1863
    %v1962 = vunpack.c.l.b16 %v1864
    %v1963 = vunpack.c.h.b16 %v1864
    %v1964 = vunpack.c.l.b16 %v1865
    %v1965 = vunpack.c.h.b16 %v1865
    %v1966 = vunpack.c.l.b16 %v1866
    %v1967 = vunpack.c.h.b16 %v1866
    %v1968 = vunpack.c.l.b16 %v1867
    %v1969 = vunpack.c.h.b16 %v1867
    %v1970 = vunpack.c.l.b16 %v1868
    %v1971 = vunpack.c.h.b16 %v1868
    %v1972 = vunpack.c.l.b16 %v1869
    %v1973 = vunpack.c.h.b16 %v1869
    %v1974 = vunpack.c.l.b16 %v1870
    %v1975 = vunpack.c.h.b16 %v1870
    %v1976 = vunpack.c.l.b16 %v1871
    %v1977 = vunpack.c.h.b16 %v1871
    %v1978 = vunpack.c.l.b16 %v1872
    %v1979 = vunpack.c.h.b16 %v1872
    %v1980 = vunpack.c.l.b16 %v1873
    %v1981 = vunpack.c.h.b16 %v1873
    %v1982 = vpack.c.b16 %v1920, %v1918
    %v1983 = vpack.c.b16 %v1921, %v1919
    %v1984 = vpack.c.b16 %v1924, %v1922
    %v1985 = vpack.c.b16 %v1925, %v1923
    %v1986 = vpack.c.b16 %v1928, %v1926
    %v1987 = vpack.c.b16 %v1929, %v1927
    %v1988 = vpack.c.b16 %v1932, %v1930
    %v1989 = vpack.c.b16 %v1933, %v1931
    %v1990 = vpack.c.b16 %v1936, %v1934
    %v1991 = vpack.c.b16 %v1937, %v1935
    %v1992 = vpack.c.b16 %v1940, %v1938
    %v1993 = vpack.c.b16 %v1941, %v1939
    %v1994 = vpack.c.b16 %v1944, %v1942
    %v1995 = vpack.c.b16 %v1945, %v1943
    %v1996 = vpack.c.b16 %v1948, %v1946
    %v1997 = vpack.c.b16 %v1949, %v1947
    %v1998 = vpack.c.b16 %v1952, %v1950
    %v1999 = vpack.c.b16 %v1953, %v1951
    %v2000 = vpack.c.b16 %v1956, %v1954
    %v2001 = vpack.c.b16 %v1957, %v1955
    %v2002 = vpack.c.b16 %v1960, %v1958
    %v2003 = vpack.c.b16 %v1961, %v1959
    %v2004 = vpack.c.b16 %v1964, %v1962
    %v2005 = vpack.c.b16 %v1965, %v1963
    %v2006 = vpack.c.b16 %v1968, %v1966
    %v2007 = vpack.c.b16 %v1969, %v1967
    %v2008 = vpack.c.b16 %v1972, %v1970
    %v2009 = vpack.c.b16 %v1973, %v1971
    %v2010 = vpack.c.b16 %v1976, %v1974
    %v2011 = vpack.c.b16 %v1977, %v1975
    %v2012 = vpack.c.b16 %v1980, %v1978
    %v2013 = vpack.c.b16 %v1981, %v1979
    %2046 = vmatprep.subr.bf16.mxu0 %v1983
    %2047 = vmatpush1.bf16.msra.mxu0 %v1982
    %2048 = vmatprep.subr.bf16.mxu0 %v1985
    %2049 = vmatpush1.bf16.msra.mxu0 %v1984
    %2050 = vmatprep.subr.bf16.mxu0 %v1987
    %2051 = vmatpush1.bf16.msra.mxu0 %v1986
    %2052 = vmatprep.subr.bf16.mxu0 %v1989
    %2053 = vmatpush1.bf16.msra.mxu0 %v1988
    %2054 = vmatprep.subr.bf16.mxu0 %v1991
    %2055 = vmatpush1.bf16.msra.mxu0 %v1990
    %2056 = vmatprep.subr.bf16.mxu0 %v1993
    %2057 = vmatpush1.bf16.msra.mxu0 %v1992
    %2058 = vmatprep.subr.bf16.mxu0 %v1995
    %2059 = vmatpush1.bf16.msra.mxu0 %v1994
    %2060 = vmatprep.subr.bf16.mxu0 %v1997
    %2061 = vmatpush1.bf16.msra.mxu0 %v1996
    %2062 = vmatprep.subr.bf16.mxu0 %v1999
    %2063 = vmatpush1.bf16.msra.mxu0 %v1998
    %2064 = vmatprep.subr.bf16.mxu0 %v2001
    %2065 = vmatpush1.bf16.msra.mxu0 %v2000
    %2066 = vmatprep.subr.bf16.mxu0 %v2003
    %2067 = vmatpush1.bf16.msra.mxu0 %v2002
    %2068 = vmatprep.subr.bf16.mxu0 %v2005
    %2069 = vmatpush1.bf16.msra.mxu0 %v2004
    %2070 = vmatprep.subr.bf16.mxu0 %v2007
    %2071 = vmatpush1.bf16.msra.mxu0 %v2006
    %2072 = vmatprep.subr.bf16.mxu0 %v2009
    %2073 = vmatpush1.bf16.msra.mxu0 %v2008
    %2074 = vmatprep.subr.bf16.mxu0 %v2011
    %2075 = vmatpush1.bf16.msra.mxu0 %v2010
    %2076 = vmatprep.subr.bf16.mxu0 %v2013
    %2077 = vmatpush1.bf16.msra.mxu0 %v2012
    %2078 = vmatprep.mubr.bf16.mxu0 %v1841
    %2079 = vmatmul.mubr.bf16.gmra.mrb[0].mxu0 %v1840
    %v2080 = vpop.f32.mrb[0].mxu0
    %v2081 = vadd.f32 %v1879, %v2080
    %v2082 = vpop.f32.mrb[0].mxu0
    %v2083 = vadd.f32 %v1883, %v2082
    %v2084 = vpop.f32.mrb[0].mxu0
    %v2085 = vpop.f32.mrb[0].mxu0
    %2086 = vdwg.mxu0
    %vm2087 = vcmask 1041408
    %v2088 = vsel %vm2087, %v1338, -inf
    %2089 = vmax.xlane.f32.xlu0 %v2088
    %v2090 = vpop.xlane.xlu0 %2089
    %v2091 = vsub.f32 %v1338, %v2090
    %v2092 = vmul.f32 %v2091, 1.442695
    %v2093 = vpow.pop %v2092
    %v2094 = vsel %vm2087, %v2093, 0.0
    %2095 = vadd.xlane.f32.xlu0 %v2094
    %v2096 = vpop.xlane.xlu0 %2095
    %v2097 = vrcp.pop %v2096
    %v2098 = vmul.f32 %v2093, %v2097
    %2099 = vst [vmem:[%s7] sm:$0x3] %v2098
    %v2100 = vsel %vm2087, %v2081, -inf
    %2101 = vmax.xlane.f32.xlu0 %v2100
    %v2102 = vpop.xlane.xlu0 %2101
    %v2103 = vsub.f32 %v2081, %v2102
    %v2104 = vmul.f32 %v2103, 1.442695
    %v2105 = vpow.pop %v2104
    %v2106 = vsel %vm2087, %v2105, 0.0
    %2107 = vadd.xlane.f32.xlu0 %v2106
    %v2108 = vpop.xlane.xlu0 %2107
    %v2109 = vrcp.pop %v2108
    %v2110 = vmul.f32 %v2105, %v2109
    %2111 = vst [vmem:[%s7 + $0x2] sm:$0x3] %v2110
    %v2112 = vsel %vm2087, %v2083, -inf
    %2113 = vmax.xlane.f32.xlu0 %v2112
    %v2114 = vpop.xlane.xlu0 %2113
    %v2115 = vsub.f32 %v2083, %v2114
    %v2116 = vmul.f32 %v2115, 1.442695
    %v2117 = vpow.pop %v2116
    %v2118 = vsel %vm2087, %v2117, 0.0
    %2119 = vadd.xlane.f32.xlu0 %v2118
    %v2120 = vpop.xlane.xlu0 %2119
    %v2121 = vrcp.pop %v2120
    %v2122 = vmul.f32 %v2117, %v2121
    %2123 = vst [vmem:[%s7 + $0x4] sm:$0x3] %v2122
    // Predicated region
    $region42: #{_all_heads_jit.1} parent=1 // pred_check
      _
    $region43: #{_all_heads_jit.1} parent=1 // pred_check_branch
      %2125 = sbr.rel (0) target = $region45
    $region44: #{_all_heads_jit.1} parent=1 // pred_region
      _
    $region45: #{_all_heads_jit.1} parent=1 // pred_fallthru
      _
    // Predicated region
    $region46: #{_all_heads_jit.1} parent=1 // pred_check
      _
    $region47: #{_all_heads_jit.1} parent=1 // pred_check_branch
      %2127 = sbr.rel (0) target = $region49
    $region48: #{_all_heads_jit.1} parent=1 // pred_region
      _
    $region49: #{_all_heads_jit.1} parent=1 // pred_fallthru
      _
    %2128 = vsyncpa [#allocation3], 1
    %2129 = vsyncpa [#allocation5], 1

// kernel: _all_heads_jit.1
$region0: #{_all_heads_jit.1}
  #allocation0 [shape = 'u32[]', space=smem, size = 0x4, offset = 0x4, fixed_abs, tag = 'smem constant byte address 0x4 - core index']
  #allocation1 [shape = 'u32[144,128]{1,0:T(1,128)}', space=vmem, size = 0x12000, scoped, tag = 'internal scratch']
  %s0 = inlined_call_operand.vmem [shape: bf16[2,6144], index: 0, kind: input, shape index: {}]
  %s1 = inlined_call_operand.hbm [shape: bf16[768,384], index: 1, kind: input, shape index: {}]
  %s2 = inlined_call_operand.vmem [shape: f32[1,384], index: 2, kind: input, shape index: {}]
  %s3 = inlined_call_operand.hbm [shape: bf16[512,256], index: 3, kind: input, shape index: {}]
  %s4 = inlined_call_operand.vmem [shape: f32[1,256], index: 4, kind: input, shape index: {}]
  %s5 = inlined_call_operand.hbm [shape: bf16[256,256], index: 5, kind: input, shape index: {}]
  %s6 = inlined_call_operand.vmem [shape: f32[1,256], index: 6, kind: input, shape index: {}]
  %s7 = inlined_call_operand.vmem [shape: f32[2,384], index: 7, kind: output, shape index: {}]
  %s8 = sld [smem:[#allocation0]]
  $region50: #{_all_heads_jit.1} parent=0
    _
  %s10 = ssub.s32 1, %s8
  %s11 = scalar_select 0, %s10, %s8
  $region1: #{_all_heads_jit.1} parent=0
    #allocation2 [shape = 'u8[589824]{0}', space=vmem, size = 0x90000, scoped, tag = 'input window, operand 1, single buffered']
    #allocation3 [shape = 's32[1]{0}', space=sflag, size = 0x4, scoped, tag = 'scoped memory for _all_heads_jit.1']
    #allocation4 [shape = 'u8[262144]{0}', space=vmem, size = 0x40000, scoped, tag = 'input window, operand 3, single buffered']
    #allocation5 [shape = 's32[1]{0}', space=sflag, size = 0x4, scoped, tag = 'scoped memory for _all_heads_jit.1']
    #allocation6 [shape = 'u8[131072]{0}', space=vmem, size = 0x20000, scoped, tag = 'input window, operand 5, single buffered']
    %12 = vsyncpa [#allocation3], 0
    %13 = vsyncpa [#allocation5], 0
    // Predicated region
    $region2: #{_all_heads_jit.1} parent=1 // pred_check
      _
    $region3: #{_all_heads_jit.1} parent=1 // pred_check_branch
      %15 = sbr.rel (0) target = $region5
    $region4: #{_all_heads_jit.1} parent=1 // pred_region
      _
    $region5: #{_all_heads_jit.1} parent=1 // pred_fallthru
      _
    // Predicated region
    $region6: #{_all_heads_jit.1} parent=1 // pred_check
      _
    $region7: #{_all_heads_jit.1} parent=1 // pred_check_branch
      %17 = sbr.rel (0) target = $region9
    $region8: #{_all_heads_jit.1} parent=1 // pred_region
      %s19 = ssub.s32 18432, 18432
      %20 = vsyncadd [#allocation3], %s19
      %s21 = sshll.u32 [#allocation2], 4
      %s22 = int_to_ptr.vmem [resolvable:$true] %s21
      %27 = dma.hbm_to_vmem [thread:$0]  %s1, 18432, %s22, [#allocation3], 192, 192, 12
    $region9: #{_all_heads_jit.1} parent=1 // pred_fallthru
      _
    // Predicated region
    $region10: #{_all_heads_jit.1} parent=1 // pred_check
      _
    $region11: #{_all_heads_jit.1} parent=1 // pred_check_branch
      %29 = sbr.rel (0) target = $region13
    $region12: #{_all_heads_jit.1} parent=1 // pred_region
      _
    $region13: #{_all_heads_jit.1} parent=1 // pred_fallthru
      _
    // Predicated region
    $region14: #{_all_heads_jit.1} parent=1 // pred_check
      _
    $region15: #{_all_heads_jit.1} parent=1 // pred_check_branch
      %31 = sbr.rel (0) target = $region17
    $region16: #{_all_heads_jit.1} parent=1 // pred_region
      %s33 = ssub.s32 8192, 8192
      %34 = vsyncadd [#allocation5], %s33
      %s35 = sshll.u32 [#allocation4], 4
      %s36 = int_to_ptr.vmem [resolvable:$true] %s35
      %41 = dma.hbm_to_vmem [thread:$0]  %s3, 8192, %s36, [#allocation5], 128, 128, 8
    $region17: #{_all_heads_jit.1} parent=1 // pred_fallthru
      _
    // Predicated region
    $region18: #{_all_heads_jit.1} parent=1 // pred_check
      _
    $region19: #{_all_heads_jit.1} parent=1 // pred_check_branch
      %43 = sbr.rel (0) target = $region21
    $region20: #{_all_heads_jit.1} parent=1 // pred_region
      _
    $region21: #{_all_heads_jit.1} parent=1 // pred_fallthru
      _
    // Predicated region
    $region22: #{_all_heads_jit.1} parent=1 // pred_check
      _
    $region23: #{_all_heads_jit.1} parent=1 // pred_check_branch
      %45 = sbr.rel (0) target = $region25
    $region24: #{_all_heads_jit.1} parent=1 // pred_region
      %s47 = ssub.s32 4096, 4096
      %48 = vsyncadd [#allocation5], %s47
      %s49 = sshll.u32 [#allocation6], 4
      %s50 = int_to_ptr.vmem [resolvable:$true] %s49
      %55 = dma.hbm_to_vmem [thread:$0]  %s5, 4096, %s50, [#allocation5], 128, 128, 8
    $region25: #{_all_heads_jit.1} parent=1 // pred_fallthru
      _
    // Predicated region
    $region26: #{_all_heads_jit.1} parent=1 // pred_check
      _
    $region27: #{_all_heads_jit.1} parent=1 // pred_check_branch
      %57 = sbr.rel (0) target = $region29
    $region28: #{_all_heads_jit.1} parent=1 // pred_region
      _
    $region29: #{_all_heads_jit.1} parent=1 // pred_fallthru
      _
    // Predicated region
    $region30: #{_all_heads_jit.1} parent=1 // pred_check
      _
    $region31: #{_all_heads_jit.1} parent=1 // pred_check_branch
      %59 = sbr.rel (0) target = $region33
    $region32: #{_all_heads_jit.1} parent=1 // pred_region
      %60 = dma.done [#allocation3], 18432
    $region33: #{_all_heads_jit.1} parent=1 // pred_fallthru
      _
    // Predicated region
    $region34: #{_all_heads_jit.1} parent=1 // pred_check
      _
    $region35: #{_all_heads_jit.1} parent=1 // pred_check_branch
      %62 = sbr.rel (0) target = $region37
    $region36: #{_all_heads_jit.1} parent=1 // pred_region
      %63 = dma.done [#allocation5], 8192
    $region37: #{_all_heads_jit.1} parent=1 // pred_fallthru
      _
    // Predicated region
    $region38: #{_all_heads_jit.1} parent=1 // pred_check
      _
    $region39: #{_all_heads_jit.1} parent=1 // pred_check_branch
      %65 = sbr.rel (0) target = $region41
    $region40: #{_all_heads_jit.1} parent=1 // pred_region
      %66 = dma.done [#allocation5], 4096
    $region41: #{_all_heads_jit.1} parent=1 // pred_fallthru
      _
    %v68 = vld [vmem:[%s0] sm:$0x3f]
    %v69 = vld [vmem:[#allocation2] sm:$0xff]
    %v70 = vld [vmem:[#allocation2 + $0x8] sm:$0xf]
    %v71 = vld [vmem:[#allocation2 + $0xc] sm:$0xff]
    %v72 = vld [vmem:[#allocation2 + $0x14] sm:$0xf]
    %v73 = vld [vmem:[#allocation2 + $0x18] sm:$0xff]
    %v74 = vld [vmem:[#allocation2 + $0x20] sm:$0xf]
    %v75 = vld [vmem:[#allocation2 + $0x24] sm:$0xff]
    %v76 = vld [vmem:[#allocation2 + $0x2c] sm:$0xf]
    %v77 = vld [vmem:[#allocation2 + $0x30] sm:$0xff]
    %v78 = vld [vmem:[#allocation2 + $0x38] sm:$0xf]
    %v79 = vld [vmem:[#allocation2 + $0x3c] sm:$0xff]
    %v80 = vld [vmem:[#allocation2 + $0x44] sm:$0xf]
    %v81 = vld [vmem:[#allocation2 + $0x48] sm:$0xff]
    %v82 = vld [vmem:[#allocation2 + $0x50] sm:$0xf]
    %v83 = vld [vmem:[#allocation2 + $0x54] sm:$0xff]
    %v84 = vld [vmem:[#allocation2 + $0x5c] sm:$0xf]
    %v85 = vld [vmem:[#allocation2 + $0x60] sm:$0xff]
    %v86 = vld [vmem:[#allocation2 + $0x68] sm:$0xf]
    %v87 = vld [vmem:[#allocation2 + $0x6c] sm:$0xff]
    %v88 = vld [vmem:[#allocation2 + $0x74] sm:$0xf]
    %v89 = vld [vmem:[#allocation2 + $0x78] sm:$0xff]
    %v90 = vld [vmem:[#allocation2 + $0x80] sm:$0xf]
    %v91 = vld [vmem:[#allocation2 + $0x84] sm:$0xff]
    %v92 = vld [vmem:[#allocation2 + $0x8c] sm:$0xf]
    %v93 = vld [vmem:[#allocation2 + $0x90] sm:$0xff]
    %v94 = vld [vmem:[#allocation2 + $0x98] sm:$0xf]
    %v95 = vld [vmem:[#allocation2 + $0x9c] sm:$0xff]
    %v96 = vld [vmem:[#allocation2 + $0xa4] sm:$0xf]
    %v97 = vld [vmem:[#allocation2 + $0xa8] sm:$0xff]
    %v98 = vld [vmem:[#allocation2 + $0xb0] sm:$0xf]
    %v99 = vld [vmem:[#allocation2 + $0xb4] sm:$0xff]
    %v100 = vld [vmem:[#allocation2 + $0xbc] sm:$0xf]
    %v101 = vld [vmem:[#allocation2 + $0xc0] sm:$0xff]
    %v102 = vld [vmem:[#allocation2 + $0xc8] sm:$0xf]
    %v103 = vld [vmem:[#allocation2 + $0xcc] sm:$0xff]
    %v104 = vld [vmem:[#allocation2 + $0xd4] sm:$0xf]
    %v105 = vld [vmem:[#allocation2 + $0xd8] sm:$0xff]
    %v106 = vld [vmem:[#allocation2 + $0xe0] sm:$0xf]
    %v107 = vld [vmem:[#allocation2 + $0xe4] sm:$0xff]
    %v108 = vld [vmem:[#allocation2 + $0xec] sm:$0xf]
    %v109 = vld [vmem:[#allocation2 + $0xf0] sm:$0xff]
    %v110 = vld [vmem:[#allocation2 + $0xf8] sm:$0xf]
    %v111 = vld [vmem:[#allocation2 + $0xfc] sm:$0xff]
    %v112 = vld [vmem:[#allocation2 + $0x104] sm:$0xf]
    %v113 = vld [vmem:[#allocation2 + $0x108] sm:$0xff]
    %v114 = vld [vmem:[#allocation2 + $0x110] sm:$0xf]
    %v115 = vld [vmem:[#allocation2 + $0x114] sm:$0xff]
    %v116 = vld [vmem:[#allocation2 + $0x11c] sm:$0xf]
    %v117 = vld [vmem:[#allocation2 + $0x120] sm:$0xff]
    %v118 = vld [vmem:[#allocation2 + $0x128] sm:$0xf]
    %v119 = vld [vmem:[#allocation2 + $0x12c] sm:$0xff]
    %v120 = vld [vmem:[#allocation2 + $0x134] sm:$0xf]
    %v121 = vld [vmem:[#allocation2 + $0x138] sm:$0xff]
    %v122 = vld [vmem:[#allocation2 + $0x140] sm:$0xf]
    %v123 = vld [vmem:[#allocation2 + $0x144] sm:$0xff]
    %v124 = vld [vmem:[#allocation2 + $0x14c] sm:$0xf]
    %v125 = vld [vmem:[#allocation2 + $0x150] sm:$0xff]
    %v126 = vld [vmem:[#allocation2 + $0x158] sm:$0xf]
    %v127 = vld [vmem:[#allocation2 + $0x15c] sm:$0xff]
    %v128 = vld [vmem:[#allocation2 + $0x164] sm:$0xf]
    %v129 = vld [vmem:[#allocation2 + $0x168] sm:$0xff]
    %v130 = vld [vmem:[#allocation2 + $0x170] sm:$0xf]
    %v131 = vld [vmem:[#allocation2 + $0x174] sm:$0xff]
    %v132 = vld [vmem:[#allocation2 + $0x17c] sm:$0xf]
    %v133 = vld [vmem:[#allocation2 + $0x180] sm:$0xff]
    %v134 = vld [vmem:[#allocation2 + $0x188] sm:$0xf]
    %v135 = vld [vmem:[#allocation2 + $0x18c] sm:$0xff]
    %v136 = vld [vmem:[#allocation2 + $0x194] sm:$0xf]
    %v137 = vld [vmem:[#allocation2 + $0x198] sm:$0xff]
    %v138 = vld [vmem:[#allocation2 + $0x1a0] sm:$0xf]
    %v139 = vld [vmem:[#allocation2 + $0x1a4] sm:$0xff]
    %v140 = vld [vmem:[#allocation2 + $0x1ac] sm:$0xf]
    %v141 = vld [vmem:[#allocation2 + $0x1b0] sm:$0xff]
    %v142 = vld [vmem:[#allocation2 + $0x1b8] sm:$0xf]
    %v143 = vld [vmem:[#allocation2 + $0x1bc] sm:$0xff]
    %v144 = vld [vmem:[#allocation2 + $0x1c4] sm:$0xf]
    %v145 = vld [vmem:[#allocation2 + $0x1c8] sm:$0xff]
    %v146 = vld [vmem:[#allocation2 + $0x1d0] sm:$0xf]
    %v147 = vld [vmem:[#allocation2 + $0x1d4] sm:$0xff]
    %v148 = vld [vmem:[#allocation2 + $0x1dc] sm:$0xf]
    %v149 = vld [vmem:[#allocation2 + $0x1e0] sm:$0xff]
    %v150 = vld [vmem:[#allocation2 + $0x1e8] sm:$0xf]
    %v151 = vld [vmem:[#allocation2 + $0x1ec] sm:$0xff]
    %v152 = vld [vmem:[#allocation2 + $0x1f4] sm:$0xf]
    %v153 = vld [vmem:[#allocation2 + $0x1f8] sm:$0xff]
    %v154 = vld [vmem:[#allocation2 + $0x200] sm:$0xf]
    %v155 = vld [vmem:[#allocation2 + $0x204] sm:$0xff]
    %v156 = vld [vmem:[#allocation2 + $0x20c] sm:$0xf]
    %v157 = vld [vmem:[#allocation2 + $0x210] sm:$0xff]
    %v158 = vld [vmem:[#allocation2 + $0x218] sm:$0xf]
    %v159 = vld [vmem:[#allocation2 + $0x21c] sm:$0xff]
    %v160 = vld [vmem:[#allocation2 + $0x224] sm:$0xf]
    %v161 = vld [vmem:[#allocation2 + $0x228] sm:$0xff]
    %v162 = vld [vmem:[#allocation2 + $0x230] sm:$0xf]
    %v163 = vld [vmem:[#allocation2 + $0x234] sm:$0xff]
    %v164 = vld [vmem:[#allocation2 + $0x23c] sm:$0xf]
    %v165 = vld [vmem:[#allocation2 + $0x240] sm:$0xff]
    %v166 = vld [vmem:[#allocation2 + $0x248] sm:$0xf]
    %v167 = vld [vmem:[#allocation2 + $0x24c] sm:$0xff]
    %v168 = vld [vmem:[#allocation2 + $0x254] sm:$0xf]
    %v169 = vld [vmem:[#allocation2 + $0x258] sm:$0xff]
    %v170 = vld [vmem:[#allocation2 + $0x260] sm:$0xf]
    %v171 = vld [vmem:[#allocation2 + $0x264] sm:$0xff]
    %v172 = vld [vmem:[#allocation2 + $0x26c] sm:$0xf]
    %v173 = vld [vmem:[#allocation2 + $0x270] sm:$0xff]
    %v174 = vld [vmem:[#allocation2 + $0x278] sm:$0xf]
    %v175 = vld [vmem:[#allocation2 + $0x27c] sm:$0xff]
    %v176 = vld [vmem:[#allocation2 + $0x284] sm:$0xf]
    %v177 = vld [vmem:[#allocation2 + $0x288] sm:$0xff]
    %v178 = vld [vmem:[#allocation2 + $0x290] sm:$0xf]
    %v179 = vld [vmem:[#allocation2 + $0x294] sm:$0xff]
    %v180 = vld [vmem:[#allocation2 + $0x29c] sm:$0xf]
    %v181 = vld [vmem:[#allocation2 + $0x2a0] sm:$0xff]
    %v182 = vld [vmem:[#allocation2 + $0x2a8] sm:$0xf]
    %v183 = vld [vmem:[#allocation2 + $0x2ac] sm:$0xff]
    %v184 = vld [vmem:[#allocation2 + $0x2b4] sm:$0xf]
    %v185 = vld [vmem:[#allocation2 + $0x2b8] sm:$0xff]
    %v186 = vld [vmem:[#allocation2 + $0x2c0] sm:$0xf]
    %v187 = vld [vmem:[#allocation2 + $0x2c4] sm:$0xff]
    %v188 = vld [vmem:[#allocation2 + $0x2cc] sm:$0xf]
    %v189 = vld [vmem:[#allocation2 + $0x2d0] sm:$0xff]
    %v190 = vld [vmem:[#allocation2 + $0x2d8] sm:$0xf]
    %v191 = vld [vmem:[#allocation2 + $0x2dc] sm:$0xff]
    %v192 = vld [vmem:[#allocation2 + $0x2e4] sm:$0xf]
    %v193 = vld [vmem:[#allocation2 + $0x2e8] sm:$0xff]
    %v194 = vld [vmem:[#allocation2 + $0x2f0] sm:$0xf]
    %v195 = vld [vmem:[#allocation2 + $0x2f4] sm:$0xff]
    %v196 = vld [vmem:[#allocation2 + $0x2fc] sm:$0xf]
    %v197 = vld [vmem:[#allocation2 + $0x300] sm:$0xff]
    %v198 = vld [vmem:[#allocation2 + $0x308] sm:$0xf]
    %v199 = vld [vmem:[#allocation2 + $0x30c] sm:$0xff]
    %v200 = vld [vmem:[#allocation2 + $0x314] sm:$0xf]
    %v201 = vld [vmem:[#allocation2 + $0x318] sm:$0xff]
    %v202 = vld [vmem:[#allocation2 + $0x320] sm:$0xf]
    %v203 = vld [vmem:[#allocation2 + $0x324] sm:$0xff]
    %v204 = vld [vmem:[#allocation2 + $0x32c] sm:$0xf]
    %v205 = vld [vmem:[#allocation2 + $0x330] sm:$0xff]
    %v206 = vld [vmem:[#allocation2 + $0x338] sm:$0xf]
    %v207 = vld [vmem:[#allocation2 + $0x33c] sm:$0xff]
    %v208 = vld [vmem:[#allocation2 + $0x344] sm:$0xf]
    %v209 = vld [vmem:[#allocation2 + $0x348] sm:$0xff]
    %v210 = vld [vmem:[#allocation2 + $0x350] sm:$0xf]
    %v211 = vld [vmem:[#allocation2 + $0x354] sm:$0xff]
    %v212 = vld [vmem:[#allocation2 + $0x35c] sm:$0xf]
    %v213 = vld [vmem:[#allocation2 + $0x360] sm:$0xff]
    %v214 = vld [vmem:[#allocation2 + $0x368] sm:$0xf]
    %v215 = vld [vmem:[#allocation2 + $0x36c] sm:$0xff]
    %v216 = vld [vmem:[#allocation2 + $0x374] sm:$0xf]
    %v217 = vld [vmem:[#allocation2 + $0x378] sm:$0xff]
    %v218 = vld [vmem:[#allocation2 + $0x380] sm:$0xf]
    %v219 = vld [vmem:[#allocation2 + $0x384] sm:$0xff]
    %v220 = vld [vmem:[#allocation2 + $0x38c] sm:$0xf]
    %v221 = vld [vmem:[#allocation2 + $0x390] sm:$0xff]
    %v222 = vld [vmem:[#allocation2 + $0x398] sm:$0xf]
    %v223 = vld [vmem:[#allocation2 + $0x39c] sm:$0xff]
    %v224 = vld [vmem:[#allocation2 + $0x3a4] sm:$0xf]
    %v225 = vld [vmem:[#allocation2 + $0x3a8] sm:$0xff]
    %v226 = vld [vmem:[#allocation2 + $0x3b0] sm:$0xf]
    %v227 = vld [vmem:[#allocation2 + $0x3b4] sm:$0xff]
    %v228 = vld [vmem:[#allocation2 + $0x3bc] sm:$0xf]
    %v229 = vld [vmem:[#allocation2 + $0x3c0] sm:$0xff]
    %v230 = vld [vmem:[#allocation2 + $0x3c8] sm:$0xf]
    %v231 = vld [vmem:[#allocation2 + $0x3cc] sm:$0xff]
    %v232 = vld [vmem:[#allocation2 + $0x3d4] sm:$0xf]
    %v233 = vld [vmem:[#allocation2 + $0x3d8] sm:$0xff]
    %v234 = vld [vmem:[#allocation2 + $0x3e0] sm:$0xf]
    %v235 = vld [vmem:[#allocation2 + $0x3e4] sm:$0xff]
    %v236 = vld [vmem:[#allocation2 + $0x3ec] sm:$0xf]
    %v237 = vld [vmem:[#allocation2 + $0x3f0] sm:$0xff]
    %v238 = vld [vmem:[#allocation2 + $0x3f8] sm:$0xf]
    %v239 = vld [vmem:[#allocation2 + $0x3fc] sm:$0xff]
    %v240 = vld [vmem:[#allocation2 + $0x404] sm:$0xf]
    %v241 = vld [vmem:[#allocation2 + $0x408] sm:$0xff]
    %v242 = vld [vmem:[#allocation2 + $0x410] sm:$0xf]
    %v243 = vld [vmem:[#allocation2 + $0x414] sm:$0xff]
    %v244 = vld [vmem:[#allocation2 + $0x41c] sm:$0xf]
    %v245 = vld [vmem:[#allocation2 + $0x420] sm:$0xff]
    %v246 = vld [vmem:[#allocation2 + $0x428] sm:$0xf]
    %v247 = vld [vmem:[#allocation2 + $0x42c] sm:$0xff]
    %v248 = vld [vmem:[#allocation2 + $0x434] sm:$0xf]
    %v249 = vld [vmem:[#allocation2 + $0x438] sm:$0xff]
    %v250 = vld [vmem:[#allocation2 + $0x440] sm:$0xf]
    %v251 = vld [vmem:[#allocation2 + $0x444] sm:$0xff]
    %v252 = vld [vmem:[#allocation2 + $0x44c] sm:$0xf]
    %v253 = vld [vmem:[#allocation2 + $0x450] sm:$0xff]
    %v254 = vld [vmem:[#allocation2 + $0x458] sm:$0xf]
    %v255 = vld [vmem:[#allocation2 + $0x45c] sm:$0xff]
    %v256 = vld [vmem:[#allocation2 + $0x464] sm:$0xf]
    %v257 = vld [vmem:[#allocation2 + $0x468] sm:$0xff]
    %v258 = vld [vmem:[#allocation2 + $0x470] sm:$0xf]
    %v259 = vld [vmem:[#allocation2 + $0x474] sm:$0xff]
    %v260 = vld [vmem:[#allocation2 + $0x47c] sm:$0xf]
    %v261 = vld [vmem:[%s2] sm:$0x7]
    %v263 = vlaneseq
    %v264 = vshrl.u32 %v263, 7
    %v265 = vsub.s32 0, %v264
    %v266 = vrot.slane %v261, %v265
    %v267 = vlaneseq
    %v268 = vshrl.u32 %v267, 7
    %v269 = vsub.s32 1, %v268
    %v270 = vrot.slane %v261, %v269
    %v271 = vlaneseq
    %v272 = vshrl.u32 %v271, 7
    %v273 = vsub.s32 2, %v272
    %v274 = vrot.slane %v261, %v273
    %v279 = vcombine.high %v68, %v68
    %v281 = vunpack.c.l.s4 1966171168
    %v282 = vunpack.c.0.s8 %v281
    %v283 = vlaneseq
    %v284 = vshrl.u32 %v283, 7
    %v285 = vsub.s32 %v282, %v284
    %v286 = vrot.slane %v68, %v285
    %v288 = vunpack.c.l.s4 1966171168
    %v289 = vunpack.c.0.s8 %v288
    %v290 = vlaneseq
    %v291 = vshrl.u32 %v290, 7
    %v292 = vsub.s32 %v289, %v291
    %v293 = vrot.slane %v279, %v292
    %v294 = vcombine.high %v286, %v286
    %v295 = vcombine.high %v293, %v293
    %v297 = vunpack.c.l.s4 1966171168
    %v298 = vunpack.c.0.s8 %v297
    %v299 = vlaneseq
    %v300 = vshrl.u32 %v299, 7
    %v301 = vsub.s32 %v298, %v300
    %v302 = vrot.slane %v286, %v301
    %v304 = vunpack.c.l.s4 1966171168
    %v305 = vunpack.c.0.s8 %v304
    %v306 = vlaneseq
    %v307 = vshrl.u32 %v306, 7
    %v308 = vsub.s32 %v305, %v307
    %v309 = vrot.slane %v293, %v308
    %v311 = vunpack.c.l.s4 1966171168
    %v312 = vunpack.c.0.s8 %v311
    %v313 = vlaneseq
    %v314 = vshrl.u32 %v313, 7
    %v315 = vsub.s32 %v312, %v314
    %v316 = vrot.slane %v294, %v315
    %v318 = vunpack.c.l.s4 1966171168
    %v319 = vunpack.c.0.s8 %v318
    %v320 = vlaneseq
    %v321 = vshrl.u32 %v320, 7
    %v322 = vsub.s32 %v319, %v321
    %v323 = vrot.slane %v295, %v322
    %v324 = vcombine.high %v302, %v302
    %v325 = vcombine.high %v316, %v316
    %v524 = vunpack.c.l.b16 %v69
    %v525 = vunpack.c.h.b16 %v69
    %v526 = vunpack.c.l.b16 %v70
    %v527 = vunpack.c.l.b16 %v71
    %v528 = vunpack.c.h.b16 %v71
    %v529 = vunpack.c.l.b16 %v72
    %v530 = vunpack.c.l.b16 %v73
    %v531 = vunpack.c.h.b16 %v73
    %v532 = vunpack.c.l.b16 %v74
    %v533 = vunpack.c.l.b16 %v75
    %v534 = vunpack.c.h.b16 %v75
    %v535 = vunpack.c.l.b16 %v76
    %v536 = vunpack.c.l.b16 %v77
    %v537 = vunpack.c.h.b16 %v77
    %v538 = vunpack.c.l.b16 %v78
    %v539 = vunpack.c.l.b16 %v79
    %v540 = vunpack.c.h.b16 %v79
    %v541 = vunpack.c.l.b16 %v80
    %v542 = vunpack.c.l.b16 %v81
    %v543 = vunpack.c.h.b16 %v81
    %v544 = vunpack.c.l.b16 %v82
    %v545 = vunpack.c.l.b16 %v83
    %v546 = vunpack.c.h.b16 %v83
    %v547 = vunpack.c.l.b16 %v84
    %v548 = vunpack.c.l.b16 %v85
    %v549 = vunpack.c.h.b16 %v85
    %v550 = vunpack.c.l.b16 %v86
    %v551 = vunpack.c.l.b16 %v87
    %v552 = vunpack.c.h.b16 %v87
    %v553 = vunpack.c.l.b16 %v88
    %v554 = vunpack.c.l.b16 %v89
    %v555 = vunpack.c.h.b16 %v89
    %v556 = vunpack.c.l.b16 %v90
    %v557 = vunpack.c.l.b16 %v91
    %v558 = vunpack.c.h.b16 %v91
    %v559 = vunpack.c.l.b16 %v92
    %v560 = vunpack.c.l.b16 %v93
    %v561 = vunpack.c.h.b16 %v93
    %v562 = vunpack.c.l.b16 %v94
    %v563 = vunpack.c.l.b16 %v95
    %v564 = vunpack.c.h.b16 %v95
    %v565 = vunpack.c.l.b16 %v96
    %v566 = vunpack.c.l.b16 %v97
    %v567 = vunpack.c.h.b16 %v97
    %v568 = vunpack.c.l.b16 %v98
    %v569 = vunpack.c.l.b16 %v99
    %v570 = vunpack.c.h.b16 %v99
    %v571 = vunpack.c.l.b16 %v100
    %v572 = vunpack.c.l.b16 %v101
    %v573 = vunpack.c.h.b16 %v101
    %v574 = vunpack.c.l.b16 %v102
    %v575 = vunpack.c.l.b16 %v103
    %v576 = vunpack.c.h.b16 %v103
    %v577 = vunpack.c.l.b16 %v104
    %v578 = vunpack.c.l.b16 %v105
    %v579 = vunpack.c.h.b16 %v105
    %v580 = vunpack.c.l.b16 %v106
    %v581 = vunpack.c.l.b16 %v107
    %v582 = vunpack.c.h.b16 %v107
    %v583 = vunpack.c.l.b16 %v108
    %v584 = vunpack.c.l.b16 %v109
    %v585 = vunpack.c.h.b16 %v109
    %v586 = vunpack.c.l.b16 %v110
    %v587 = vunpack.c.l.b16 %v111
    %v588 = vunpack.c.h.b16 %v111
    %v589 = vunpack.c.l.b16 %v112
    %v590 = vunpack.c.l.b16 %v113
    %v591 = vunpack.c.h.b16 %v113
    %v592 = vunpack.c.l.b16 %v114
    %v593 = vunpack.c.l.b16 %v115
    %v594 = vunpack.c.h.b16 %v115
    %v595 = vunpack.c.l.b16 %v116
    %v596 = vunpack.c.l.b16 %v117
    %v597 = vunpack.c.h.b16 %v117
    %v598 = vunpack.c.l.b16 %v118
    %v599 = vunpack.c.l.b16 %v119
    %v600 = vunpack.c.h.b16 %v119
    %v601 = vunpack.c.l.b16 %v120
    %v602 = vunpack.c.l.b16 %v121
    %v603 = vunpack.c.h.b16 %v121
    %v604 = vunpack.c.l.b16 %v122
    %v605 = vunpack.c.l.b16 %v123
    %v606 = vunpack.c.h.b16 %v123
    %v607 = vunpack.c.l.b16 %v124
    %v608 = vunpack.c.l.b16 %v125
    %v609 = vunpack.c.h.b16 %v125
    %v610 = vunpack.c.l.b16 %v126
    %v611 = vunpack.c.l.b16 %v127
    %v612 = vunpack.c.h.b16 %v127
    %v613 = vunpack.c.l.b16 %v128
    %v614 = vunpack.c.l.b16 %v129
    %v615 = vunpack.c.h.b16 %v129
    %v616 = vunpack.c.l.b16 %v130
    %v617 = vunpack.c.l.b16 %v131
    %v618 = vunpack.c.h.b16 %v131
    %v619 = vunpack.c.l.b16 %v132
    %v620 = vunpack.c.l.b16 %v133
    %v621 = vunpack.c.h.b16 %v133
    %v622 = vunpack.c.l.b16 %v134
    %v623 = vunpack.c.l.b16 %v135
    %v624 = vunpack.c.h.b16 %v135
    %v625 = vunpack.c.l.b16 %v136
    %v626 = vunpack.c.l.b16 %v137
    %v627 = vunpack.c.h.b16 %v137
    %v628 = vunpack.c.l.b16 %v138
    %v629 = vunpack.c.l.b16 %v139
    %v630 = vunpack.c.h.b16 %v139
    %v631 = vunpack.c.l.b16 %v140
    %v632 = vunpack.c.l.b16 %v141
    %v633 = vunpack.c.h.b16 %v141
    %v634 = vunpack.c.l.b16 %v142
    %v635 = vunpack.c.l.b16 %v143
    %v636 = vunpack.c.h.b16 %v143
    %v637 = vunpack.c.l.b16 %v144
    %v638 = vunpack.c.l.b16 %v145
    %v639 = vunpack.c.h.b16 %v145
    %v640 = vunpack.c.l.b16 %v146
    %v641 = vunpack.c.l.b16 %v147
    %v642 = vunpack.c.h.b16 %v147
    %v643 = vunpack.c.l.b16 %v148
    %v644 = vunpack.c.l.b16 %v149
    %v645 = vunpack.c.h.b16 %v149
    %v646 = vunpack.c.l.b16 %v150
    %v647 = vunpack.c.l.b16 %v151
    %v648 = vunpack.c.h.b16 %v151
    %v649 = vunpack.c.l.b16 %v152
    %v650 = vunpack.c.l.b16 %v153
    %v651 = vunpack.c.h.b16 %v153
    %v652 = vunpack.c.l.b16 %v154
    %v653 = vunpack.c.l.b16 %v155
    %v654 = vunpack.c.h.b16 %v155
    %v655 = vunpack.c.l.b16 %v156
    %v656 = vunpack.c.l.b16 %v157
    %v657 = vunpack.c.h.b16 %v157
    %v658 = vunpack.c.l.b16 %v158
    %v659 = vunpack.c.l.b16 %v159
    %v660 = vunpack.c.h.b16 %v159
    %v661 = vunpack.c.l.b16 %v160
    %v662 = vunpack.c.l.b16 %v161
    %v663 = vunpack.c.h.b16 %v161
    %v664 = vunpack.c.l.b16 %v162
    %v665 = vunpack.c.l.b16 %v163
    %v666 = vunpack.c.h.b16 %v163
    %v667 = vunpack.c.l.b16 %v164
    %v668 = vunpack.c.l.b16 %v165
    %v669 = vunpack.c.h.b16 %v165
    %v670 = vunpack.c.l.b16 %v166
    %v671 = vunpack.c.l.b16 %v167
    %v672 = vunpack.c.h.b16 %v167
    %v673 = vunpack.c.l.b16 %v168
    %v674 = vunpack.c.l.b16 %v169
    %v675 = vunpack.c.h.b16 %v169
    %v676 = vunpack.c.l.b16 %v170
    %v677 = vunpack.c.l.b16 %v171
    %v678 = vunpack.c.h.b16 %v171
    %v679 = vunpack.c.l.b16 %v172
    %v680 = vunpack.c.l.b16 %v173
    %v681 = vunpack.c.h.b16 %v173
    %v682 = vunpack.c.l.b16 %v174
    %v683 = vunpack.c.l.b16 %v175
    %v684 = vunpack.c.h.b16 %v175
    %v685 = vunpack.c.l.b16 %v176
    %v686 = vunpack.c.l.b16 %v177
    %v687 = vunpack.c.h.b16 %v177
    %v688 = vunpack.c.l.b16 %v178
    %v689 = vunpack.c.l.b16 %v179
    %v690 = vunpack.c.h.b16 %v179
    %v691 = vunpack.c.l.b16 %v180
    %v692 = vunpack.c.l.b16 %v181
    %v693 = vunpack.c.h.b16 %v181
    %v694 = vunpack.c.l.b16 %v182
    %v695 = vunpack.c.l.b16 %v183
    %v696 = vunpack.c.h.b16 %v183
    %v697 = vunpack.c.l.b16 %v184
    %v698 = vunpack.c.l.b16 %v185
    %v699 = vunpack.c.h.b16 %v185
    %v700 = vunpack.c.l.b16 %v186
    %v701 = vunpack.c.l.b16 %v187
    %v702 = vunpack.c.h.b16 %v187
    %v703 = vunpack.c.l.b16 %v188
    %v704 = vunpack.c.l.b16 %v189
    %v705 = vunpack.c.h.b16 %v189
    %v706 = vunpack.c.l.b16 %v190
    %v707 = vunpack.c.l.b16 %v191
    %v708 = vunpack.c.h.b16 %v191
    %v709 = vunpack.c.l.b16 %v192
    %v710 = vunpack.c.l.b16 %v193
    %v711 = vunpack.c.h.b16 %v193
    %v712 = vunpack.c.l.b16 %v194
    %v713 = vunpack.c.l.b16 %v195
    %v714 = vunpack.c.h.b16 %v195
    %v715 = vunpack.c.l.b16 %v196
    %v716 = vunpack.c.l.b16 %v197
    %v717 = vunpack.c.h.b16 %v197
    %v718 = vunpack.c.l.b16 %v198
    %v719 = vunpack.c.l.b16 %v199
    %v720 = vunpack.c.h.b16 %v199
    %v721 = vunpack.c.l.b16 %v200
    %v722 = vunpack.c.l.b16 %v201
    %v723 = vunpack.c.h.b16 %v201
    %v724 = vunpack.c.l.b16 %v202
    %v725 = vunpack.c.l.b16 %v203
    %v726 = vunpack.c.h.b16 %v203
    %v727 = vunpack.c.l.b16 %v204
    %v728 = vunpack.c.l.b16 %v205
    %v729 = vunpack.c.h.b16 %v205
    %v730 = vunpack.c.l.b16 %v206
    %v731 = vunpack.c.l.b16 %v207
    %v732 = vunpack.c.h.b16 %v207
    %v733 = vunpack.c.l.b16 %v208
    %v734 = vunpack.c.l.b16 %v209
    %v735 = vunpack.c.h.b16 %v209
    %v736 = vunpack.c.l.b16 %v210
    %v737 = vunpack.c.l.b16 %v211
    %v738 = vunpack.c.h.b16 %v211
    %v739 = vunpack.c.l.b16 %v212
    %v740 = vunpack.c.l.b16 %v213
    %v741 = vunpack.c.h.b16 %v213
    %v742 = vunpack.c.l.b16 %v214
    %v743 = vunpack.c.l.b16 %v215
    %v744 = vunpack.c.h.b16 %v215
    %v745 = vunpack.c.l.b16 %v216
    %v746 = vunpack.c.l.b16 %v217
    %v747 = vunpack.c.h.b16 %v217
    %v748 = vunpack.c.l.b16 %v218
    %v749 = vunpack.c.l.b16 %v219
    %v750 = vunpack.c.h.b16 %v219
    %v751 = vunpack.c.l.b16 %v220
    %v752 = vunpack.c.l.b16 %v221
    %v753 = vunpack.c.h.b16 %v221
    %v754 = vunpack.c.l.b16 %v222
    %v755 = vunpack.c.l.b16 %v223
    %v756 = vunpack.c.h.b16 %v223
    %v757 = vunpack.c.l.b16 %v224
    %v758 = vunpack.c.l.b16 %v225
    %v759 = vunpack.c.h.b16 %v225
    %v760 = vunpack.c.l.b16 %v226
    %v761 = vunpack.c.l.b16 %v227
    %v762 = vunpack.c.h.b16 %v227
    %v763 = vunpack.c.l.b16 %v228
    %v764 = vunpack.c.l.b16 %v229
    %v765 = vunpack.c.h.b16 %v229
    %v766 = vunpack.c.l.b16 %v230
    %v767 = vunpack.c.l.b16 %v231
    %v768 = vunpack.c.h.b16 %v231
    %v769 = vunpack.c.l.b16 %v232
    %v770 = vunpack.c.l.b16 %v233
    %v771 = vunpack.c.h.b16 %v233
    %v772 = vunpack.c.l.b16 %v234
    %v773 = vunpack.c.l.b16 %v235
    %v774 = vunpack.c.h.b16 %v235
    %v775 = vunpack.c.l.b16 %v236
    %v776 = vunpack.c.l.b16 %v237
    %v777 = vunpack.c.h.b16 %v237
    %v778 = vunpack.c.l.b16 %v238
    %v779 = vunpack.c.l.b16 %v239
    %v780 = vunpack.c.h.b16 %v239
    %v781 = vunpack.c.l.b16 %v240
    %v782 = vunpack.c.l.b16 %v241
    %v783 = vunpack.c.h.b16 %v241
    %v784 = vunpack.c.l.b16 %v242
    %v785 = vunpack.c.l.b16 %v243
    %v786 = vunpack.c.h.b16 %v243
    %v787 = vunpack.c.l.b16 %v244
    %v788 = vunpack.c.l.b16 %v245
    %v789 = vunpack.c.h.b16 %v245
    %v790 = vunpack.c.l.b16 %v246
    %v791 = vunpack.c.l.b16 %v247
    %v792 = vunpack.c.h.b16 %v247
    %v793 = vunpack.c.l.b16 %v248
    %v794 = vunpack.c.l.b16 %v249
    %v795 = vunpack.c.h.b16 %v249
    %v796 = vunpack.c.l.b16 %v250
    %v797 = vunpack.c.l.b16 %v251
    %v798 = vunpack.c.h.b16 %v251
    %v799 = vunpack.c.l.b16 %v252
    %v800 = vunpack.c.l.b16 %v253
    %v801 = vunpack.c.h.b16 %v253
    %v802 = vunpack.c.l.b16 %v254
    %v803 = vunpack.c.l.b16 %v255
    %v804 = vunpack.c.h.b16 %v255
    %v805 = vunpack.c.l.b16 %v256
    %v806 = vunpack.c.l.b16 %v257
    %v807 = vunpack.c.h.b16 %v257
    %v808 = vunpack.c.l.b16 %v258
    %v809 = vunpack.c.l.b16 %v259
    %v810 = vunpack.c.h.b16 %v259
    %v811 = vunpack.c.l.b16 %v260
    %v812 = vpack.c.b16 %v527, %v524
    %v813 = vpack.c.b16 %v528, %v525
    %v814 = vpack.c.b16 %v529, %v526
    %v815 = vpack.c.b16 %v533, %v530
    %v816 = vpack.c.b16 %v534, %v531
    %v817 = vpack.c.b16 %v535, %v532
    %v818 = vpack.c.b16 %v539, %v536
    %v819 = vpack.c.b16 %v540, %v537
    %v820 = vpack.c.b16 %v541, %v538
    %v821 = vpack.c.b16 %v545, %v542
    %v822 = vpack.c.b16 %v546, %v543
    %v823 = vpack.c.b16 %v547, %v544
    %v824 = vpack.c.b16 %v551, %v548
    %v825 = vpack.c.b16 %v552, %v549
    %v826 = vpack.c.b16 %v553, %v550
    %v827 = vpack.c.b16 %v557, %v554
    %v828 = vpack.c.b16 %v558, %v555
    %v829 = vpack.c.b16 %v559, %v556
    %v830 = vpack.c.b16 %v563, %v560
    %v831 = vpack.c.b16 %v564, %v561
    %v832 = vpack.c.b16 %v565, %v562
    %v833 = vpack.c.b16 %v569, %v566
    %v834 = vpack.c.b16 %v570, %v567
    %v835 = vpack.c.b16 %v571, %v568
    %v836 = vpack.c.b16 %v575, %v572
    %v837 = vpack.c.b16 %v576, %v573
    %v838 = vpack.c.b16 %v577, %v574
    %v839 = vpack.c.b16 %v581, %v578
    %v840 = vpack.c.b16 %v582, %v579
    %v841 = vpack.c.b16 %v583, %v580
    %v842 = vpack.c.b16 %v587, %v584
    %v843 = vpack.c.b16 %v588, %v585
    %v844 = vpack.c.b16 %v589, %v586
    %v845 = vpack.c.b16 %v593, %v590
    %v846 = vpack.c.b16 %v594, %v591
    %v847 = vpack.c.b16 %v595, %v592
    %v848 = vpack.c.b16 %v599, %v596
    %v849 = vpack.c.b16 %v600, %v597
    %v850 = vpack.c.b16 %v601, %v598
    %v851 = vpack.c.b16 %v605, %v602
    %v852 = vpack.c.b16 %v606, %v603
    %v853 = vpack.c.b16 %v607, %v604
    %v854 = vpack.c.b16 %v611, %v608
    %v855 = vpack.c.b16 %v612, %v609
    %v856 = vpack.c.b16 %v613, %v610
    %v857 = vpack.c.b16 %v617, %v614
    %v858 = vpack.c.b16 %v618, %v615
    %v859 = vpack.c.b16 %v619, %v616
    %v860 = vpack.c.b16 %v623, %v620
    %v861 = vpack.c.b16 %v624, %v621
    %v862 = vpack.c.b16 %v625, %v622
    %v863 = vpack.c.b16 %v629, %v626
    %v864 = vpack.c.b16 %v630, %v627
    %v865 = vpack.c.b16 %v631, %v628
    %v866 = vpack.c.b16 %v635, %v632
    %v867 = vpack.c.b16 %v636, %v633
    %v868 = vpack.c.b16 %v637, %v634
    %v869 = vpack.c.b16 %v641, %v638
    %v870 = vpack.c.b16 %v642, %v639
    %v871 = vpack.c.b16 %v643, %v640
    %v872 = vpack.c.b16 %v647, %v644
    %v873 = vpack.c.b16 %v648, %v645
    %v874 = vpack.c.b16 %v649, %v646
    %v875 = vpack.c.b16 %v653, %v650
    %v876 = vpack.c.b16 %v654, %v651
    %v877 = vpack.c.b16 %v655, %v652
    %v878 = vpack.c.b16 %v659, %v656
    %v879 = vpack.c.b16 %v660, %v657
    %v880 = vpack.c.b16 %v661, %v658
    %v881 = vpack.c.b16 %v665, %v662
    %v882 = vpack.c.b16 %v666, %v663
    %v883 = vpack.c.b16 %v667, %v664
    %v884 = vpack.c.b16 %v671, %v668
    %v885 = vpack.c.b16 %v672, %v669
    %v886 = vpack.c.b16 %v673, %v670
    %v887 = vpack.c.b16 %v677, %v674
    %v888 = vpack.c.b16 %v678, %v675
    %v889 = vpack.c.b16 %v679, %v676
    %v890 = vpack.c.b16 %v683, %v680
    %v891 = vpack.c.b16 %v684, %v681
    %v892 = vpack.c.b16 %v685, %v682
    %v893 = vpack.c.b16 %v689, %v686
    %v894 = vpack.c.b16 %v690, %v687
    %v895 = vpack.c.b16 %v691, %v688
    %v896 = vpack.c.b16 %v695, %v692
    %v897 = vpack.c.b16 %v696, %v693
    %v898 = vpack.c.b16 %v697, %v694
    %v899 = vpack.c.b16 %v701, %v698
    %v900 = vpack.c.b16 %v702, %v699
    %v901 = vpack.c.b16 %v703, %v700
    %v902 = vpack.c.b16 %v707, %v704
    %v903 = vpack.c.b16 %v708, %v705
    %v904 = vpack.c.b16 %v709, %v706
    %v905 = vpack.c.b16 %v713, %v710
    %v906 = vpack.c.b16 %v714, %v711
    %v907 = vpack.c.b16 %v715, %v712
    %v908 = vpack.c.b16 %v719, %v716
    %v909 = vpack.c.b16 %v720, %v717
    %v910 = vpack.c.b16 %v721, %v718
    %v911 = vpack.c.b16 %v725, %v722
    %v912 = vpack.c.b16 %v726, %v723
    %v913 = vpack.c.b16 %v727, %v724
    %v914 = vpack.c.b16 %v731, %v728
    %v915 = vpack.c.b16 %v732, %v729
    %v916 = vpack.c.b16 %v733, %v730
    %v917 = vpack.c.b16 %v737, %v734
    %v918 = vpack.c.b16 %v738, %v735
    %v919 = vpack.c.b16 %v739, %v736
    %v920 = vpack.c.b16 %v743, %v740
    %v921 = vpack.c.b16 %v744, %v741
    %v922 = vpack.c.b16 %v745, %v742
    %v923 = vpack.c.b16 %v749, %v746
    %v924 = vpack.c.b16 %v750, %v747
    %v925 = vpack.c.b16 %v751, %v748
    %v926 = vpack.c.b16 %v755, %v752
    %v927 = vpack.c.b16 %v756, %v753
    %v928 = vpack.c.b16 %v757, %v754
    %v929 = vpack.c.b16 %v761, %v758
    %v930 = vpack.c.b16 %v762, %v759
    %v931 = vpack.c.b16 %v763, %v760
    %v932 = vpack.c.b16 %v767, %v764
    %v933 = vpack.c.b16 %v768, %v765
    %v934 = vpack.c.b16 %v769, %v766
    %v935 = vpack.c.b16 %v773, %v770
    %v936 = vpack.c.b16 %v774, %v771
    %v937 = vpack.c.b16 %v775, %v772
    %v938 = vpack.c.b16 %v779, %v776
    %v939 = vpack.c.b16 %v780, %v777
    %v940 = vpack.c.b16 %v781, %v778
    %v941 = vpack.c.b16 %v785, %v782
    %v942 = vpack.c.b16 %v786, %v783
    %v943 = vpack.c.b16 %v787, %v784
    %v944 = vpack.c.b16 %v791, %v788
    %v945 = vpack.c.b16 %v792, %v789
    %v946 = vpack.c.b16 %v793, %v790
    %v947 = vpack.c.b16 %v797, %v794
    %v948 = vpack.c.b16 %v798, %v795
    %v949 = vpack.c.b16 %v799, %v796
    %v950 = vpack.c.b16 %v803, %v800
    %v951 = vpack.c.b16 %v804, %v801
    %v952 = vpack.c.b16 %v805, %v802
    %v953 = vpack.c.b16 %v809, %v806
    %v954 = vpack.c.b16 %v810, %v807
    %v955 = vpack.c.b16 %v811, %v808
    %1100 = vmatprep.subr.bf16.mxu0 %v813
    %1101 = vmatpush1.bf16.msra.mxu0 %v812
    %1102 = vmatprep.subr.bf16.mxu0 %v816
    %1103 = vmatpush1.bf16.msra.mxu0 %v815
    %1104 = vmatprep.subr.bf16.mxu0 %v819
    %1105 = vmatpush1.bf16.msra.mxu0 %v818
    %1106 = vmatprep.subr.bf16.mxu0 %v822
    %1107 = vmatpush1.bf16.msra.mxu0 %v821
    %1108 = vmatprep.subr.bf16.mxu0 %v825
    %1109 = vmatpush1.bf16.msra.mxu0 %v824
    %1110 = vmatprep.subr.bf16.mxu0 %v828
    %1111 = vmatpush1.bf16.msra.mxu0 %v827
    %1112 = vmatprep.subr.bf16.mxu0 %v831
    %1113 = vmatpush1.bf16.msra.mxu0 %v830
    %1114 = vmatprep.subr.bf16.mxu0 %v834
    %1115 = vmatpush1.bf16.msra.mxu0 %v833
    %1116 = vmatprep.subr.bf16.mxu0 %v837
    %1117 = vmatpush1.bf16.msra.mxu0 %v836
    %1118 = vmatprep.subr.bf16.mxu0 %v840
    %1119 = vmatpush1.bf16.msra.mxu0 %v839
    %1120 = vmatprep.subr.bf16.mxu0 %v843
    %1121 = vmatpush1.bf16.msra.mxu0 %v842
    %1122 = vmatprep.subr.bf16.mxu0 %v846
    %1123 = vmatpush1.bf16.msra.mxu0 %v845
    %1124 = vmatprep.subr.bf16.mxu0 %v849
    %1125 = vmatpush1.bf16.msra.mxu0 %v848
    %1126 = vmatprep.subr.bf16.mxu0 %v852
    %1127 = vmatpush1.bf16.msra.mxu0 %v851
    %1128 = vmatprep.subr.bf16.mxu0 %v855
    %1129 = vmatpush1.bf16.msra.mxu0 %v854
    %1130 = vmatprep.subr.bf16.mxu0 %v858
    %1131 = vmatpush1.bf16.msra.mxu0 %v857
    %1132 = vmatprep.mubr.bf16.mxu0 %v316
    %1133 = vmatmul.mubr.bf16.gmra.mrb[0].mxu0 %v302
    %v1134 = vpop.f32.mrb[0].mxu0
    %v1135 = vadd.f32 %v266, %v1134
    %v1136 = vpop.f32.mrb[0].mxu0
    %v1137 = vadd.f32 %v270, %v1136
    %v1138 = vpop.f32.mrb[0].mxu0
    %v1139 = vpop.f32.mrb[0].mxu0
    %1140 = vdwg.mxu0
    %1141 = vmatprep.subr.bf16.mxu0 %v861
    %1142 = vmatpush1.bf16.msra.mxu0 %v860
    %1143 = vmatprep.subr.bf16.mxu0 %v864
    %1144 = vmatpush1.bf16.msra.mxu0 %v863
    %1145 = vmatprep.subr.bf16.mxu0 %v867
    %1146 = vmatpush1.bf16.msra.mxu0 %v866
    %1147 = vmatprep.subr.bf16.mxu0 %v870
    %1148 = vmatpush1.bf16.msra.mxu0 %v869
    %1149 = vmatprep.subr.bf16.mxu0 %v873
    %1150 = vmatpush1.bf16.msra.mxu0 %v872
    %1151 = vmatprep.subr.bf16.mxu0 %v876
    %1152 = vmatpush1.bf16.msra.mxu0 %v875
    %1153 = vmatprep.subr.bf16.mxu0 %v879
    %1154 = vmatpush1.bf16.msra.mxu0 %v878
    %1155 = vmatprep.subr.bf16.mxu0 %v882
    %1156 = vmatpush1.bf16.msra.mxu0 %v881
    %1157 = vmatprep.subr.bf16.mxu0 %v885
    %1158 = vmatpush1.bf16.msra.mxu0 %v884
    %1159 = vmatprep.subr.bf16.mxu0 %v888
    %1160 = vmatpush1.bf16.msra.mxu0 %v887
    %1161 = vmatprep.subr.bf16.mxu0 %v891
    %1162 = vmatpush1.bf16.msra.mxu0 %v890
    %1163 = vmatprep.subr.bf16.mxu0 %v894
    %1164 = vmatpush1.bf16.msra.mxu0 %v893
    %1165 = vmatprep.subr.bf16.mxu0 %v897
    %1166 = vmatpush1.bf16.msra.mxu0 %v896
    %1167 = vmatprep.subr.bf16.mxu0 %v900
    %1168 = vmatpush1.bf16.msra.mxu0 %v899
    %1169 = vmatprep.subr.bf16.mxu0 %v903
    %1170 = vmatpush1.bf16.msra.mxu0 %v902
    %1171 = vmatprep.subr.bf16.mxu0 %v906
    %1172 = vmatpush1.bf16.msra.mxu0 %v905
    %1173 = vmatprep.mubr.bf16.mxu0 %v325
    %1174 = vmatmul.mubr.bf16.gmra.mrb[0].mxu0 %v324
    %v1175 = vpop.f32.mrb[0].mxu0
    %v1176 = vadd.f32 %v1135, %v1175
    %v1177 = vpop.f32.mrb[0].mxu0
    %v1178 = vadd.f32 %v1137, %v1177
    %v1179 = vpop.f32.mrb[0].mxu0
    %v1180 = vpop.f32.mrb[0].mxu0
    %1181 = vdwg.mxu0
    %1182 = vmatprep.subr.bf16.mxu0 %v909
    %1183 = vmatpush1.bf16.msra.mxu0 %v908
    %1184 = vmatprep.subr.bf16.mxu0 %v912
    %1185 = vmatpush1.bf16.msra.mxu0 %v911
    %1186 = vmatprep.subr.bf16.mxu0 %v915
    %1187 = vmatpush1.bf16.msra.mxu0 %v914
    %1188 = vmatprep.subr.bf16.mxu0 %v918
    %1189 = vmatpush1.bf16.msra.mxu0 %v917
    %1190 = vmatprep.subr.bf16.mxu0 %v921
    %1191 = vmatpush1.bf16.msra.mxu0 %v920
    %1192 = vmatprep.subr.bf16.mxu0 %v924
    %1193 = vmatpush1.bf16.msra.mxu0 %v923
    %1194 = vmatprep.subr.bf16.mxu0 %v927
    %1195 = vmatpush1.bf16.msra.mxu0 %v926
    %1196 = vmatprep.subr.bf16.mxu0 %v930
    %1197 = vmatpush1.bf16.msra.mxu0 %v929
    %1198 = vmatprep.subr.bf16.mxu0 %v933
    %1199 = vmatpush1.bf16.msra.mxu0 %v932
    %1200 = vmatprep.subr.bf16.mxu0 %v936
    %1201 = vmatpush1.bf16.msra.mxu0 %v935
    %1202 = vmatprep.subr.bf16.mxu0 %v939
    %1203 = vmatpush1.bf16.msra.mxu0 %v938
    %1204 = vmatprep.subr.bf16.mxu0 %v942
    %1205 = vmatpush1.bf16.msra.mxu0 %v941
    %1206 = vmatprep.subr.bf16.mxu0 %v945
    %1207 = vmatpush1.bf16.msra.mxu0 %v944
    %1208 = vmatprep.subr.bf16.mxu0 %v948
    %1209 = vmatpush1.bf16.msra.mxu0 %v947
    %1210 = vmatprep.subr.bf16.mxu0 %v951
    %1211 = vmatpush1.bf16.msra.mxu0 %v950
    %1212 = vmatprep.subr.bf16.mxu0 %v954
    %1213 = vmatpush1.bf16.msra.mxu0 %v953
    %1214 = vmatprep.mubr.bf16.mxu0 %v323
    %1215 = vmatmul.mubr.bf16.gmra.mrb[0].mxu0 %v309
    %v1216 = vpop.f32.mrb[0].mxu0
    %v1217 = vadd.f32 %v1176, %v1216
    %v1218 = vpop.f32.mrb[0].mxu0
    %v1219 = vadd.f32 %v1178, %v1218
    %v1220 = vpop.f32.mrb[0].mxu0
    %v1221 = vpop.f32.mrb[0].mxu0
    %1222 = vdwg.mxu0
    %1223 = vmatprep.subr.bf16.mxu0 0
    %1224 = vmatpush1.bf16.msra.mxu0 %v814
    %1225 = vmatprep.subr.bf16.mxu0 0
    %1226 = vmatpush1.bf16.msra.mxu0 %v817
    %1227 = vmatprep.subr.bf16.mxu0 0
    %1228 = vmatpush1.bf16.msra.mxu0 %v820
    %1229 = vmatprep.subr.bf16.mxu0 0
    %1230 = vmatpush1.bf16.msra.mxu0 %v823
    %1231 = vmatprep.subr.bf16.mxu0 0
    %1232 = vmatpush1.bf16.msra.mxu0 %v826
    %1233 = vmatprep.subr.bf16.mxu0 0
    %1234 = vmatpush1.bf16.msra.mxu0 %v829
    %1235 = vmatprep.subr.bf16.mxu0 0
    %1236 = vmatpush1.bf16.msra.mxu0 %v832
    %1237 = vmatprep.subr.bf16.mxu0 0
    %1238 = vmatpush1.bf16.msra.mxu0 %v835
    %1239 = vmatprep.subr.bf16.mxu0 0
    %1240 = vmatpush1.bf16.msra.mxu0 %v838
    %1241 = vmatprep.subr.bf16.mxu0 0
    %1242 = vmatpush1.bf16.msra.mxu0 %v841
    %1243 = vmatprep.subr.bf16.mxu0 0
    %1244 = vmatpush1.bf16.msra.mxu0 %v844
    %1245 = vmatprep.subr.bf16.mxu0 0
    %1246 = vmatpush1.bf16.msra.mxu0 %v847
    %1247 = vmatprep.subr.bf16.mxu0 0
    %1248 = vmatpush1.bf16.msra.mxu0 %v850
    %1249 = vmatprep.subr.bf16.mxu0 0
    %1250 = vmatpush1.bf16.msra.mxu0 %v853
    %1251 = vmatprep.subr.bf16.mxu0 0
    %1252 = vmatpush1.bf16.msra.mxu0 %v856
    %1253 = vmatprep.subr.bf16.mxu0 0
    %1254 = vmatpush1.bf16.msra.mxu0 %v859
    %1255 = vmatprep.mubr.bf16.mxu0 %v316
    %1256 = vmatmul.mubr.bf16.gmra.mrb[0].mxu0 %v302
    %v1257 = vpop.f32.mrb[0].mxu0
    %v1258 = vadd.f32 %v274, %v1257
    %v1259 = vpop.f32.mrb[0].mxu0
    %v1260 = vpop.f32.mrb[0].mxu0
    %v1261 = vpop.f32.mrb[0].mxu0
    %1262 = vdwg.mxu0
    %1263 = vmatprep.subr.bf16.mxu0 0
    %1264 = vmatpush1.bf16.msra.mxu0 %v862
    %1265 = vmatprep.subr.bf16.mxu0 0
    %1266 = vmatpush1.bf16.msra.mxu0 %v865
    %1267 = vmatprep.subr.bf16.mxu0 0
    %1268 = vmatpush1.bf16.msra.mxu0 %v868
    %1269 = vmatprep.subr.bf16.mxu0 0
    %1270 = vmatpush1.bf16.msra.mxu0 %v871
    %1271 = vmatprep.subr.bf16.mxu0 0
    %1272 = vmatpush1.bf16.msra.mxu0 %v874
    %1273 = vmatprep.subr.bf16.mxu0 0
    %1274 = vmatpush1.bf16.msra.mxu0 %v877
    %1275 = vmatprep.subr.bf16.mxu0 0
    %1276 = vmatpush1.bf16.msra.mxu0 %v880
    %1277 = vmatprep.subr.bf16.mxu0 0
    %1278 = vmatpush1.bf16.msra.mxu0 %v883
    %1279 = vmatprep.subr.bf16.mxu0 0
    %1280 = vmatpush1.bf16.msra.mxu0 %v886
    %1281 = vmatprep.subr.bf16.mxu0 0
    %1282 = vmatpush1.bf16.msra.mxu0 %v889
    %1283 = vmatprep.subr.bf16.mxu0 0
    %1284 = vmatpush1.bf16.msra.mxu0 %v892
    %1285 = vmatprep.subr.bf16.mxu0 0
    %1286 = vmatpush1.bf16.msra.mxu0 %v895
    %1287 = vmatprep.subr.bf16.mxu0 0
    %1288 = vmatpush1.bf16.msra.mxu0 %v898
    %1289 = vmatprep.subr.bf16.mxu0 0
    %1290 = vmatpush1.bf16.msra.mxu0 %v901
    %1291 = vmatprep.subr.bf16.mxu0 0
    %1292 = vmatpush1.bf16.msra.mxu0 %v904
    %1293 = vmatprep.subr.bf16.mxu0 0
    %1294 = vmatpush1.bf16.msra.mxu0 %v907
    %1295 = vmatprep.mubr.bf16.mxu0 %v325
    %1296 = vmatmul.mubr.bf16.gmra.mrb[0].mxu0 %v324
    %v1297 = vpop.f32.mrb[0].mxu0
    %v1298 = vadd.f32 %v1258, %v1297
    %v1299 = vpop.f32.mrb[0].mxu0
    %v1300 = vpop.f32.mrb[0].mxu0
    %v1301 = vpop.f32.mrb[0].mxu0
    %1302 = vdwg.mxu0
    %1303 = vmatprep.subr.bf16.mxu0 0
    %1304 = vmatpush1.bf16.msra.mxu0 %v910
    %1305 = vmatprep.subr.bf16.mxu0 0
    %1306 = vmatpush1.bf16.msra.mxu0 %v913
    %1307 = vmatprep.subr.bf16.mxu0 0
    %1308 = vmatpush1.bf16.msra.mxu0 %v916
    %1309 = vmatprep.subr.bf16.mxu0 0
    %1310 = vmatpush1.bf16.msra.mxu0 %v919
    %1311 = vmatprep.subr.bf16.mxu0 0
    %1312 = vmatpush1.bf16.msra.mxu0 %v922
    %1313 = vmatprep.subr.bf16.mxu0 0
    %1314 = vmatpush1.bf16.msra.mxu0 %v925
    %1315 = vmatprep.subr.bf16.mxu0 0
    %1316 = vmatpush1.bf16.msra.mxu0 %v928
    %1317 = vmatprep.subr.bf16.mxu0 0
    %1318 = vmatpush1.bf16.msra.mxu0 %v931
    %1319 = vmatprep.subr.bf16.mxu0 0
    %1320 = vmatpush1.bf16.msra.mxu0 %v934
    %1321 = vmatprep.subr.bf16.mxu0 0
    %1322 = vmatpush1.bf16.msra.mxu0 %v937
    %1323 = vmatprep.subr.bf16.mxu0 0
    %1324 = vmatpush1.bf16.msra.mxu0 %v940
    %1325 = vmatprep.subr.bf16.mxu0 0
    %1326 = vmatpush1.bf16.msra.mxu0 %v943
    %1327 = vmatprep.subr.bf16.mxu0 0
    %1328 = vmatpush1.bf16.msra.mxu0 %v946
    %1329 = vmatprep.subr.bf16.mxu0 0
    %1330 = vmatpush1.bf16.msra.mxu0 %v949
    %1331 = vmatprep.subr.bf16.mxu0 0
    %1332 = vmatpush1.bf16.msra.mxu0 %v952
    %1333 = vmatprep.subr.bf16.mxu0 0
    %1334 = vmatpush1.bf16.msra.mxu0 %v955
    %1335 = vmatprep.mubr.bf16.mxu0 %v323
    %1336 = vmatmul.mubr.bf16.gmra.mrb[0].mxu0 %v309
    %v1337 = vpop.f32.mrb[0].mxu0
    %v1338 = vadd.f32 %v1298, %v1337
    %v1339 = vpop.f32.mrb[0].mxu0
    %v1340 = vpop.f32.mrb[0].mxu0
    %v1341 = vpop.f32.mrb[0].mxu0
    %1342 = vdwg.mxu0
    %v1343 = vmax.f32 %v1217, 0.0
    %v1344 = vmax.f32 %v1219, 0.0
    %v1345 = vmul.f32 %v1217, 0.5
    %v1346 = vmul.f32 %v1219, 0.5
    %v1347 = vtanh.pop %v1345
    %v1348 = vtanh.pop %v1346
    %v1349 = vadd.f32 %v1347, 1.0
    %v1350 = vadd.f32 %v1348, 1.0
    %v1351 = vmul.f32 %v1349, 0.5
    %v1352 = vmul.f32 %v1350, 0.5
    %v1353 = vpack.c.bf16 %v1343, %v1343
    %v1354 = vpack.c.bf16 %v1344, %v1344
    %v1355 = vpack.c.bf16 %v1351, %v1351
    %v1356 = vpack.c.bf16 %v1352, %v1352
    %v1357 = vld [vmem:[#allocation4] sm:$0xff]
    %v1358 = vld [vmem:[#allocation4 + $0x8] sm:$0xff]
    %v1359 = vld [vmem:[#allocation4 + $0x10] sm:$0xff]
    %v1360 = vld [vmem:[#allocation4 + $0x18] sm:$0xff]
    %v1361 = vld [vmem:[#allocation4 + $0x20] sm:$0xff]
    %v1362 = vld [vmem:[#allocation4 + $0x28] sm:$0xff]
    %v1363 = vld [vmem:[#allocation4 + $0x30] sm:$0xff]
    %v1364 = vld [vmem:[#allocation4 + $0x38] sm:$0xff]
    %v1365 = vld [vmem:[#allocation4 + $0x40] sm:$0xff]
    %v1366 = vld [vmem:[#allocation4 + $0x48] sm:$0xff]
    %v1367 = vld [vmem:[#allocation4 + $0x50] sm:$0xff]
    %v1368 = vld [vmem:[#allocation4 + $0x58] sm:$0xff]
    %v1369 = vld [vmem:[#allocation4 + $0x60] sm:$0xff]
    %v1370 = vld [vmem:[#allocation4 + $0x68] sm:$0xff]
    %v1371 = vld [vmem:[#allocation4 + $0x70] sm:$0xff]
    %v1372 = vld [vmem:[#allocation4 + $0x78] sm:$0xff]
    %v1373 = vld [vmem:[#allocation4 + $0x80] sm:$0xff]
    %v1374 = vld [vmem:[#allocation4 + $0x88] sm:$0xff]
    %v1375 = vld [vmem:[#allocation4 + $0x90] sm:$0xff]
    %v1376 = vld [vmem:[#allocation4 + $0x98] sm:$0xff]
    %v1377 = vld [vmem:[#allocation4 + $0xa0] sm:$0xff]
    %v1378 = vld [vmem:[#allocation4 + $0xa8] sm:$0xff]
    %v1379 = vld [vmem:[#allocation4 + $0xb0] sm:$0xff]
    %v1380 = vld [vmem:[#allocation4 + $0xb8] sm:$0xff]
    %v1381 = vld [vmem:[#allocation4 + $0xc0] sm:$0xff]
    %v1382 = vld [vmem:[#allocation4 + $0xc8] sm:$0xff]
    %v1383 = vld [vmem:[#allocation4 + $0xd0] sm:$0xff]
    %v1384 = vld [vmem:[#allocation4 + $0xd8] sm:$0xff]
    %v1385 = vld [vmem:[#allocation4 + $0xe0] sm:$0xff]
    %v1386 = vld [vmem:[#allocation4 + $0xe8] sm:$0xff]
    %v1387 = vld [vmem:[#allocation4 + $0xf0] sm:$0xff]
    %v1388 = vld [vmem:[#allocation4 + $0xf8] sm:$0xff]
    %v1389 = vld [vmem:[#allocation4 + $0x100] sm:$0xff]
    %v1390 = vld [vmem:[#allocation4 + $0x108] sm:$0xff]
    %v1391 = vld [vmem:[#allocation4 + $0x110] sm:$0xff]
    %v1392 = vld [vmem:[#allocation4 + $0x118] sm:$0xff]
    %v1393 = vld [vmem:[#allocation4 + $0x120] sm:$0xff]
    %v1394 = vld [vmem:[#allocation4 + $0x128] sm:$0xff]
    %v1395 = vld [vmem:[#allocation4 + $0x130] sm:$0xff]
    %v1396 = vld [vmem:[#allocation4 + $0x138] sm:$0xff]
    %v1397 = vld [vmem:[#allocation4 + $0x140] sm:$0xff]
    %v1398 = vld [vmem:[#allocation4 + $0x148] sm:$0xff]
    %v1399 = vld [vmem:[#allocation4 + $0x150] sm:$0xff]
    %v1400 = vld [vmem:[#allocation4 + $0x158] sm:$0xff]
    %v1401 = vld [vmem:[#allocation4 + $0x160] sm:$0xff]
    %v1402 = vld [vmem:[#allocation4 + $0x168] sm:$0xff]
    %v1403 = vld [vmem:[#allocation4 + $0x170] sm:$0xff]
    %v1404 = vld [vmem:[#allocation4 + $0x178] sm:$0xff]
    %v1405 = vld [vmem:[#allocation4 + $0x180] sm:$0xff]
    %v1406 = vld [vmem:[#allocation4 + $0x188] sm:$0xff]
    %v1407 = vld [vmem:[#allocation4 + $0x190] sm:$0xff]
    %v1408 = vld [vmem:[#allocation4 + $0x198] sm:$0xff]
    %v1409 = vld [vmem:[#allocation4 + $0x1a0] sm:$0xff]
    %v1410 = vld [vmem:[#allocation4 + $0x1a8] sm:$0xff]
    %v1411 = vld [vmem:[#allocation4 + $0x1b0] sm:$0xff]
    %v1412 = vld [vmem:[#allocation4 + $0x1b8] sm:$0xff]
    %v1413 = vld [vmem:[#allocation4 + $0x1c0] sm:$0xff]
    %v1414 = vld [vmem:[#allocation4 + $0x1c8] sm:$0xff]
    %v1415 = vld [vmem:[#allocation4 + $0x1d0] sm:$0xff]
    %v1416 = vld [vmem:[#allocation4 + $0x1d8] sm:$0xff]
    %v1417 = vld [vmem:[#allocation4 + $0x1e0] sm:$0xff]
    %v1418 = vld [vmem:[#allocation4 + $0x1e8] sm:$0xff]
    %v1419 = vld [vmem:[#allocation4 + $0x1f0] sm:$0xff]
    %v1420 = vld [vmem:[#allocation4 + $0x1f8] sm:$0xff]
    %v1421 = vld [vmem:[%s4] sm:$0x3]
    %v1423 = vlaneseq
    %v1424 = vshrl.u32 %v1423, 7
    %v1425 = vsub.s32 0, %v1424
    %v1426 = vrot.slane %v1421, %v1425
    %v1427 = vlaneseq
    %v1428 = vshrl.u32 %v1427, 7
    %v1429 = vsub.s32 1, %v1428
    %v1430 = vrot.slane %v1421, %v1429
    %v1497 = vunpack.c.l.b16 %v1357
    %v1498 = vunpack.c.h.b16 %v1357
    %v1499 = vunpack.c.l.b16 %v1358
    %v1500 = vunpack.c.h.b16 %v1358
    %v1501 = vunpack.c.l.b16 %v1359
    %v1502 = vunpack.c.h.b16 %v1359
    %v1503 = vunpack.c.l.b16 %v1360
    %v1504 = vunpack.c.h.b16 %v1360
    %v1505 = vunpack.c.l.b16 %v1361
    %v1506 = vunpack.c.h.b16 %v1361
    %v1507 = vunpack.c.l.b16 %v1362
    %v1508 = vunpack.c.h.b16 %v1362
    %v1509 = vunpack.c.l.b16 %v1363
    %v1510 = vunpack.c.h.b16 %v1363
    %v1511 = vunpack.c.l.b16 %v1364
    %v1512 = vunpack.c.h.b16 %v1364
    %v1513 = vunpack.c.l.b16 %v1365
    %v1514 = vunpack.c.h.b16 %v1365
    %v1515 = vunpack.c.l.b16 %v1366
    %v1516 = vunpack.c.h.b16 %v1366
    %v1517 = vunpack.c.l.b16 %v1367
    %v1518 = vunpack.c.h.b16 %v1367
    %v1519 = vunpack.c.l.b16 %v1368
    %v1520 = vunpack.c.h.b16 %v1368
    %v1521 = vunpack.c.l.b16 %v1369
    %v1522 = vunpack.c.h.b16 %v1369
    %v1523 = vunpack.c.l.b16 %v1370
    %v1524 = vunpack.c.h.b16 %v1370
    %v1525 = vunpack.c.l.b16 %v1371
    %v1526 = vunpack.c.h.b16 %v1371
    %v1527 = vunpack.c.l.b16 %v1372
    %v1528 = vunpack.c.h.b16 %v1372
    %v1529 = vunpack.c.l.b16 %v1373
    %v1530 = vunpack.c.h.b16 %v1373
    %v1531 = vunpack.c.l.b16 %v1374
    %v1532 = vunpack.c.h.b16 %v1374
    %v1533 = vunpack.c.l.b16 %v1375
    %v1534 = vunpack.c.h.b16 %v1375
    %v1535 = vunpack.c.l.b16 %v1376
    %v1536 = vunpack.c.h.b16 %v1376
    %v1537 = vunpack.c.l.b16 %v1377
    %v1538 = vunpack.c.h.b16 %v1377
    %v1539 = vunpack.c.l.b16 %v1378
    %v1540 = vunpack.c.h.b16 %v1378
    %v1541 = vunpack.c.l.b16 %v1379
    %v1542 = vunpack.c.h.b16 %v1379
    %v1543 = vunpack.c.l.b16 %v1380
    %v1544 = vunpack.c.h.b16 %v1380
    %v1545 = vunpack.c.l.b16 %v1381
    %v1546 = vunpack.c.h.b16 %v1381
    %v1547 = vunpack.c.l.b16 %v1382
    %v1548 = vunpack.c.h.b16 %v1382
    %v1549 = vunpack.c.l.b16 %v1383
    %v1550 = vunpack.c.h.b16 %v1383
    %v1551 = vunpack.c.l.b16 %v1384
    %v1552 = vunpack.c.h.b16 %v1384
    %v1553 = vunpack.c.l.b16 %v1385
    %v1554 = vunpack.c.h.b16 %v1385
    %v1555 = vunpack.c.l.b16 %v1386
    %v1556 = vunpack.c.h.b16 %v1386
    %v1557 = vunpack.c.l.b16 %v1387
    %v1558 = vunpack.c.h.b16 %v1387
    %v1559 = vunpack.c.l.b16 %v1388
    %v1560 = vunpack.c.h.b16 %v1388
    %v1561 = vunpack.c.l.b16 %v1389
    %v1562 = vunpack.c.h.b16 %v1389
    %v1563 = vunpack.c.l.b16 %v1390
    %v1564 = vunpack.c.h.b16 %v1390
    %v1565 = vunpack.c.l.b16 %v1391
    %v1566 = vunpack.c.h.b16 %v1391
    %v1567 = vunpack.c.l.b16 %v1392
    %v1568 = vunpack.c.h.b16 %v1392
    %v1569 = vunpack.c.l.b16 %v1393
    %v1570 = vunpack.c.h.b16 %v1393
    %v1571 = vunpack.c.l.b16 %v1394
    %v1572 = vunpack.c.h.b16 %v1394
    %v1573 = vunpack.c.l.b16 %v1395
    %v1574 = vunpack.c.h.b16 %v1395
    %v1575 = vunpack.c.l.b16 %v1396
    %v1576 = vunpack.c.h.b16 %v1396
    %v1577 = vunpack.c.l.b16 %v1397
    %v1578 = vunpack.c.h.b16 %v1397
    %v1579 = vunpack.c.l.b16 %v1398
    %v1580 = vunpack.c.h.b16 %v1398
    %v1581 = vunpack.c.l.b16 %v1399
    %v1582 = vunpack.c.h.b16 %v1399
    %v1583 = vunpack.c.l.b16 %v1400
    %v1584 = vunpack.c.h.b16 %v1400
    %v1585 = vunpack.c.l.b16 %v1401
    %v1586 = vunpack.c.h.b16 %v1401
    %v1587 = vunpack.c.l.b16 %v1402
    %v1588 = vunpack.c.h.b16 %v1402
    %v1589 = vunpack.c.l.b16 %v1403
    %v1590 = vunpack.c.h.b16 %v1403
    %v1591 = vunpack.c.l.b16 %v1404
    %v1592 = vunpack.c.h.b16 %v1404
    %v1593 = vunpack.c.l.b16 %v1405
    %v1594 = vunpack.c.h.b16 %v1405
    %v1595 = vunpack.c.l.b16 %v1406
    %v1596 = vunpack.c.h.b16 %v1406
    %v1597 = vunpack.c.l.b16 %v1407
    %v1598 = vunpack.c.h.b16 %v1407
    %v1599 = vunpack.c.l.b16 %v1408
    %v1600 = vunpack.c.h.b16 %v1408
    %v1601 = vunpack.c.l.b16 %v1409
    %v1602 = vunpack.c.h.b16 %v1409
    %v1603 = vunpack.c.l.b16 %v1410
    %v1604 = vunpack.c.h.b16 %v1410
    %v1605 = vunpack.c.l.b16 %v1411
    %v1606 = vunpack.c.h.b16 %v1411
    %v1607 = vunpack.c.l.b16 %v1412
    %v1608 = vunpack.c.h.b16 %v1412
    %v1609 = vunpack.c.l.b16 %v1413
    %v1610 = vunpack.c.h.b16 %v1413
    %v1611 = vunpack.c.l.b16 %v1414
    %v1612 = vunpack.c.h.b16 %v1414
    %v1613 = vunpack.c.l.b16 %v1415
    %v1614 = vunpack.c.h.b16 %v1415
    %v1615 = vunpack.c.l.b16 %v1416
    %v1616 = vunpack.c.h.b16 %v1416
    %v1617 = vunpack.c.l.b16 %v1417
    %v1618 = vunpack.c.h.b16 %v1417
    %v1619 = vunpack.c.l.b16 %v1418
    %v1620 = vunpack.c.h.b16 %v1418
    %v1621 = vunpack.c.l.b16 %v1419
    %v1622 = vunpack.c.h.b16 %v1419
    %v1623 = vunpack.c.l.b16 %v1420
    %v1624 = vunpack.c.h.b16 %v1420
    %v1625 = vpack.c.b16 %v1499, %v1497
    %v1626 = vpack.c.b16 %v1500, %v1498
    %v1627 = vpack.c.b16 %v1503, %v1501
    %v1628 = vpack.c.b16 %v1504, %v1502
    %v1629 = vpack.c.b16 %v1507, %v1505
    %v1630 = vpack.c.b16 %v1508, %v1506
    %v1631 = vpack.c.b16 %v1511, %v1509
    %v1632 = vpack.c.b16 %v1512, %v1510
    %v1633 = vpack.c.b16 %v1515, %v1513
    %v1634 = vpack.c.b16 %v1516, %v1514
    %v1635 = vpack.c.b16 %v1519, %v1517
    %v1636 = vpack.c.b16 %v1520, %v1518
    %v1637 = vpack.c.b16 %v1523, %v1521
    %v1638 = vpack.c.b16 %v1524, %v1522
    %v1639 = vpack.c.b16 %v1527, %v1525
    %v1640 = vpack.c.b16 %v1528, %v1526
    %v1641 = vpack.c.b16 %v1531, %v1529
    %v1642 = vpack.c.b16 %v1532, %v1530
    %v1643 = vpack.c.b16 %v1535, %v1533
    %v1644 = vpack.c.b16 %v1536, %v1534
    %v1645 = vpack.c.b16 %v1539, %v1537
    %v1646 = vpack.c.b16 %v1540, %v1538
    %v1647 = vpack.c.b16 %v1543, %v1541
    %v1648 = vpack.c.b16 %v1544, %v1542
    %v1649 = vpack.c.b16 %v1547, %v1545
    %v1650 = vpack.c.b16 %v1548, %v1546
    %v1651 = vpack.c.b16 %v1551, %v1549
    %v1652 = vpack.c.b16 %v1552, %v1550
    %v1653 = vpack.c.b16 %v1555, %v1553
    %v1654 = vpack.c.b16 %v1556, %v1554
    %v1655 = vpack.c.b16 %v1559, %v1557
    %v1656 = vpack.c.b16 %v1560, %v1558
    %v1657 = vpack.c.b16 %v1563, %v1561
    %v1658 = vpack.c.b16 %v1564, %v1562
    %v1659 = vpack.c.b16 %v1567, %v1565
    %v1660 = vpack.c.b16 %v1568, %v1566
    %v1661 = vpack.c.b16 %v1571, %v1569
    %v1662 = vpack.c.b16 %v1572, %v1570
    %v1663 = vpack.c.b16 %v1575, %v1573
    %v1664 = vpack.c.b16 %v1576, %v1574
    %v1665 = vpack.c.b16 %v1579, %v1577
    %v1666 = vpack.c.b16 %v1580, %v1578
    %v1667 = vpack.c.b16 %v1583, %v1581
    %v1668 = vpack.c.b16 %v1584, %v1582
    %v1669 = vpack.c.b16 %v1587, %v1585
    %v1670 = vpack.c.b16 %v1588, %v1586
    %v1671 = vpack.c.b16 %v1591, %v1589
    %v1672 = vpack.c.b16 %v1592, %v1590
    %v1673 = vpack.c.b16 %v1595, %v1593
    %v1674 = vpack.c.b16 %v1596, %v1594
    %v1675 = vpack.c.b16 %v1599, %v1597
    %v1676 = vpack.c.b16 %v1600, %v1598
    %v1677 = vpack.c.b16 %v1603, %v1601
    %v1678 = vpack.c.b16 %v1604, %v1602
    %v1679 = vpack.c.b16 %v1607, %v1605
    %v1680 = vpack.c.b16 %v1608, %v1606
    %v1681 = vpack.c.b16 %v1611, %v1609
    %v1682 = vpack.c.b16 %v1612, %v1610
    %v1683 = vpack.c.b16 %v1615, %v1613
    %v1684 = vpack.c.b16 %v1616, %v1614
    %v1685 = vpack.c.b16 %v1619, %v1617
    %v1686 = vpack.c.b16 %v1620, %v1618
    %v1687 = vpack.c.b16 %v1623, %v1621
    %v1688 = vpack.c.b16 %v1624, %v1622
    %1753 = vmatprep.subr.bf16.mxu0 %v1626
    %1754 = vmatpush1.bf16.msra.mxu0 %v1625
    %1755 = vmatprep.subr.bf16.mxu0 %v1628
    %1756 = vmatpush1.bf16.msra.mxu0 %v1627
    %1757 = vmatprep.subr.bf16.mxu0 %v1630
    %1758 = vmatpush1.bf16.msra.mxu0 %v1629
    %1759 = vmatprep.subr.bf16.mxu0 %v1632
    %1760 = vmatpush1.bf16.msra.mxu0 %v1631
    %1761 = vmatprep.subr.bf16.mxu0 %v1634
    %1762 = vmatpush1.bf16.msra.mxu0 %v1633
    %1763 = vmatprep.subr.bf16.mxu0 %v1636
    %1764 = vmatpush1.bf16.msra.mxu0 %v1635
    %1765 = vmatprep.subr.bf16.mxu0 %v1638
    %1766 = vmatpush1.bf16.msra.mxu0 %v1637
    %1767 = vmatprep.subr.bf16.mxu0 %v1640
    %1768 = vmatpush1.bf16.msra.mxu0 %v1639
    %1769 = vmatprep.subr.bf16.mxu0 %v1642
    %1770 = vmatpush1.bf16.msra.mxu0 %v1641
    %1771 = vmatprep.subr.bf16.mxu0 %v1644
    %1772 = vmatpush1.bf16.msra.mxu0 %v1643
    %1773 = vmatprep.subr.bf16.mxu0 %v1646
    %1774 = vmatpush1.bf16.msra.mxu0 %v1645
    %1775 = vmatprep.subr.bf16.mxu0 %v1648
    %1776 = vmatpush1.bf16.msra.mxu0 %v1647
    %1777 = vmatprep.subr.bf16.mxu0 %v1650
    %1778 = vmatpush1.bf16.msra.mxu0 %v1649
    %1779 = vmatprep.subr.bf16.mxu0 %v1652
    %1780 = vmatpush1.bf16.msra.mxu0 %v1651
    %1781 = vmatprep.subr.bf16.mxu0 %v1654
    %1782 = vmatpush1.bf16.msra.mxu0 %v1653
    %1783 = vmatprep.subr.bf16.mxu0 %v1656
    %1784 = vmatpush1.bf16.msra.mxu0 %v1655
    %1785 = vmatprep.mubr.bf16.mxu0 %v1354
    %1786 = vmatmul.mubr.bf16.gmra.mrb[0].mxu0 %v1353
    %v1787 = vpop.f32.mrb[0].mxu0
    %v1788 = vadd.f32 %v1426, %v1787
    %v1789 = vpop.f32.mrb[0].mxu0
    %v1790 = vadd.f32 %v1430, %v1789
    %v1791 = vpop.f32.mrb[0].mxu0
    %v1792 = vpop.f32.mrb[0].mxu0
    %1793 = vdwg.mxu0
    %1794 = vmatprep.subr.bf16.mxu0 %v1658
    %1795 = vmatpush1.bf16.msra.mxu0 %v1657
    %1796 = vmatprep.subr.bf16.mxu0 %v1660
    %1797 = vmatpush1.bf16.msra.mxu0 %v1659
    %1798 = vmatprep.subr.bf16.mxu0 %v1662
    %1799 = vmatpush1.bf16.msra.mxu0 %v1661
    %1800 = vmatprep.subr.bf16.mxu0 %v1664
    %1801 = vmatpush1.bf16.msra.mxu0 %v1663
    %1802 = vmatprep.subr.bf16.mxu0 %v1666
    %1803 = vmatpush1.bf16.msra.mxu0 %v1665
    %1804 = vmatprep.subr.bf16.mxu0 %v1668
    %1805 = vmatpush1.bf16.msra.mxu0 %v1667
    %1806 = vmatprep.subr.bf16.mxu0 %v1670
    %1807 = vmatpush1.bf16.msra.mxu0 %v1669
    %1808 = vmatprep.subr.bf16.mxu0 %v1672
    %1809 = vmatpush1.bf16.msra.mxu0 %v1671
    %1810 = vmatprep.subr.bf16.mxu0 %v1674
    %1811 = vmatpush1.bf16.msra.mxu0 %v1673
    %1812 = vmatprep.subr.bf16.mxu0 %v1676
    %1813 = vmatpush1.bf16.msra.mxu0 %v1675
    %1814 = vmatprep.subr.bf16.mxu0 %v1678
    %1815 = vmatpush1.bf16.msra.mxu0 %v1677
    %1816 = vmatprep.subr.bf16.mxu0 %v1680
    %1817 = vmatpush1.bf16.msra.mxu0 %v1679
    %1818 = vmatprep.subr.bf16.mxu0 %v1682
    %1819 = vmatpush1.bf16.msra.mxu0 %v1681
    %1820 = vmatprep.subr.bf16.mxu0 %v1684
    %1821 = vmatpush1.bf16.msra.mxu0 %v1683
    %1822 = vmatprep.subr.bf16.mxu0 %v1686
    %1823 = vmatpush1.bf16.msra.mxu0 %v1685
    %1824 = vmatprep.subr.bf16.mxu0 %v1688
    %1825 = vmatpush1.bf16.msra.mxu0 %v1687
    %1826 = vmatprep.mubr.bf16.mxu0 %v1356
    %1827 = vmatmul.mubr.bf16.gmra.mrb[0].mxu0 %v1355
    %v1828 = vpop.f32.mrb[0].mxu0
    %v1829 = vadd.f32 %v1788, %v1828
    %v1830 = vpop.f32.mrb[0].mxu0
    %v1831 = vadd.f32 %v1790, %v1830
    %v1832 = vpop.f32.mrb[0].mxu0
    %v1833 = vpop.f32.mrb[0].mxu0
    %1834 = vdwg.mxu0
    %v1835 = vmax.f32 %v1829, 0.0
    %v1836 = vmul.f32 %v1831, 0.5
    %v1837 = vtanh.pop %v1836
    %v1838 = vadd.f32 %v1837, 1.0
    %v1839 = vmul.f32 %v1838, 0.5
    %v1840 = vpack.c.bf16 %v1835, %v1835
    %v1841 = vpack.c.bf16 %v1839, %v1839
    %v1842 = vld [vmem:[#allocation6] sm:$0xff]
    %v1843 = vld [vmem:[#allocation6 + $0x8] sm:$0xff]
    %v1844 = vld [vmem:[#allocation6 + $0x10] sm:$0xff]
    %v1845 = vld [vmem:[#allocation6 + $0x18] sm:$0xff]
    %v1846 = vld [vmem:[#allocation6 + $0x20] sm:$0xff]
    %v1847 = vld [vmem:[#allocation6 + $0x28] sm:$0xff]
    %v1848 = vld [vmem:[#allocation6 + $0x30] sm:$0xff]
    %v1849 = vld [vmem:[#allocation6 + $0x38] sm:$0xff]
    %v1850 = vld [vmem:[#allocation6 + $0x40] sm:$0xff]
    %v1851 = vld [vmem:[#allocation6 + $0x48] sm:$0xff]
    %v1852 = vld [vmem:[#allocation6 + $0x50] sm:$0xff]
    %v1853 = vld [vmem:[#allocation6 + $0x58] sm:$0xff]
    %v1854 = vld [vmem:[#allocation6 + $0x60] sm:$0xff]
    %v1855 = vld [vmem:[#allocation6 + $0x68] sm:$0xff]
    %v1856 = vld [vmem:[#allocation6 + $0x70] sm:$0xff]
    %v1857 = vld [vmem:[#allocation6 + $0x78] sm:$0xff]
    %v1858 = vld [vmem:[#allocation6 + $0x80] sm:$0xff]
    %v1859 = vld [vmem:[#allocation6 + $0x88] sm:$0xff]
    %v1860 = vld [vmem:[#allocation6 + $0x90] sm:$0xff]
    %v1861 = vld [vmem:[#allocation6 + $0x98] sm:$0xff]
    %v1862 = vld [vmem:[#allocation6 + $0xa0] sm:$0xff]
    %v1863 = vld [vmem:[#allocation6 + $0xa8] sm:$0xff]
    %v1864 = vld [vmem:[#allocation6 + $0xb0] sm:$0xff]
    %v1865 = vld [vmem:[#allocation6 + $0xb8] sm:$0xff]
    %v1866 = vld [vmem:[#allocation6 + $0xc0] sm:$0xff]
    %v1867 = vld [vmem:[#allocation6 + $0xc8] sm:$0xff]
    %v1868 = vld [vmem:[#allocation6 + $0xd0] sm:$0xff]
    %v1869 = vld [vmem:[#allocation6 + $0xd8] sm:$0xff]
    %v1870 = vld [vmem:[#allocation6 + $0xe0] sm:$0xff]
    %v1871 = vld [vmem:[#allocation6 + $0xe8] sm:$0xff]
    %v1872 = vld [vmem:[#allocation6 + $0xf0] sm:$0xff]
    %v1873 = vld [vmem:[#allocation6 + $0xf8] sm:$0xff]
    %v1874 = vld [vmem:[%s6] sm:$0x3]
    %v1876 = vlaneseq
    %v1877 = vshrl.u32 %v1876, 7
    %v1878 = vsub.s32 0, %v1877
    %v1879 = vrot.slane %v1874, %v1878
    %v1880 = vlaneseq
    %v1881 = vshrl.u32 %v1880, 7
    %v1882 = vsub.s32 1, %v1881
    %v1883 = vrot.slane %v1874, %v1882
    %v1918 = vunpack.c.l.b16 %v1842
    %v1919 = vunpack.c.h.b16 %v1842
    %v1920 = vunpack.c.l.b16 %v1843
    %v1921 = vunpack.c.h.b16 %v1843
    %v1922 = vunpack.c.l.b16 %v1844
    %v1923 = vunpack.c.h.b16 %v1844
    %v1924 = vunpack.c.l.b16 %v1845
    %v1925 = vunpack.c.h.b16 %v1845
    %v1926 = vunpack.c.l.b16 %v1846
    %v1927 = vunpack.c.h.b16 %v1846
    %v1928 = vunpack.c.l.b16 %v1847
    %v1929 = vunpack.c.h.b16 %v1847
    %v1930 = vunpack.c.l.b16 %v1848
    %v1931 = vunpack.c.h.b16 %v1848
    %v1932 = vunpack.c.l.b16 %v1849
    %v1933 = vunpack.c.h.b16 %v1849
    %v1934 = vunpack.c.l.b16 %v1850
    %v1935 = vunpack.c.h.b16 %v1850
    %v1936 = vunpack.c.l.b16 %v1851
    %v1937 = vunpack.c.h.b16 %v1851
    %v1938 = vunpack.c.l.b16 %v1852
    %v1939 = vunpack.c.h.b16 %v1852
    %v1940 = vunpack.c.l.b16 %v1853
    %v1941 = vunpack.c.h.b16 %v1853
    %v1942 = vunpack.c.l.b16 %v1854
    %v1943 = vunpack.c.h.b16 %v1854
    %v1944 = vunpack.c.l.b16 %v1855
    %v1945 = vunpack.c.h.b16 %v1855
    %v1946 = vunpack.c.l.b16 %v1856
    %v1947 = vunpack.c.h.b16 %v1856
    %v1948 = vunpack.c.l.b16 %v1857
    %v1949 = vunpack.c.h.b16 %v1857
    %v1950 = vunpack.c.l.b16 %v1858
    %v1951 = vunpack.c.h.b16 %v1858
    %v1952 = vunpack.c.l.b16 %v1859
    %v1953 = vunpack.c.h.b16 %v1859
    %v1954 = vunpack.c.l.b16 %v1860
    %v1955 = vunpack.c.h.b16 %v1860
    %v1956 = vunpack.c.l.b16 %v1861
    %v1957 = vunpack.c.h.b16 %v1861
    %v1958 = vunpack.c.l.b16 %v1862
    %v1959 = vunpack.c.h.b16 %v1862
    %v1960 = vunpack.c.l.b16 %v1863
    %v1961 = vunpack.c.h.b16 %v1863
    %v1962 = vunpack.c.l.b16 %v1864
    %v1963 = vunpack.c.h.b16 %v1864
    %v1964 = vunpack.c.l.b16 %v1865
    %v1965 = vunpack.c.h.b16 %v1865
    %v1966 = vunpack.c.l.b16 %v1866
    %v1967 = vunpack.c.h.b16 %v1866
    %v1968 = vunpack.c.l.b16 %v1867
    %v1969 = vunpack.c.h.b16 %v1867
    %v1970 = vunpack.c.l.b16 %v1868
    %v1971 = vunpack.c.h.b16 %v1868
    %v1972 = vunpack.c.l.b16 %v1869
    %v1973 = vunpack.c.h.b16 %v1869
    %v1974 = vunpack.c.l.b16 %v1870
    %v1975 = vunpack.c.h.b16 %v1870
    %v1976 = vunpack.c.l.b16 %v1871
    %v1977 = vunpack.c.h.b16 %v1871
    %v1978 = vunpack.c.l.b16 %v1872
    %v1979 = vunpack.c.h.b16 %v1872
    %v1980 = vunpack.c.l.b16 %v1873
    %v1981 = vunpack.c.h.b16 %v1873
    %v1982 = vpack.c.b16 %v1920, %v1918
    %v1983 = vpack.c.b16 %v1921, %v1919
    %v1984 = vpack.c.b16 %v1924, %v1922
    %v1985 = vpack.c.b16 %v1925, %v1923
    %v1986 = vpack.c.b16 %v1928, %v1926
    %v1987 = vpack.c.b16 %v1929, %v1927
    %v1988 = vpack.c.b16 %v1932, %v1930
    %v1989 = vpack.c.b16 %v1933, %v1931
    %v1990 = vpack.c.b16 %v1936, %v1934
    %v1991 = vpack.c.b16 %v1937, %v1935
    %v1992 = vpack.c.b16 %v1940, %v1938
    %v1993 = vpack.c.b16 %v1941, %v1939
    %v1994 = vpack.c.b16 %v1944, %v1942
    %v1995 = vpack.c.b16 %v1945, %v1943
    %v1996 = vpack.c.b16 %v1948, %v1946
    %v1997 = vpack.c.b16 %v1949, %v1947
    %v1998 = vpack.c.b16 %v1952, %v1950
    %v1999 = vpack.c.b16 %v1953, %v1951
    %v2000 = vpack.c.b16 %v1956, %v1954
    %v2001 = vpack.c.b16 %v1957, %v1955
    %v2002 = vpack.c.b16 %v1960, %v1958
    %v2003 = vpack.c.b16 %v1961, %v1959
    %v2004 = vpack.c.b16 %v1964, %v1962
    %v2005 = vpack.c.b16 %v1965, %v1963
    %v2006 = vpack.c.b16 %v1968, %v1966
    %v2007 = vpack.c.b16 %v1969, %v1967
    %v2008 = vpack.c.b16 %v1972, %v1970
    %v2009 = vpack.c.b16 %v1973, %v1971
    %v2010 = vpack.c.b16 %v1976, %v1974
    %v2011 = vpack.c.b16 %v1977, %v1975
    %v2012 = vpack.c.b16 %v1980, %v1978
    %v2013 = vpack.c.b16 %v1981, %v1979
    %2046 = vmatprep.subr.bf16.mxu0 %v1983
    %2047 = vmatpush1.bf16.msra.mxu0 %v1982
    %2048 = vmatprep.subr.bf16.mxu0 %v1985
    %2049 = vmatpush1.bf16.msra.mxu0 %v1984
    %2050 = vmatprep.subr.bf16.mxu0 %v1987
    %2051 = vmatpush1.bf16.msra.mxu0 %v1986
    %2052 = vmatprep.subr.bf16.mxu0 %v1989
    %2053 = vmatpush1.bf16.msra.mxu0 %v1988
    %2054 = vmatprep.subr.bf16.mxu0 %v1991
    %2055 = vmatpush1.bf16.msra.mxu0 %v1990
    %2056 = vmatprep.subr.bf16.mxu0 %v1993
    %2057 = vmatpush1.bf16.msra.mxu0 %v1992
    %2058 = vmatprep.subr.bf16.mxu0 %v1995
    %2059 = vmatpush1.bf16.msra.mxu0 %v1994
    %2060 = vmatprep.subr.bf16.mxu0 %v1997
    %2061 = vmatpush1.bf16.msra.mxu0 %v1996
    %2062 = vmatprep.subr.bf16.mxu0 %v1999
    %2063 = vmatpush1.bf16.msra.mxu0 %v1998
    %2064 = vmatprep.subr.bf16.mxu0 %v2001
    %2065 = vmatpush1.bf16.msra.mxu0 %v2000
    %2066 = vmatprep.subr.bf16.mxu0 %v2003
    %2067 = vmatpush1.bf16.msra.mxu0 %v2002
    %2068 = vmatprep.subr.bf16.mxu0 %v2005
    %2069 = vmatpush1.bf16.msra.mxu0 %v2004
    %2070 = vmatprep.subr.bf16.mxu0 %v2007
    %2071 = vmatpush1.bf16.msra.mxu0 %v2006
    %2072 = vmatprep.subr.bf16.mxu0 %v2009
    %2073 = vmatpush1.bf16.msra.mxu0 %v2008
    %2074 = vmatprep.subr.bf16.mxu0 %v2011
    %2075 = vmatpush1.bf16.msra.mxu0 %v2010
    %2076 = vmatprep.subr.bf16.mxu0 %v2013
    %2077 = vmatpush1.bf16.msra.mxu0 %v2012
    %2078 = vmatprep.mubr.bf16.mxu0 %v1841
    %2079 = vmatmul.mubr.bf16.gmra.mrb[0].mxu0 %v1840
    %v2080 = vpop.f32.mrb[0].mxu0
    %v2081 = vadd.f32 %v1879, %v2080
    %v2082 = vpop.f32.mrb[0].mxu0
    %v2083 = vadd.f32 %v1883, %v2082
    %v2084 = vpop.f32.mrb[0].mxu0
    %v2085 = vpop.f32.mrb[0].mxu0
    %2086 = vdwg.mxu0
    %vm2087 = vcmask 1041408
    %v2088 = vsel %vm2087, %v1338, -inf
    %2089 = vmax.xlane.f32.xlu0 %v2088
    %v2090 = vpop.xlane.xlu0 %2089
    %v2091 = vsub.f32 %v1338, %v2090
    %v2092 = vmul.f32 %v2091, 1.442695
    %v2093 = vpow.pop %v2092
    %v2094 = vsel %vm2087, %v2093, 0.0
    %2095 = vadd.xlane.f32.xlu0 %v2094
    %v2096 = vpop.xlane.xlu0 %2095
    %v2097 = vrcp.pop %v2096
    %v2098 = vmul.f32 %v2093, %v2097
    %2099 = vst [vmem:[%s7] sm:$0x3] %v2098
    %v2100 = vsel %vm2087, %v2081, -inf
    %2101 = vmax.xlane.f32.xlu0 %v2100
    %v2102 = vpop.xlane.xlu0 %2101
    %v2103 = vsub.f32 %v2081, %v2102
    %v2104 = vmul.f32 %v2103, 1.442695
    %v2105 = vpow.pop %v2104
    %v2106 = vsel %vm2087, %v2105, 0.0
    %2107 = vadd.xlane.f32.xlu0 %v2106
    %v2108 = vpop.xlane.xlu0 %2107
    %v2109 = vrcp.pop %v2108
    %v2110 = vmul.f32 %v2105, %v2109
    %2111 = vst [vmem:[%s7 + $0x2] sm:$0x3] %v2110
    %v2112 = vsel %vm2087, %v2083, -inf
    %2113 = vmax.xlane.f32.xlu0 %v2112
    %v2114 = vpop.xlane.xlu0 %2113
    %v2115 = vsub.f32 %v2083, %v2114
    %v2116 = vmul.f32 %v2115, 1.442695
    %v2117 = vpow.pop %v2116
    %v2118 = vsel %vm2087, %v2117, 0.0
    %2119 = vadd.xlane.f32.xlu0 %v2118
    %v2120 = vpop.xlane.xlu0 %2119
    %v2121 = vrcp.pop %v2120
    %v2122 = vmul.f32 %v2117, %v2121
    %2123 = vst [vmem:[%s7 + $0x4] sm:$0x3] %v2122
    // Predicated region
    $region42: #{_all_heads_jit.1} parent=1 // pred_check
      _
    $region43: #{_all_heads_jit.1} parent=1 // pred_check_branch
      %2125 = sbr.rel (0) target = $region45
    $region44: #{_all_heads_jit.1} parent=1 // pred_region
      _
    $region45: #{_all_heads_jit.1} parent=1 // pred_fallthru
      _
    // Predicated region
    $region46: #{_all_heads_jit.1} parent=1 // pred_check
      _
    $region47: #{_all_heads_jit.1} parent=1 // pred_check_branch
      %2127 = sbr.rel (0) target = $region49
    $region48: #{_all_heads_jit.1} parent=1 // pred_region
      _
    $region49: #{_all_heads_jit.1} parent=1 // pred_fallthru
      _
    %2128 = vsyncpa [#allocation3], 1
    %2129 = vsyncpa [#allocation5], 1

</llo_original>
